<compile_context>
chip_gen: v7x
topology: tpu7x:2x2x1
jax: 0.10.0
libtpu: 0.0.40
codegen_flags: <defaults>
</compile_context>

<pallas_src>
import jax
import jax.numpy as jnp
from jax import lax
from jax.experimental import pallas as pl
from jax.experimental.pallas import tpu as pltpu


# ----------------------------------------------------------------------------
# small helpers (static, Python-level)
# ----------------------------------------------------------------------------
def _round_up(x, m):
    return (x + m - 1) // m * m


def _largest_divisor_le(n, cap):
    for d in range(min(n, cap), 0, -1):
        if n % d == 0:
            return d
    return 1


def _row_tile(m, cap=512):
    # largest multiple of 8 that divides m (m is always a multiple of 8 here)
    for d in range(min(m, cap), 7, -1):
        if m % d == 0 and d % 8 == 0:
            return d
    return m


# ----------------------------------------------------------------------------
# Kernel 1: hoisted input projection  X_proj = x @ W_ih^T + (b_ih + b_hh)
# One big parallel matmul over all S*B rows (fills the MXU, unlike the old
# per-timestep (B, Din) x (Din, 4H) matmul).
# ----------------------------------------------------------------------------
def _input_proj_kernel(x_ref, w_ref, b_ref, o_ref):
    o_ref[...] = (
        jnp.dot(x_ref[...], w_ref[...], preferred_element_type=jnp.float32)
        + b_ref[...]
    ).astype(o_ref.dtype)


def input_projection(x2d, w_ih_t, bias):
    M, d_in = x2d.shape
    G = w_ih_t.shape[1]
    tm = _row_tile(M)                      # M-tile up to 512 rows for the MXU
    return pl.pallas_call(
        _input_proj_kernel,
        out_shape=jax.ShapeDtypeStruct((M, G), jnp.float32),
        grid_spec=pltpu.PrefetchScalarGridSpec(
            num_scalar_prefetch=0,
            grid=(M // tm,),
            in_specs=[
                pl.BlockSpec((tm, d_in), lambda i: (i, 0)),
                # constant index_map -> weight / bias fetched only once
                pl.BlockSpec((d_in, G), lambda i: (0, 0)),
                pl.BlockSpec((1, G), lambda i: (0, 0)),
            ],
            out_specs=pl.BlockSpec((tm, G), lambda i: (i, 0)),
        ),
        compiler_params=pltpu.CompilerParams(
            dimension_semantics=("parallel",),
        ),
    )(x2d, w_ih_t, bias.reshape(1, G))


# ----------------------------------------------------------------------------
# Kernel 2: the recurrence.  Grid = (batch_tiles [parallel], time_chunks
# [arbitrary]).  Each grid step processes T timesteps with an unrolled loop;
# only h @ W_hh is computed per step.  W_hh lives single-buffered in VMEM
# scratch (one explicit DMA at the start of each batch tile).
# ----------------------------------------------------------------------------
def _lstm_recurrence_kernel(xproj_ref, whh_hbm_ref,          # inputs
                            y_ref, hN_ref,                   # outputs
                            h_sc, c_sc, whh_vmem, dma_sem):  # scratch
    t = pl.program_id(1)
    nt = pl.num_programs(1)
    T = xproj_ref.shape[0]
    H = h_sc.shape[-1]

    @pl.when(t == 0)
    def _():
        # single-buffered weight load + recurrent state init (per batch tile)
        cp = pltpu.make_async_copy(whh_hbm_ref, whh_vmem, dma_sem)
        cp.start()
        cp.wait()
        h_sc[...] = jnp.zeros_like(h_sc)
        c_sc[...] = jnp.zeros_like(c_sc)

    def step(i, carry):
        # gates = (x @ W_ih + b) [precomputed] + h @ W_hh
        gates = xproj_ref[i] + jnp.dot(
            h_sc[...], whh_vmem[...], preferred_element_type=jnp.float32
        )
        # PyTorch gate order: i, f, g, o
        i_g = jax.nn.sigmoid(gates[:, 0 * H:1 * H])
        f_g = jax.nn.sigmoid(gates[:, 1 * H:2 * H])
        g_g = jnp.tanh(gates[:, 2 * H:3 * H])
        o_g = jax.nn.sigmoid(gates[:, 3 * H:4 * H])
        c_new = f_g * c_sc[...] + i_g * g_g
        h_new = o_g * jnp.tanh(c_new)
        c_sc[...] = c_new
        h_sc[...] = h_new
        y_ref[i] = h_new.astype(y_ref.dtype)
        return carry

    lax.fori_loop(0, T, step, 0, unroll=True)

    # final hidden state written only once, on the last time chunk
    @pl.when(t == nt - 1)
    def _():
        hN_ref[...] = h_sc[...].astype(hN_ref.dtype)


def lstm_layer(xproj, w_hh_t, *, batch_tile, time_chunk):
    """xproj: (S, BP, 4H) precomputed input projection (time-major, padded B).

    Returns y_seq (S, BP, H) and h_final (BP, H).
    """
    S, BP, G = xproj.shape
    H = w_hh_t.shape[0]
    nb = BP // batch_tile
    nt = S // time_chunk

    y_seq, h_final = pl.pallas_call(
        _lstm_recurrence_kernel,
        out_shape=(
            jax.ShapeDtypeStruct((S, BP, H), jnp.float32),
            jax.ShapeDtypeStruct((BP, H), jnp.float32),
        ),
        grid_spec=pltpu.PrefetchScalarGridSpec(
            num_scalar_prefetch=0,
            grid=(nb, nt),
            in_specs=[
                pl.BlockSpec((time_chunk, batch_tile, G),
                             lambda b, t: (t, b, 0)),
                pl.BlockSpec(memory_space=pl.ANY),   # W_hh: manual single-buffer DMA
            ],
            out_specs=[
                pl.BlockSpec((time_chunk, batch_tile, H),
                             lambda b, t: (t, b, 0)),
                pl.BlockSpec((batch_tile, H), lambda b, t: (b, 0)),
            ],
            scratch_shapes=[
                pltpu.VMEM((batch_tile, H), jnp.float32),   # h
                pltpu.VMEM((batch_tile, H), jnp.float32),   # c
                pltpu.VMEM((H, G), jnp.float32),            # W_hh (single copy)
                pltpu.SemaphoreType.DMA(()),
            ],
        ),
        compiler_params=pltpu.CompilerParams(
            # batch tiles are independent (megacore on v7x); time must be serial
            dimension_semantics=("parallel", "arbitrary"),
        ),
    )(xproj, w_hh_t)
    return y_seq, h_final


# ----------------------------------------------------------------------------
# Kernel 3: classifier  (BP, H) @ (H, C) + (1, C)
# ----------------------------------------------------------------------------
def _linear_kernel(x_ref, w_ref, b_ref, o_ref):
    o_ref[...] = (
        jnp.dot(x_ref[...], w_ref[...], preferred_element_type=jnp.float32)
        + b_ref[...]
    ).astype(o_ref.dtype)


def linear(x, w_t, b):
    BP, H = x.shape
    C = w_t.shape[1]
    return pl.pallas_call(
        _linear_kernel,
        out_shape=jax.ShapeDtypeStruct((BP, C), jnp.float32),
        grid_spec=pltpu.PrefetchScalarGridSpec(
            num_scalar_prefetch=0,
            grid=(1,),
            in_specs=[
                pl.BlockSpec((BP, H), lambda i: (0, 0)),
                pl.BlockSpec((H, C), lambda i: (0, 0)),
                pl.BlockSpec((1, C), lambda i: (0, 0)),
            ],
            out_specs=pl.BlockSpec((BP, C), lambda i: (0, 0)),
        ),
    )(x, w_t, b.reshape(1, C))


# ----------------------------------------------------------------------------
# Full forward (equivalent of Rnn.forward)
# ----------------------------------------------------------------------------
def _rnn_forward_impl(x_bf, params):
    """x_bf: (B, S, Din) batch-first.  Returns logits (B, n_classes)."""
    B, S, _ = x_bf.shape
    x_seq = jnp.transpose(x_bf, (1, 0, 2))            # time-major (S, B, Din)

    # Pad batch to >=8 / multiple of 8 (sublane alignment); choose a batch tile
    # for the leading parallel grid axis.
    BP = _round_up(max(B, 8), 8)
    TB = BP if BP <= 128 else 128
    BP = _round_up(BP, TB)
    if BP != B:
        x_seq = jnp.pad(x_seq, ((0, 0), (0, BP - B), (0, 0)))

    T = _largest_divisor_le(S, 32)                     # time-chunk length

    h_last = None
    for layer in params["lstm"]:
        d_in = x_seq.shape[-1]
        G = layer["w_ih_t"].shape[1]
        # hoisted input projection (bias folded in), one big parallel matmul
        xproj = input_projection(
            x_seq.reshape(S * BP, d_in), layer["w_ih_t"], layer["bias"]
        ).reshape(S, BP, G)
        # TODO(synk): for real model sizes, emit y_seq in bf16 to halve the
        # inter-layer HBM traffic (kept f32 here for exact reference parity).
        x_seq, h_last = lstm_layer(
            xproj, layer["w_hh_t"], batch_tile=TB, time_chunk=T
        )

    logits = linear(h_last, params["fc_w_t"], params["fc_b"])
    return logits[:B]                                  # drop batch padding


rnn_forward = jax.jit(_rnn_forward_impl)


# ----------------------------------------------------------------------------
# Deterministic parameter init (matches nn.LSTM / nn.Linear shapes)
# ----------------------------------------------------------------------------
def init_params(key, in_dim, hidden_dim, n_layer, n_classes):
    params = {"lstm": []}
    k = 1.0 / jnp.sqrt(hidden_dim)
    for l in range(n_layer):
        d_in = in_dim if l == 0 else hidden_dim
        key, k1, k2, k3, k4 = jax.random.split(key, 5)
        w_ih = jax.random.uniform(k1, (4 * hidden_dim, d_in), jnp.float32, -k, k)
        w_hh = jax.random.uniform(k2, (4 * hidden_dim, hidden_dim), jnp.float32, -k, k)
        b_ih = jax.random.uniform(k3, (4 * hidden_dim,), jnp.float32, -k, k)
        b_hh = jax.random.uniform(k4, (4 * hidden_dim,), jnp.float32, -k, k)
        params["lstm"].append(
            {"w_ih_t": w_ih.T, "w_hh_t": w_hh.T, "bias": b_ih + b_hh}
        )
    key, k5, k6 = jax.random.split(key, 3)
    kc = 1.0 / jnp.sqrt(hidden_dim)
    fc_w = jax.random.uniform(k5, (n_classes, hidden_dim), jnp.float32, -kc, kc)
    fc_b = jax.random.uniform(k6, (n_classes,), jnp.float32, -kc, kc)
    params["fc_w_t"] = fc_w.T
    params["fc_b"] = fc_b
    return params


# ----------------------------------------------------------------------------
# Pure-JAX reference (sanity check against the Pallas path)
# ----------------------------------------------------------------------------
def rnn_reference(x_bf, params):
    x_seq = jnp.transpose(x_bf, (1, 0, 2))
    h_last = None
    for layer in params["lstm"]:
        S, B, _ = x_seq.shape
        H = layer["w_hh_t"].shape[0]

        def step(carry, x_t):
            h, c = carry
            g = x_t @ layer["w_ih_t"] + h @ layer["w_hh_t"] + layer["bias"]
            i = jax.nn.sigmoid(g[:, 0 * H:1 * H])
            f = jax.nn.sigmoid(g[:, 1 * H:2 * H])
            gg = jnp.tanh(g[:, 2 * H:3 * H])
            o = jax.nn.sigmoid(g[:, 3 * H:4 * H])
            c = f * c + i * gg
            h = o * jnp.tanh(c)
            return (h, c), h

        (h_last, _), y = jax.lax.scan(
            step, (jnp.zeros((B, H)), jnp.zeros((B, H))), x_seq
        )
        x_seq = y
    return h_last @ params["fc_w_t"] + params["fc_b"]


if __name__ == "__main__":
    # Small shapes consistent with the module: x is (batch, seq, in_dim).
    B, S, IN_DIM, HIDDEN, N_LAYER, N_CLASSES = 4, 8, 16, 32, 2, 10

    key = jax.random.PRNGKey(0)
    key, kx, kp = jax.random.split(key, 3)
    x = jax.random.normal(kx, (B, S, IN_DIM), dtype=jnp.float32)
    params = init_params(kp, IN_DIM, HIDDEN, N_LAYER, N_CLASSES)

    logits = rnn_forward(x, params)
    jax.block_until_ready(logits)

    ref = rnn_reference(x, params)
    assert logits.shape == (B, N_CLASSES)
    assert jnp.allclose(logits, ref, atol=2e-4, rtol=2e-4), "mismatch vs reference"

    print("KERNEL_OK")
</pallas_src>

<mosaic_0001>
module attributes {stable_mosaic.version = 11 : i64} {
  func.func @_input_proj_kernel(%arg0: i32, %arg1: memref<64x16xf32, #tpu.memory_space<vmem>>, %arg2: memref<16x128xf32, #tpu.memory_space<vmem>>, %arg3: memref<1x128xf32, #tpu.memory_space<vmem>>, %arg4: memref<64x128xf32, #tpu.memory_space<vmem>>) attributes {dimension_semantics = [#tpu.dimension_semantics<parallel>], iteration_bounds = array<i64: 1>, scalar_prefetch = 0 : i64, scratch_operands = 0 : i64, tpu.core_type = #tpu.core_type<tc>, window_params = [{transform_indices = @transform_0, window_bounds = array<i64: 64, 16>}, {pipeline_mode = #tpu.pipeline_mode<synchronous>, transform_indices = @transform_1, window_bounds = array<i64: 16, 128>}, {pipeline_mode = #tpu.pipeline_mode<synchronous>, transform_indices = @transform_2, window_bounds = array<i64: 1, 128>}, {transform_indices = @transform_3, window_bounds = array<i64: 64, 128>}]} {
    %c0 = arith.constant 0 : index
    %c0_0 = arith.constant 0 : index
    %0 = vector.load %arg1[%c0, %c0_0] : memref<64x16xf32, #tpu.memory_space<vmem>>, vector<64x16xf32>
    %c0_1 = arith.constant 0 : index
    %c0_2 = arith.constant 0 : index
    %1 = vector.load %arg2[%c0_1, %c0_2] : memref<16x128xf32, #tpu.memory_space<vmem>>, vector<16x128xf32>
    %cst = arith.constant dense<0.000000e+00> : vector<64x128xf32>
    %2 = tpu.matmul %0, %1, %cst {dimension_numbers = #tpu.dot_dimension_numbers<[1], [0], [0], [1], [0, 0, 1, 1], [], []>} : vector<64x16xf32>, vector<16x128xf32>, vector<64x128xf32> -> vector<64x128xf32>
    %c0_3 = arith.constant 0 : index
    %c0_4 = arith.constant 0 : index
    %3 = vector.load %arg3[%c0_3, %c0_4] : memref<1x128xf32, #tpu.memory_space<vmem>>, vector<1x128xf32>
    %4 = vector.broadcast %3 : vector<1x128xf32> to vector<64x128xf32>
    %5 = arith.addf %2, %4 : vector<64x128xf32>
    %c0_5 = arith.constant 0 : index
    %c0_6 = arith.constant 0 : index
    %6 = vector.load %arg4[%c0_5, %c0_6] : memref<64x128xf32, #tpu.memory_space<vmem>>, vector<64x128xf32>
    tpu.vector_store %arg4[%c0_5, %c0_6], %5 {strides = array<i32>} : memref<64x128xf32, #tpu.memory_space<vmem>>, vector<64x128xf32>,
    return
  }
  func.func @transform_0(%arg0: i32) -> (i32, i32) {
    %c0_i32 = arith.constant 0 : i32
    %c0_i32_0 = arith.constant 0 : i32
    return %arg0, %c0_i32 : i32, i32
  }
  func.func @transform_1(%arg0: i32) -> (i32, i32) {
    %c0_i32 = arith.constant 0 : i32
    %c0_i32_0 = arith.constant 0 : i32
    %c0_i32_1 = arith.constant 0 : i32
    return %c0_i32, %c0_i32_0 : i32, i32
  }
  func.func @transform_2(%arg0: i32) -> (i32, i32) {
    %c0_i32 = arith.constant 0 : i32
    %c0_i32_0 = arith.constant 0 : i32
    %c0_i32_1 = arith.constant 0 : i32
    return %c0_i32, %c0_i32_0 : i32, i32
  }
  func.func @transform_3(%arg0: i32) -> (i32, i32) {
    %c0_i32 = arith.constant 0 : i32
    %c0_i32_0 = arith.constant 0 : i32
    return %arg0, %c0_i32 : i32, i32
  }
}

module attributes {stable_mosaic.version = 11 : i64} {
  func.func @_lstm_recurrence_kernel(%arg0: i32, %arg1: i32, %arg2: memref<8x8x128xf32, #tpu.memory_space<vmem>>, %arg3: memref<32x128xf32, #tpu.memory_space<any>>, %arg4: memref<8x8x32xf32, #tpu.memory_space<vmem>>, %arg5: memref<8x32xf32, #tpu.memory_space<vmem>>, %arg6: memref<8x32xf32, #tpu.memory_space<vmem>>, %arg7: memref<8x32xf32, #tpu.memory_space<vmem>>, %arg8: memref<32x128xf32, #tpu.memory_space<vmem>>, %arg9: memref<!tpu.dma_semaphore, #tpu.memory_space<semaphore_mem>>) attributes {dimension_semantics = [#tpu.dimension_semantics<parallel>, #tpu.dimension_semantics<arbitrary>], iteration_bounds = array<i64: 1, 1>, scalar_prefetch = 0 : i64, scratch_operands = 4 : i64, tpu.core_type = #tpu.core_type<tc>, window_params = [{transform_indices = @transform_0, window_bounds = array<i64: 8, 8, 128>}, {}, {transform_indices = @transform_2, window_bounds = array<i64: 8, 8, 32>}, {transform_indices = @transform_3, window_bounds = array<i64: 8, 32>}]} {
    %c0_i32 = arith.constant 0 : i32
    %0 = arith.cmpi eq, %arg1, %c0_i32 : i32
    %1 = arith.extui %0 : i1 to i32
    %c0_i32_0 = arith.constant 0 : i32
    %2 = arith.cmpi ne, %1, %c0_i32_0 : i32
    scf.if %2 {
      tpu.enqueue_dma source(%arg3 : memref<32x128xf32, #tpu.memory_space<any>>) target(%arg8 : memref<32x128xf32, #tpu.memory_space<vmem>>) target_semaphore(%arg9 : memref<!tpu.dma_semaphore, #tpu.memory_space<semaphore_mem>>)
      tpu.wait_dma2 semaphore(%arg9 : memref<!tpu.dma_semaphore, #tpu.memory_space<semaphore_mem>>) src(%arg3 : memref<32x128xf32, #tpu.memory_space<any>>) dst(%arg8 : memref<32x128xf32, #tpu.memory_space<vmem>>)
      %cst_146 = arith.constant 0.000000e+00 : f32
      %318 = vector.broadcast %cst_146 : f32 to vector<8x32xf32>
      %c0_147 = arith.constant 0 : index
      %c0_148 = arith.constant 0 : index
      %319 = vector.load %arg6[%c0_147, %c0_148] : memref<8x32xf32, #tpu.memory_space<vmem>>, vector<8x32xf32>
      tpu.vector_store %arg6[%c0_147, %c0_148], %318 {strides = array<i32>} : memref<8x32xf32, #tpu.memory_space<vmem>>, vector<8x32xf32>,
      %cst_149 = arith.constant 0.000000e+00 : f32
      %320 = vector.broadcast %cst_149 : f32 to vector<8x32xf32>
      %c0_150 = arith.constant 0 : index
      %c0_151 = arith.constant 0 : index
      %321 = vector.load %arg7[%c0_150, %c0_151] : memref<8x32xf32, #tpu.memory_space<vmem>>, vector<8x32xf32>
      tpu.vector_store %arg7[%c0_150, %c0_151], %320 {strides = array<i32>} : memref<8x32xf32, #tpu.memory_space<vmem>>, vector<8x32xf32>,
    } else {
    }
    %c0_i32_1 = arith.constant 0 : i32
    %3 = arith.index_cast %c0_i32_1 : i32 to index
    %c0 = arith.constant 0 : index
    %c0_2 = arith.constant 0 : index
    %4 = vector.load %arg2[%3, %c0, %c0_2] : memref<8x8x128xf32, #tpu.memory_space<vmem>>, vector<1x8x128xf32>
    %5 = vector.shape_cast %4 : vector<1x8x128xf32> to vector<8x128xf32>
    %c0_3 = arith.constant 0 : index
    %c0_4 = arith.constant 0 : index
    %6 = vector.load %arg6[%c0_3, %c0_4] : memref<8x32xf32, #tpu.memory_space<vmem>>, vector<8x32xf32>
    %c0_5 = arith.constant 0 : index
    %c0_6 = arith.constant 0 : index
    %7 = vector.load %arg8[%c0_5, %c0_6] : memref<32x128xf32, #tpu.memory_space<vmem>>, vector<32x128xf32>
    %cst = arith.constant dense<0.000000e+00> : vector<8x128xf32>
    %8 = tpu.matmul %6, %7, %cst {dimension_numbers = #tpu.dot_dimension_numbers<[1], [0], [0], [1], [0, 0, 1, 1], [], []>} : vector<8x32xf32>, vector<32x128xf32>, vector<8x128xf32> -> vector<8x128xf32>
    %9 = arith.addf %5, %8 : vector<8x128xf32>
    %10 = vector.extract_strided_slice %9 {offsets = [0, 0], sizes = [8, 32], strides = [1, 1]} : vector<8x128xf32> to vector<8x32xf32>
    %11 = arith.negf %10 : vector<8x32xf32>
    %12 = math.exp %11 : vector<8x32xf32>
    %cst_7 = arith.constant 1.000000e+00 : f32
    %13 = vector.broadcast %cst_7 : f32 to vector<8x32xf32>
    %14 = arith.addf %13, %12 : vector<8x32xf32>
    %15 = arith.divf %13, %14 : vector<8x32xf32>
    %16 = vector.extract_strided_slice %9 {offsets = [0, 32], sizes = [8, 32], strides = [1, 1]} : vector<8x128xf32> to vector<8x32xf32>
    %17 = arith.negf %16 : vector<8x32xf32>
    %18 = math.exp %17 : vector<8x32xf32>
    %cst_8 = arith.constant 1.000000e+00 : f32
    %19 = vector.broadcast %cst_8 : f32 to vector<8x32xf32>
    %20 = arith.addf %19, %18 : vector<8x32xf32>
    %21 = arith.divf %19, %20 : vector<8x32xf32>
    %22 = vector.extract_strided_slice %9 {offsets = [0, 64], sizes = [8, 32], strides = [1, 1]} : vector<8x128xf32> to vector<8x32xf32>
    %23 = math.tanh %22 : vector<8x32xf32>
    %24 = vector.extract_strided_slice %9 {offsets = [0, 96], sizes = [8, 32], strides = [1, 1]} : vector<8x128xf32> to vector<8x32xf32>
    %25 = arith.negf %24 : vector<8x32xf32>
    %26 = math.exp %25 : vector<8x32xf32>
    %cst_9 = arith.constant 1.000000e+00 : f32
    %27 = vector.broadcast %cst_9 : f32 to vector<8x32xf32>
    %28 = arith.addf %27, %26 : vector<8x32xf32>
    %29 = arith.divf %27, %28 : vector<8x32xf32>
    %c0_10 = arith.constant 0 : index
    %c0_11 = arith.constant 0 : index
    %30 = vector.load %arg7[%c0_10, %c0_11] : memref<8x32xf32, #tpu.memory_space<vmem>>, vector<8x32xf32>
    %31 = arith.mulf %21, %30 : vector<8x32xf32>
    %32 = arith.mulf %15, %23 : vector<8x32xf32>
    %33 = arith.addf %31, %32 : vector<8x32xf32>
    %34 = math.tanh %33 : vector<8x32xf32>
    %35 = arith.mulf %29, %34 : vector<8x32xf32>
    %c0_12 = arith.constant 0 : index
    %c0_13 = arith.constant 0 : index
    %36 = vector.load %arg7[%c0_12, %c0_13] : memref<8x32xf32, #tpu.memory_space<vmem>>, vector<8x32xf32>
    tpu.vector_store %arg7[%c0_12, %c0_13], %33 {strides = array<i32>} : memref<8x32xf32, #tpu.memory_space<vmem>>, vector<8x32xf32>,
    %c0_14 = arith.constant 0 : index
    %c0_15 = arith.constant 0 : index
    %37 = vector.load %arg6[%c0_14, %c0_15] : memref<8x32xf32, #tpu.memory_space<vmem>>, vector<8x32xf32>
    tpu.vector_store %arg6[%c0_14, %c0_15], %35 {strides = array<i32>} : memref<8x32xf32, #tpu.memory_space<vmem>>, vector<8x32xf32>,
    %38 = arith.index_cast %c0_i32_1 : i32 to index
    %c0_16 = arith.constant 0 : index
    %c0_17 = arith.constant 0 : index
    %39 = vector.load %arg4[%38, %c0_16, %c0_17] : memref<8x8x32xf32, #tpu.memory_space<vmem>>, vector<1x8x32xf32>
    %40 = vector.shape_cast %39 : vector<1x8x32xf32> to vector<8x32xf32>
    %41 = vector.shape_cast %35 : vector<8x32xf32> to vector<1x8x32xf32>
    tpu.vector_store %arg4[%38, %c0_16, %c0_17], %41 {strides = array<i32>} : memref<8x8x32xf32, #tpu.memory_space<vmem>>, vector<1x8x32xf32>,
    %c1_i32 = arith.constant 1 : i32
    %42 = arith.index_cast %c1_i32 : i32 to index
    %c0_18 = arith.constant 0 : index
    %c0_19 = arith.constant 0 : index
    %43 = vector.load %arg2[%42, %c0_18, %c0_19] : memref<8x8x128xf32, #tpu.memory_space<vmem>>, vector<1x8x128xf32>
    %44 = vector.shape_cast %43 : vector<1x8x128xf32> to vector<8x128xf32>
    %c0_20 = arith.constant 0 : index
    %c0_21 = arith.constant 0 : index
    %45 = vector.load %arg6[%c0_20, %c0_21] : memref<8x32xf32, #tpu.memory_space<vmem>>, vector<8x32xf32>
    %c0_22 = arith.constant 0 : index
    %c0_23 = arith.constant 0 : index
    %46 = vector.load %arg8[%c0_22, %c0_23] : memref<32x128xf32, #tpu.memory_space<vmem>>, vector<32x128xf32>
    %cst_24 = arith.constant dense<0.000000e+00> : vector<8x128xf32>
    %47 = tpu.matmul %45, %46, %cst_24 {dimension_numbers = #tpu.dot_dimension_numbers<[1], [0], [0], [1], [0, 0, 1, 1], [], []>} : vector<8x32xf32>, vector<32x128xf32>, vector<8x128xf32> -> vector<8x128xf32>
    %48 = arith.addf %44, %47 : vector<8x128xf32>
    %49 = vector.extract_strided_slice %48 {offsets = [0, 0], sizes = [8, 32], strides = [1, 1]} : vector<8x128xf32> to vector<8x32xf32>
    %50 = arith.negf %49 : vector<8x32xf32>
    %51 = math.exp %50 : vector<8x32xf32>
    %cst_25 = arith.constant 1.000000e+00 : f32
    %52 = vector.broadcast %cst_25 : f32 to vector<8x32xf32>
    %53 = arith.addf %52, %51 : vector<8x32xf32>
    %54 = arith.divf %52, %53 : vector<8x32xf32>
    %55 = vector.extract_strided_slice %48 {offsets = [0, 32], sizes = [8, 32], strides = [1, 1]} : vector<8x128xf32> to vector<8x32xf32>
    %56 = arith.negf %55 : vector<8x32xf32>
    %57 = math.exp %56 : vector<8x32xf32>
    %cst_26 = arith.constant 1.000000e+00 : f32
    %58 = vector.broadcast %cst_26 : f32 to vector<8x32xf32>
    %59 = arith.addf %58, %57 : vector<8x32xf32>
    %60 = arith.divf %58, %59 : vector<8x32xf32>
    %61 = vector.extract_strided_slice %48 {offsets = [0, 64], sizes = [8, 32], strides = [1, 1]} : vector<8x128xf32> to vector<8x32xf32>
    %62 = math.tanh %61 : vector<8x32xf32>
    %63 = vector.extract_strided_slice %48 {offsets = [0, 96], sizes = [8, 32], strides = [1, 1]} : vector<8x128xf32> to vector<8x32xf32>
    %64 = arith.negf %63 : vector<8x32xf32>
    %65 = math.exp %64 : vector<8x32xf32>
    %cst_27 = arith.constant 1.000000e+00 : f32
    %66 = vector.broadcast %cst_27 : f32 to vector<8x32xf32>
    %67 = arith.addf %66, %65 : vector<8x32xf32>
    %68 = arith.divf %66, %67 : vector<8x32xf32>
    %c0_28 = arith.constant 0 : index
    %c0_29 = arith.constant 0 : index
    %69 = vector.load %arg7[%c0_28, %c0_29] : memref<8x32xf32, #tpu.memory_space<vmem>>, vector<8x32xf32>
    %70 = arith.mulf %60, %69 : vector<8x32xf32>
    %71 = arith.mulf %54, %62 : vector<8x32xf32>
    %72 = arith.addf %70, %71 : vector<8x32xf32>
    %73 = math.tanh %72 : vector<8x32xf32>
    %74 = arith.mulf %68, %73 : vector<8x32xf32>
    %c0_30 = arith.constant 0 : index
    %c0_31 = arith.constant 0 : index
    %75 = vector.load %arg7[%c0_30, %c0_31] : memref<8x32xf32, #tpu.memory_space<vmem>>, vector<8x32xf32>
    tpu.vector_store %arg7[%c0_30, %c0_31], %72 {strides = array<i32>} : memref<8x32xf32, #tpu.memory_space<vmem>>, vector<8x32xf32>,
    %c0_32 = arith.constant 0 : index
    %c0_33 = arith.constant 0 : index
    %76 = vector.load %arg6[%c0_32, %c0_33] : memref<8x32xf32, #tpu.memory_space<vmem>>, vector<8x32xf32>
    tpu.vector_store %arg6[%c0_32, %c0_33], %74 {strides = array<i32>} : memref<8x32xf32, #tpu.memory_space<vmem>>, vector<8x32xf32>,
    %77 = arith.index_cast %c1_i32 : i32 to index
    %c0_34 = arith.constant 0 : index
    %c0_35 = arith.constant 0 : index
    %78 = vector.load %arg4[%77, %c0_34, %c0_35] : memref<8x8x32xf32, #tpu.memory_space<vmem>>, vector<1x8x32xf32>
    %79 = vector.shape_cast %78 : vector<1x8x32xf32> to vector<8x32xf32>
    %80 = vector.shape_cast %74 : vector<8x32xf32> to vector<1x8x32xf32>
    tpu.vector_store %arg4[%77, %c0_34, %c0_35], %80 {strides = array<i32>} : memref<8x8x32xf32, #tpu.memory_space<vmem>>, vector<1x8x32xf32>,
    %c2_i32 = arith.constant 2 : i32
    %81 = arith.index_cast %c2_i32 : i32 to index
    %c0_36 = arith.constant 0 : index
    %c0_37 = arith.constant 0 : index
    %82 = vector.load %arg2[%81, %c0_36, %c0_37] : memref<8x8x128xf32, #tpu.memory_space<vmem>>, vector<1x8x128xf32>
    %83 = vector.shape_cast %82 : vector<1x8x128xf32> to vector<8x128xf32>
    %c0_38 = arith.constant 0 : index
    %c0_39 = arith.constant 0 : index
    %84 = vector.load %arg6[%c0_38, %c0_39] : memref<8x32xf32, #tpu.memory_space<vmem>>, vector<8x32xf32>
    %c0_40 = arith.constant 0 : index
    %c0_41 = arith.constant 0 : index
    %85 = vector.load %arg8[%c0_40, %c0_41] : memref<32x128xf32, #tpu.memory_space<vmem>>, vector<32x128xf32>
    %cst_42 = arith.constant dense<0.000000e+00> : vector<8x128xf32>
    %86 = tpu.matmul %84, %85, %cst_42 {dimension_numbers = #tpu.dot_dimension_numbers<[1], [0], [0], [1], [0, 0, 1, 1], [], []>} : vector<8x32xf32>, vector<32x128xf32>, vector<8x128xf32> -> vector<8x128xf32>
    %87 = arith.addf %83, %86 : vector<8x128xf32>
    %88 = vector.extract_strided_slice %87 {offsets = [0, 0], sizes = [8, 32], strides = [1, 1]} : vector<8x128xf32> to vector<8x32xf32>
    %89 = arith.negf %88 : vector<8x32xf32>
    %90 = math.exp %89 : vector<8x32xf32>
    %cst_43 = arith.constant 1.000000e+00 : f32
    %91 = vector.broadcast %cst_43 : f32 to vector<8x32xf32>
    %92 = arith.addf %91, %90 : vector<8x32xf32>
    %93 = arith.divf %91, %92 : vector<8x32xf32>
    %94 = vector.extract_strided_slice %87 {offsets = [0, 32], sizes = [8, 32], strides = [1, 1]} : vector<8x128xf32> to vector<8x32xf32>
    %95 = arith.negf %94 : vector<8x32xf32>
    %96 = math.exp %95 : vector<8x32xf32>
    %cst_44 = arith.constant 1.000000e+00 : f32
    %97 = vector.broadcast %cst_44 : f32 to vector<8x32xf32>
    %98 = arith.addf %97, %96 : vector<8x32xf32>
    %99 = arith.divf %97, %98 : vector<8x32xf32>
    %100 = vector.extract_strided_slice %87 {offsets = [0, 64], sizes = [8, 32], strides = [1, 1]} : vector<8x128xf32> to vector<8x32xf32>
    %101 = math.tanh %100 : vector<8x32xf32>
    %102 = vector.extract_strided_slice %87 {offsets = [0, 96], sizes = [8, 32], strides = [1, 1]} : vector<8x128xf32> to vector<8x32xf32>
    %103 = arith.negf %102 : vector<8x32xf32>
    %104 = math.exp %103 : vector<8x32xf32>
    %cst_45 = arith.constant 1.000000e+00 : f32
    %105 = vector.broadcast %cst_45 : f32 to vector<8x32xf32>
    %106 = arith.addf %105, %104 : vector<8x32xf32>
    %107 = arith.divf %105, %106 : vector<8x32xf32>
    %c0_46 = arith.constant 0 : index
    %c0_47 = arith.constant 0 : index
    %108 = vector.load %arg7[%c0_46, %c0_47] : memref<8x32xf32, #tpu.memory_space<vmem>>, vector<8x32xf32>
    %109 = arith.mulf %99, %108 : vector<8x32xf32>
    %110 = arith.mulf %93, %101 : vector<8x32xf32>
    %111 = arith.addf %109, %110 : vector<8x32xf32>
    %112 = math.tanh %111 : vector<8x32xf32>
    %113 = arith.mulf %107, %112 : vector<8x32xf32>
    %c0_48 = arith.constant 0 : index
    %c0_49 = arith.constant 0 : index
    %114 = vector.load %arg7[%c0_48, %c0_49] : memref<8x32xf32, #tpu.memory_space<vmem>>, vector<8x32xf32>
    tpu.vector_store %arg7[%c0_48, %c0_49], %111 {strides = array<i32>} : memref<8x32xf32, #tpu.memory_space<vmem>>, vector<8x32xf32>,
    %c0_50 = arith.constant 0 : index
    %c0_51 = arith.constant 0 : index
    %115 = vector.load %arg6[%c0_50, %c0_51] : memref<8x32xf32, #tpu.memory_space<vmem>>, vector<8x32xf32>
    tpu.vector_store %arg6[%c0_50, %c0_51], %113 {strides = array<i32>} : memref<8x32xf32, #tpu.memory_space<vmem>>, vector<8x32xf32>,
    %116 = arith.index_cast %c2_i32 : i32 to index
    %c0_52 = arith.constant 0 : index
    %c0_53 = arith.constant 0 : index
    %117 = vector.load %arg4[%116, %c0_52, %c0_53] : memref<8x8x32xf32, #tpu.memory_space<vmem>>, vector<1x8x32xf32>
    %118 = vector.shape_cast %117 : vector<1x8x32xf32> to vector<8x32xf32>
    %119 = vector.shape_cast %113 : vector<8x32xf32> to vector<1x8x32xf32>
    tpu.vector_store %arg4[%116, %c0_52, %c0_53], %119 {strides = array<i32>} : memref<8x8x32xf32, #tpu.memory_space<vmem>>, vector<1x8x32xf32>,
    %c3_i32 = arith.constant 3 : i32
    %120 = arith.index_cast %c3_i32 : i32 to index
    %c0_54 = arith.constant 0 : index
    %c0_55 = arith.constant 0 : index
    %121 = vector.load %arg2[%120, %c0_54, %c0_55] : memref<8x8x128xf32, #tpu.memory_space<vmem>>, vector<1x8x128xf32>
    %122 = vector.shape_cast %121 : vector<1x8x128xf32> to vector<8x128xf32>
    %c0_56 = arith.constant 0 : index
    %c0_57 = arith.constant 0 : index
    %123 = vector.load %arg6[%c0_56, %c0_57] : memref<8x32xf32, #tpu.memory_space<vmem>>, vector<8x32xf32>
    %c0_58 = arith.constant 0 : index
    %c0_59 = arith.constant 0 : index
    %124 = vector.load %arg8[%c0_58, %c0_59] : memref<32x128xf32, #tpu.memory_space<vmem>>, vector<32x128xf32>
    %cst_60 = arith.constant dense<0.000000e+00> : vector<8x128xf32>
    %125 = tpu.matmul %123, %124, %cst_60 {dimension_numbers = #tpu.dot_dimension_numbers<[1], [0], [0], [1], [0, 0, 1, 1], [], []>} : vector<8x32xf32>, vector<32x128xf32>, vector<8x128xf32> -> vector<8x128xf32>
    %126 = arith.addf %122, %125 : vector<8x128xf32>
    %127 = vector.extract_strided_slice %126 {offsets = [0, 0], sizes = [8, 32], strides = [1, 1]} : vector<8x128xf32> to vector<8x32xf32>
    %128 = arith.negf %127 : vector<8x32xf32>
    %129 = math.exp %128 : vector<8x32xf32>
    %cst_61 = arith.constant 1.000000e+00 : f32
    %130 = vector.broadcast %cst_61 : f32 to vector<8x32xf32>
    %131 = arith.addf %130, %129 : vector<8x32xf32>
    %132 = arith.divf %130, %131 : vector<8x32xf32>
    %133 = vector.extract_strided_slice %126 {offsets = [0, 32], sizes = [8, 32], strides = [1, 1]} : vector<8x128xf32> to vector<8x32xf32>
    %134 = arith.negf %133 : vector<8x32xf32>
    %135 = math.exp %134 : vector<8x32xf32>
    %cst_62 = arith.constant 1.000000e+00 : f32
    %136 = vector.broadcast %cst_62 : f32 to vector<8x32xf32>
    %137 = arith.addf %136, %135 : vector<8x32xf32>
    %138 = arith.divf %136, %137 : vector<8x32xf32>
    %139 = vector.extract_strided_slice %126 {offsets = [0, 64], sizes = [8, 32], strides = [1, 1]} : vector<8x128xf32> to vector<8x32xf32>
    %140 = math.tanh %139 : vector<8x32xf32>
    %141 = vector.extract_strided_slice %126 {offsets = [0, 96], sizes = [8, 32], strides = [1, 1]} : vector<8x128xf32> to vector<8x32xf32>
    %142 = arith.negf %141 : vector<8x32xf32>
    %143 = math.exp %142 : vector<8x32xf32>
    %cst_63 = arith.constant 1.000000e+00 : f32
    %144 = vector.broadcast %cst_63 : f32 to vector<8x32xf32>
    %145 = arith.addf %144, %143 : vector<8x32xf32>
    %146 = arith.divf %144, %145 : vector<8x32xf32>
    %c0_64 = arith.constant 0 : index
    %c0_65 = arith.constant 0 : index
    %147 = vector.load %arg7[%c0_64, %c0_65] : memref<8x32xf32, #tpu.memory_space<vmem>>, vector<8x32xf32>
    %148 = arith.mulf %138, %147 : vector<8x32xf32>
    %149 = arith.mulf %132, %140 : vector<8x32xf32>
    %150 = arith.addf %148, %149 : vector<8x32xf32>
    %151 = math.tanh %150 : vector<8x32xf32>
    %152 = arith.mulf %146, %151 : vector<8x32xf32>
    %c0_66 = arith.constant 0 : index
    %c0_67 = arith.constant 0 : index
    %153 = vector.load %arg7[%c0_66, %c0_67] : memref<8x32xf32, #tpu.memory_space<vmem>>, vector<8x32xf32>
    tpu.vector_store %arg7[%c0_66, %c0_67], %150 {strides = array<i32>} : memref<8x32xf32, #tpu.memory_space<vmem>>, vector<8x32xf32>,
    %c0_68 = arith.constant 0 : index
    %c0_69 = arith.constant 0 : index
    %154 = vector.load %arg6[%c0_68, %c0_69] : memref<8x32xf32, #tpu.memory_space<vmem>>, vector<8x32xf32>
    tpu.vector_store %arg6[%c0_68, %c0_69], %152 {strides = array<i32>} : memref<8x32xf32, #tpu.memory_space<vmem>>, vector<8x32xf32>,
    %155 = arith.index_cast %c3_i32 : i32 to index
    %c0_70 = arith.constant 0 : index
    %c0_71 = arith.constant 0 : index
    %156 = vector.load %arg4[%155, %c0_70, %c0_71] : memref<8x8x32xf32, #tpu.memory_space<vmem>>, vector<1x8x32xf32>
    %157 = vector.shape_cast %156 : vector<1x8x32xf32> to vector<8x32xf32>
    %158 = vector.shape_cast %152 : vector<8x32xf32> to vector<1x8x32xf32>
    tpu.vector_store %arg4[%155, %c0_70, %c0_71], %158 {strides = array<i32>} : memref<8x8x32xf32, #tpu.memory_space<vmem>>, vector<1x8x32xf32>,
    %c4_i32 = arith.constant 4 : i32
    %159 = arith.index_cast %c4_i32 : i32 to index
    %c0_72 = arith.constant 0 : index
    %c0_73 = arith.constant 0 : index
    %160 = vector.load %arg2[%159, %c0_72, %c0_73] : memref<8x8x128xf32, #tpu.memory_space<vmem>>, vector<1x8x128xf32>
    %161 = vector.shape_cast %160 : vector<1x8x128xf32> to vector<8x128xf32>
    %c0_74 = arith.constant 0 : index
    %c0_75 = arith.constant 0 : index
    %162 = vector.load %arg6[%c0_74, %c0_75] : memref<8x32xf32, #tpu.memory_space<vmem>>, vector<8x32xf32>
    %c0_76 = arith.constant 0 : index
    %c0_77 = arith.constant 0 : index
    %163 = vector.load %arg8[%c0_76, %c0_77] : memref<32x128xf32, #tpu.memory_space<vmem>>, vector<32x128xf32>
    %cst_78 = arith.constant dense<0.000000e+00> : vector<8x128xf32>
    %164 = tpu.matmul %162, %163, %cst_78 {dimension_numbers = #tpu.dot_dimension_numbers<[1], [0], [0], [1], [0, 0, 1, 1], [], []>} : vector<8x32xf32>, vector<32x128xf32>, vector<8x128xf32> -> vector<8x128xf32>
    %165 = arith.addf %161, %164 : vector<8x128xf32>
    %166 = vector.extract_strided_slice %165 {offsets = [0, 0], sizes = [8, 32], strides = [1, 1]} : vector<8x128xf32> to vector<8x32xf32>
    %167 = arith.negf %166 : vector<8x32xf32>
    %168 = math.exp %167 : vector<8x32xf32>
    %cst_79 = arith.constant 1.000000e+00 : f32
    %169 = vector.broadcast %cst_79 : f32 to vector<8x32xf32>
    %170 = arith.addf %169, %168 : vector<8x32xf32>
    %171 = arith.divf %169, %170 : vector<8x32xf32>
    %172 = vector.extract_strided_slice %165 {offsets = [0, 32], sizes = [8, 32], strides = [1, 1]} : vector<8x128xf32> to vector<8x32xf32>
    %173 = arith.negf %172 : vector<8x32xf32>
    %174 = math.exp %173 : vector<8x32xf32>
    %cst_80 = arith.constant 1.000000e+00 : f32
    %175 = vector.broadcast %cst_80 : f32 to vector<8x32xf32>
    %176 = arith.addf %175, %174 : vector<8x32xf32>
    %177 = arith.divf %175, %176 : vector<8x32xf32>
    %178 = vector.extract_strided_slice %165 {offsets = [0, 64], sizes = [8, 32], strides = [1, 1]} : vector<8x128xf32> to vector<8x32xf32>
    %179 = math.tanh %178 : vector<8x32xf32>
    %180 = vector.extract_strided_slice %165 {offsets = [0, 96], sizes = [8, 32], strides = [1, 1]} : vector<8x128xf32> to vector<8x32xf32>
    %181 = arith.negf %180 : vector<8x32xf32>
    %182 = math.exp %181 : vector<8x32xf32>
    %cst_81 = arith.constant 1.000000e+00 : f32
    %183 = vector.broadcast %cst_81 : f32 to vector<8x32xf32>
    %184 = arith.addf %183, %182 : vector<8x32xf32>
    %185 = arith.divf %183, %184 : vector<8x32xf32>
    %c0_82 = arith.constant 0 : index
    %c0_83 = arith.constant 0 : index
    %186 = vector.load %arg7[%c0_82, %c0_83] : memref<8x32xf32, #tpu.memory_space<vmem>>, vector<8x32xf32>
    %187 = arith.mulf %177, %186 : vector<8x32xf32>
    %188 = arith.mulf %171, %179 : vector<8x32xf32>
    %189 = arith.addf %187, %188 : vector<8x32xf32>
    %190 = math.tanh %189 : vector<8x32xf32>
    %191 = arith.mulf %185, %190 : vector<8x32xf32>
    %c0_84 = arith.constant 0 : index
    %c0_85 = arith.constant 0 : index
    %192 = vector.load %arg7[%c0_84, %c0_85] : memref<8x32xf32, #tpu.memory_space<vmem>>, vector<8x32xf32>
    tpu.vector_store %arg7[%c0_84, %c0_85], %189 {strides = array<i32>} : memref<8x32xf32, #tpu.memory_space<vmem>>, vector<8x32xf32>,
    %c0_86 = arith.constant 0 : index
    %c0_87 = arith.constant 0 : index
    %193 = vector.load %arg6[%c0_86, %c0_87] : memref<8x32xf32, #tpu.memory_space<vmem>>, vector<8x32xf32>
    tpu.vector_store %arg6[%c0_86, %c0_87], %191 {strides = array<i32>} : memref<8x32xf32, #tpu.memory_space<vmem>>, vector<8x32xf32>,
    %194 = arith.index_cast %c4_i32 : i32 to index
    %c0_88 = arith.constant 0 : index
    %c0_89 = arith.constant 0 : index
    %195 = vector.load %arg4[%194, %c0_88, %c0_89] : memref<8x8x32xf32, #tpu.memory_space<vmem>>, vector<1x8x32xf32>
    %196 = vector.shape_cast %195 : vector<1x8x32xf32> to vector<8x32xf32>
    %197 = vector.shape_cast %191 : vector<8x32xf32> to vector<1x8x32xf32>
    tpu.vector_store %arg4[%194, %c0_88, %c0_89], %197 {strides = array<i32>} : memref<8x8x32xf32, #tpu.memory_space<vmem>>, vector<1x8x32xf32>,
    %c5_i32 = arith.constant 5 : i32
    %198 = arith.index_cast %c5_i32 : i32 to index
    %c0_90 = arith.constant 0 : index
    %c0_91 = arith.constant 0 : index
    %199 = vector.load %arg2[%198, %c0_90, %c0_91] : memref<8x8x128xf32, #tpu.memory_space<vmem>>, vector<1x8x128xf32>
    %200 = vector.shape_cast %199 : vector<1x8x128xf32> to vector<8x128xf32>
    %c0_92 = arith.constant 0 : index
    %c0_93 = arith.constant 0 : index
    %201 = vector.load %arg6[%c0_92, %c0_93] : memref<8x32xf32, #tpu.memory_space<vmem>>, vector<8x32xf32>
    %c0_94 = arith.constant 0 : index
    %c0_95 = arith.constant 0 : index
    %202 = vector.load %arg8[%c0_94, %c0_95] : memref<32x128xf32, #tpu.memory_space<vmem>>, vector<32x128xf32>
    %cst_96 = arith.constant dense<0.000000e+00> : vector<8x128xf32>
    %203 = tpu.matmul %201, %202, %cst_96 {dimension_numbers = #tpu.dot_dimension_numbers<[1], [0], [0], [1], [0, 0, 1, 1], [], []>} : vector<8x32xf32>, vector<32x128xf32>, vector<8x128xf32> -> vector<8x128xf32>
    %204 = arith.addf %200, %203 : vector<8x128xf32>
    %205 = vector.extract_strided_slice %204 {offsets = [0, 0], sizes = [8, 32], strides = [1, 1]} : vector<8x128xf32> to vector<8x32xf32>
    %206 = arith.negf %205 : vector<8x32xf32>
    %207 = math.exp %206 : vector<8x32xf32>
    %cst_97 = arith.constant 1.000000e+00 : f32
    %208 = vector.broadcast %cst_97 : f32 to vector<8x32xf32>
    %209 = arith.addf %208, %207 : vector<8x32xf32>
    %210 = arith.divf %208, %209 : vector<8x32xf32>
    %211 = vector.extract_strided_slice %204 {offsets = [0, 32], sizes = [8, 32], strides = [1, 1]} : vector<8x128xf32> to vector<8x32xf32>
    %212 = arith.negf %211 : vector<8x32xf32>
    %213 = math.exp %212 : vector<8x32xf32>
    %cst_98 = arith.constant 1.000000e+00 : f32
    %214 = vector.broadcast %cst_98 : f32 to vector<8x32xf32>
    %215 = arith.addf %214, %213 : vector<8x32xf32>
    %216 = arith.divf %214, %215 : vector<8x32xf32>
    %217 = vector.extract_strided_slice %204 {offsets = [0, 64], sizes = [8, 32], strides = [1, 1]} : vector<8x128xf32> to vector<8x32xf32>
    %218 = math.tanh %217 : vector<8x32xf32>
    %219 = vector.extract_strided_slice %204 {offsets = [0, 96], sizes = [8, 32], strides = [1, 1]} : vector<8x128xf32> to vector<8x32xf32>
    %220 = arith.negf %219 : vector<8x32xf32>
    %221 = math.exp %220 : vector<8x32xf32>
    %cst_99 = arith.constant 1.000000e+00 : f32
    %222 = vector.broadcast %cst_99 : f32 to vector<8x32xf32>
    %223 = arith.addf %222, %221 : vector<8x32xf32>
    %224 = arith.divf %222, %223 : vector<8x32xf32>
    %c0_100 = arith.constant 0 : index
    %c0_101 = arith.constant 0 : index
    %225 = vector.load %arg7[%c0_100, %c0_101] : memref<8x32xf32, #tpu.memory_space<vmem>>, vector<8x32xf32>
    %226 = arith.mulf %216, %225 : vector<8x32xf32>
    %227 = arith.mulf %210, %218 : vector<8x32xf32>
    %228 = arith.addf %226, %227 : vector<8x32xf32>
    %229 = math.tanh %228 : vector<8x32xf32>
    %230 = arith.mulf %224, %229 : vector<8x32xf32>
    %c0_102 = arith.constant 0 : index
    %c0_103 = arith.constant 0 : index
    %231 = vector.load %arg7[%c0_102, %c0_103] : memref<8x32xf32, #tpu.memory_space<vmem>>, vector<8x32xf32>
    tpu.vector_store %arg7[%c0_102, %c0_103], %228 {strides = array<i32>} : memref<8x32xf32, #tpu.memory_space<vmem>>, vector<8x32xf32>,
    %c0_104 = arith.constant 0 : index
    %c0_105 = arith.constant 0 : index
    %232 = vector.load %arg6[%c0_104, %c0_105] : memref<8x32xf32, #tpu.memory_space<vmem>>, vector<8x32xf32>
    tpu.vector_store %arg6[%c0_104, %c0_105], %230 {strides = array<i32>} : memref<8x32xf32, #tpu.memory_space<vmem>>, vector<8x32xf32>,
    %233 = arith.index_cast %c5_i32 : i32 to index
    %c0_106 = arith.constant 0 : index
    %c0_107 = arith.constant 0 : index
    %234 = vector.load %arg4[%233, %c0_106, %c0_107] : memref<8x8x32xf32, #tpu.memory_space<vmem>>, vector<1x8x32xf32>
    %235 = vector.shape_cast %234 : vector<1x8x32xf32> to vector<8x32xf32>
    %236 = vector.shape_cast %230 : vector<8x32xf32> to vector<1x8x32xf32>
    tpu.vector_store %arg4[%233, %c0_106, %c0_107], %236 {strides = array<i32>} : memref<8x8x32xf32, #tpu.memory_space<vmem>>, vector<1x8x32xf32>,
    %c6_i32 = arith.constant 6 : i32
    %237 = arith.index_cast %c6_i32 : i32 to index
    %c0_108 = arith.constant 0 : index
    %c0_109 = arith.constant 0 : index
    %238 = vector.load %arg2[%237, %c0_108, %c0_109] : memref<8x8x128xf32, #tpu.memory_space<vmem>>, vector<1x8x128xf32>
    %239 = vector.shape_cast %238 : vector<1x8x128xf32> to vector<8x128xf32>
    %c0_110 = arith.constant 0 : index
    %c0_111 = arith.constant 0 : index
    %240 = vector.load %arg6[%c0_110, %c0_111] : memref<8x32xf32, #tpu.memory_space<vmem>>, vector<8x32xf32>
    %c0_112 = arith.constant 0 : index
    %c0_113 = arith.constant 0 : index
    %241 = vector.load %arg8[%c0_112, %c0_113] : memref<32x128xf32, #tpu.memory_space<vmem>>, vector<32x128xf32>
    %cst_114 = arith.constant dense<0.000000e+00> : vector<8x128xf32>
    %242 = tpu.matmul %240, %241, %cst_114 {dimension_numbers = #tpu.dot_dimension_numbers<[1], [0], [0], [1], [0, 0, 1, 1], [], []>} : vector<8x32xf32>, vector<32x128xf32>, vector<8x128xf32> -> vector<8x128xf32>
    %243 = arith.addf %239, %242 : vector<8x128xf32>
    %244 = vector.extract_strided_slice %243 {offsets = [0, 0], sizes = [8, 32], strides = [1, 1]} : vector<8x128xf32> to vector<8x32xf32>
    %245 = arith.negf %244 : vector<8x32xf32>
    %246 = math.exp %245 : vector<8x32xf32>
    %cst_115 = arith.constant 1.000000e+00 : f32
    %247 = vector.broadcast %cst_115 : f32 to vector<8x32xf32>
    %248 = arith.addf %247, %246 : vector<8x32xf32>
    %249 = arith.divf %247, %248 : vector<8x32xf32>
    %250 = vector.extract_strided_slice %243 {offsets = [0, 32], sizes = [8, 32], strides = [1, 1]} : vector<8x128xf32> to vector<8x32xf32>
    %251 = arith.negf %250 : vector<8x32xf32>
    %252 = math.exp %251 : vector<8x32xf32>
    %cst_116 = arith.constant 1.000000e+00 : f32
    %253 = vector.broadcast %cst_116 : f32 to vector<8x32xf32>
    %254 = arith.addf %253, %252 : vector<8x32xf32>
    %255 = arith.divf %253, %254 : vector<8x32xf32>
    %256 = vector.extract_strided_slice %243 {offsets = [0, 64], sizes = [8, 32], strides = [1, 1]} : vector<8x128xf32> to vector<8x32xf32>
    %257 = math.tanh %256 : vector<8x32xf32>
    %258 = vector.extract_strided_slice %243 {offsets = [0, 96], sizes = [8, 32], strides = [1, 1]} : vector<8x128xf32> to vector<8x32xf32>
    %259 = arith.negf %258 : vector<8x32xf32>
    %260 = math.exp %259 : vector<8x32xf32>
    %cst_117 = arith.constant 1.000000e+00 : f32
    %261 = vector.broadcast %cst_117 : f32 to vector<8x32xf32>
    %262 = arith.addf %261, %260 : vector<8x32xf32>
    %263 = arith.divf %261, %262 : vector<8x32xf32>
    %c0_118 = arith.constant 0 : index
    %c0_119 = arith.constant 0 : index
    %264 = vector.load %arg7[%c0_118, %c0_119] : memref<8x32xf32, #tpu.memory_space<vmem>>, vector<8x32xf32>
    %265 = arith.mulf %255, %264 : vector<8x32xf32>
    %266 = arith.mulf %249, %257 : vector<8x32xf32>
    %267 = arith.addf %265, %266 : vector<8x32xf32>
    %268 = math.tanh %267 : vector<8x32xf32>
    %269 = arith.mulf %263, %268 : vector<8x32xf32>
    %c0_120 = arith.constant 0 : index
    %c0_121 = arith.constant 0 : index
    %270 = vector.load %arg7[%c0_120, %c0_121] : memref<8x32xf32, #tpu.memory_space<vmem>>, vector<8x32xf32>
    tpu.vector_store %arg7[%c0_120, %c0_121], %267 {strides = array<i32>} : memref<8x32xf32, #tpu.memory_space<vmem>>, vector<8x32xf32>,
    %c0_122 = arith.constant 0 : index
    %c0_123 = arith.constant 0 : index
    %271 = vector.load %arg6[%c0_122, %c0_123] : memref<8x32xf32, #tpu.memory_space<vmem>>, vector<8x32xf32>
    tpu.vector_store %arg6[%c0_122, %c0_123], %269 {strides = array<i32>} : memref<8x32xf32, #tpu.memory_space<vmem>>, vector<8x32xf32>,
    %272 = arith.index_cast %c6_i32 : i32 to index
    %c0_124 = arith.constant 0 : index
    %c0_125 = arith.constant 0 : index
    %273 = vector.load %arg4[%272, %c0_124, %c0_125] : memref<8x8x32xf32, #tpu.memory_space<vmem>>, vector<1x8x32xf32>
    %274 = vector.shape_cast %273 : vector<1x8x32xf32> to vector<8x32xf32>
    %275 = vector.shape_cast %269 : vector<8x32xf32> to vector<1x8x32xf32>
    tpu.vector_store %arg4[%272, %c0_124, %c0_125], %275 {strides = array<i32>} : memref<8x8x32xf32, #tpu.memory_space<vmem>>, vector<1x8x32xf32>,
    %c7_i32 = arith.constant 7 : i32
    %276 = arith.index_cast %c7_i32 : i32 to index
    %c0_126 = arith.constant 0 : index
    %c0_127 = arith.constant 0 : index
    %277 = vector.load %arg2[%276, %c0_126, %c0_127] : memref<8x8x128xf32, #tpu.memory_space<vmem>>, vector<1x8x128xf32>
    %278 = vector.shape_cast %277 : vector<1x8x128xf32> to vector<8x128xf32>
    %c0_128 = arith.constant 0 : index
    %c0_129 = arith.constant 0 : index
    %279 = vector.load %arg6[%c0_128, %c0_129] : memref<8x32xf32, #tpu.memory_space<vmem>>, vector<8x32xf32>
    %c0_130 = arith.constant 0 : index
    %c0_131 = arith.constant 0 : index
    %280 = vector.load %arg8[%c0_130, %c0_131] : memref<32x128xf32, #tpu.memory_space<vmem>>, vector<32x128xf32>
    %cst_132 = arith.constant dense<0.000000e+00> : vector<8x128xf32>
    %281 = tpu.matmul %279, %280, %cst_132 {dimension_numbers = #tpu.dot_dimension_numbers<[1], [0], [0], [1], [0, 0, 1, 1], [], []>} : vector<8x32xf32>, vector<32x128xf32>, vector<8x128xf32> -> vector<8x128xf32>
    %282 = arith.addf %278, %281 : vector<8x128xf32>
    %283 = vector.extract_strided_slice %282 {offsets = [0, 0], sizes = [8, 32], strides = [1, 1]} : vector<8x128xf32> to vector<8x32xf32>
    %284 = arith.negf %283 : vector<8x32xf32>
    %285 = math.exp %284 : vector<8x32xf32>
    %cst_133 = arith.constant 1.000000e+00 : f32
    %286 = vector.broadcast %cst_133 : f32 to vector<8x32xf32>
    %287 = arith.addf %286, %285 : vector<8x32xf32>
    %288 = arith.divf %286, %287 : vector<8x32xf32>
    %289 = vector.extract_strided_slice %282 {offsets = [0, 32], sizes = [8, 32], strides = [1, 1]} : vector<8x128xf32> to vector<8x32xf32>
    %290 = arith.negf %289 : vector<8x32xf32>
    %291 = math.exp %290 : vector<8x32xf32>
    %cst_134 = arith.constant 1.000000e+00 : f32
    %292 = vector.broadcast %cst_134 : f32 to vector<8x32xf32>
    %293 = arith.addf %292, %291 : vector<8x32xf32>
    %294 = arith.divf %292, %293 : vector<8x32xf32>
    %295 = vector.extract_strided_slice %282 {offsets = [0, 64], sizes = [8, 32], strides = [1, 1]} : vector<8x128xf32> to vector<8x32xf32>
    %296 = math.tanh %295 : vector<8x32xf32>
    %297 = vector.extract_strided_slice %282 {offsets = [0, 96], sizes = [8, 32], strides = [1, 1]} : vector<8x128xf32> to vector<8x32xf32>
    %298 = arith.negf %297 : vector<8x32xf32>
    %299 = math.exp %298 : vector<8x32xf32>
    %cst_135 = arith.constant 1.000000e+00 : f32
    %300 = vector.broadcast %cst_135 : f32 to vector<8x32xf32>
    %301 = arith.addf %300, %299 : vector<8x32xf32>
    %302 = arith.divf %300, %301 : vector<8x32xf32>
    %c0_136 = arith.constant 0 : index
    %c0_137 = arith.constant 0 : index
    %303 = vector.load %arg7[%c0_136, %c0_137] : memref<8x32xf32, #tpu.memory_space<vmem>>, vector<8x32xf32>
    %304 = arith.mulf %294, %303 : vector<8x32xf32>
    %305 = arith.mulf %288, %296 : vector<8x32xf32>
    %306 = arith.addf %304, %305 : vector<8x32xf32>
    %307 = math.tanh %306 : vector<8x32xf32>
    %308 = arith.mulf %302, %307 : vector<8x32xf32>
    %c0_138 = arith.constant 0 : index
    %c0_139 = arith.constant 0 : index
    %309 = vector.load %arg7[%c0_138, %c0_139] : memref<8x32xf32, #tpu.memory_space<vmem>>, vector<8x32xf32>
    tpu.vector_store %arg7[%c0_138, %c0_139], %306 {strides = array<i32>} : memref<8x32xf32, #tpu.memory_space<vmem>>, vector<8x32xf32>,
    %c0_140 = arith.constant 0 : index
    %c0_141 = arith.constant 0 : index
    %310 = vector.load %arg6[%c0_140, %c0_141] : memref<8x32xf32, #tpu.memory_space<vmem>>, vector<8x32xf32>
    tpu.vector_store %arg6[%c0_140, %c0_141], %308 {strides = array<i32>} : memref<8x32xf32, #tpu.memory_space<vmem>>, vector<8x32xf32>,
    %311 = arith.index_cast %c7_i32 : i32 to index
    %c0_142 = arith.constant 0 : index
    %c0_143 = arith.constant 0 : index
    %312 = vector.load %arg4[%311, %c0_142, %c0_143] : memref<8x8x32xf32, #tpu.memory_space<vmem>>, vector<1x8x32xf32>
    %313 = vector.shape_cast %312 : vector<1x8x32xf32> to vector<8x32xf32>
    %314 = vector.shape_cast %308 : vector<8x32xf32> to vector<1x8x32xf32>
    tpu.vector_store %arg4[%311, %c0_142, %c0_143], %314 {strides = array<i32>} : memref<8x8x32xf32, #tpu.memory_space<vmem>>, vector<1x8x32xf32>,
    %c8_i32 = arith.constant 8 : i32
    %c0_i32_144 = arith.constant 0 : i32
    %315 = arith.cmpi eq, %arg1, %c0_i32_144 : i32
    %316 = arith.extui %315 : i1 to i32
    %c0_i32_145 = arith.constant 0 : i32
    %317 = arith.cmpi ne, %316, %c0_i32_145 : i32
    scf.if %317 {
      %c0_146 = arith.constant 0 : index
      %c0_147 = arith.constant 0 : index
      %318 = vector.load %arg6[%c0_146, %c0_147] : memref<8x32xf32, #tpu.memory_space<vmem>>, vector<8x32xf32>
      %c0_148 = arith.constant 0 : index
      %c0_149 = arith.constant 0 : index
      %319 = vector.load %arg5[%c0_148, %c0_149] : memref<8x32xf32, #tpu.memory_space<vmem>>, vector<8x32xf32>
      tpu.vector_store %arg5[%c0_148, %c0_149], %318 {strides = array<i32>} : memref<8x32xf32, #tpu.memory_space<vmem>>, vector<8x32xf32>,
    } else {
    }
    return
  }
  func.func @transform_0(%arg0: i32, %arg1: i32) -> (i32, i32, i32) {
    %c0_i32 = arith.constant 0 : i32
    %c0_i32_0 = arith.constant 0 : i32
    return %arg1, %arg0, %c0_i32 : i32, i32, i32
  }
  func.func @transform_2(%arg0: i32, %arg1: i32) -> (i32, i32, i32) {
    %c0_i32 = arith.constant 0 : i32
    %c0_i32_0 = arith.constant 0 : i32
    return %arg1, %arg0, %c0_i32 : i32, i32, i32
  }
  func.func @transform_3(%arg0: i32, %arg1: i32) -> (i32, i32) {
    %c0_i32 = arith.constant 0 : i32
    %c0_i32_0 = arith.constant 0 : i32
    return %arg0, %c0_i32 : i32, i32
  }
}

module attributes {stable_mosaic.version = 11 : i64} {
  func.func @_input_proj_kernel(%arg0: i32, %arg1: memref<64x32xf32, #tpu.memory_space<vmem>>, %arg2: memref<32x128xf32, #tpu.memory_space<vmem>>, %arg3: memref<1x128xf32, #tpu.memory_space<vmem>>, %arg4: memref<64x128xf32, #tpu.memory_space<vmem>>) attributes {dimension_semantics = [#tpu.dimension_semantics<parallel>], iteration_bounds = array<i64: 1>, scalar_prefetch = 0 : i64, scratch_operands = 0 : i64, tpu.core_type = #tpu.core_type<tc>, window_params = [{transform_indices = @transform_0, window_bounds = array<i64: 64, 32>}, {pipeline_mode = #tpu.pipeline_mode<synchronous>, transform_indices = @transform_1, window_bounds = array<i64: 32, 128>}, {pipeline_mode = #tpu.pipeline_mode<synchronous>, transform_indices = @transform_2, window_bounds = array<i64: 1, 128>}, {transform_indices = @transform_3, window_bounds = array<i64: 64, 128>}]} {
    %c0 = arith.constant 0 : index
    %c0_0 = arith.constant 0 : index
    %0 = vector.load %arg1[%c0, %c0_0] : memref<64x32xf32, #tpu.memory_space<vmem>>, vector<64x32xf32>
    %c0_1 = arith.constant 0 : index
    %c0_2 = arith.constant 0 : index
    %1 = vector.load %arg2[%c0_1, %c0_2] : memref<32x128xf32, #tpu.memory_space<vmem>>, vector<32x128xf32>
    %cst = arith.constant dense<0.000000e+00> : vector<64x128xf32>
    %2 = tpu.matmul %0, %1, %cst {dimension_numbers = #tpu.dot_dimension_numbers<[1], [0], [0], [1], [0, 0, 1, 1], [], []>} : vector<64x32xf32>, vector<32x128xf32>, vector<64x128xf32> -> vector<64x128xf32>
    %c0_3 = arith.constant 0 : index
    %c0_4 = arith.constant 0 : index
    %3 = vector.load %arg3[%c0_3, %c0_4] : memref<1x128xf32, #tpu.memory_space<vmem>>, vector<1x128xf32>
    %4 = vector.broadcast %3 : vector<1x128xf32> to vector<64x128xf32>
    %5 = arith.addf %2, %4 : vector<64x128xf32>
    %c0_5 = arith.constant 0 : index
    %c0_6 = arith.constant 0 : index
    %6 = vector.load %arg4[%c0_5, %c0_6] : memref<64x128xf32, #tpu.memory_space<vmem>>, vector<64x128xf32>
    tpu.vector_store %arg4[%c0_5, %c0_6], %5 {strides = array<i32>} : memref<64x128xf32, #tpu.memory_space<vmem>>, vector<64x128xf32>,
    return
  }
  func.func @transform_0(%arg0: i32) -> (i32, i32) {
    %c0_i32 = arith.constant 0 : i32
    %c0_i32_0 = arith.constant 0 : i32
    return %arg0, %c0_i32 : i32, i32
  }
  func.func @transform_1(%arg0: i32) -> (i32, i32) {
    %c0_i32 = arith.constant 0 : i32
    %c0_i32_0 = arith.constant 0 : i32
    %c0_i32_1 = arith.constant 0 : i32
    return %c0_i32, %c0_i32_0 : i32, i32
  }
  func.func @transform_2(%arg0: i32) -> (i32, i32) {
    %c0_i32 = arith.constant 0 : i32
    %c0_i32_0 = arith.constant 0 : i32
    %c0_i32_1 = arith.constant 0 : i32
    return %c0_i32, %c0_i32_0 : i32, i32
  }
  func.func @transform_3(%arg0: i32) -> (i32, i32) {
    %c0_i32 = arith.constant 0 : i32
    %c0_i32_0 = arith.constant 0 : i32
    return %arg0, %c0_i32 : i32, i32
  }
}

module attributes {stable_mosaic.version = 11 : i64} {
  func.func @_lstm_recurrence_kernel(%arg0: i32, %arg1: i32, %arg2: memref<8x8x128xf32, #tpu.memory_space<vmem>>, %arg3: memref<32x128xf32, #tpu.memory_space<any>>, %arg4: memref<8x8x32xf32, #tpu.memory_space<vmem>>, %arg5: memref<8x32xf32, #tpu.memory_space<vmem>>, %arg6: memref<8x32xf32, #tpu.memory_space<vmem>>, %arg7: memref<8x32xf32, #tpu.memory_space<vmem>>, %arg8: memref<32x128xf32, #tpu.memory_space<vmem>>, %arg9: memref<!tpu.dma_semaphore, #tpu.memory_space<semaphore_mem>>) attributes {dimension_semantics = [#tpu.dimension_semantics<parallel>, #tpu.dimension_semantics<arbitrary>], iteration_bounds = array<i64: 1, 1>, scalar_prefetch = 0 : i64, scratch_operands = 4 : i64, tpu.core_type = #tpu.core_type<tc>, window_params = [{transform_indices = @transform_0, window_bounds = array<i64: 8, 8, 128>}, {}, {transform_indices = @transform_2, window_bounds = array<i64: 8, 8, 32>}, {transform_indices = @transform_3, window_bounds = array<i64: 8, 32>}]} {
    %c0_i32 = arith.constant 0 : i32
    %0 = arith.cmpi eq, %arg1, %c0_i32 : i32
    %1 = arith.extui %0 : i1 to i32
    %c0_i32_0 = arith.constant 0 : i32
    %2 = arith.cmpi ne, %1, %c0_i32_0 : i32
    scf.if %2 {
      tpu.enqueue_dma source(%arg3 : memref<32x128xf32, #tpu.memory_space<any>>) target(%arg8 : memref<32x128xf32, #tpu.memory_space<vmem>>) target_semaphore(%arg9 : memref<!tpu.dma_semaphore, #tpu.memory_space<semaphore_mem>>)
      tpu.wait_dma2 semaphore(%arg9 : memref<!tpu.dma_semaphore, #tpu.memory_space<semaphore_mem>>) src(%arg3 : memref<32x128xf32, #tpu.memory_space<any>>) dst(%arg8 : memref<32x128xf32, #tpu.memory_space<vmem>>)
      %cst_146 = arith.constant 0.000000e+00 : f32
      %318 = vector.broadcast %cst_146 : f32 to vector<8x32xf32>
      %c0_147 = arith.constant 0 : index
      %c0_148 = arith.constant 0 : index
      %319 = vector.load %arg6[%c0_147, %c0_148] : memref<8x32xf32, #tpu.memory_space<vmem>>, vector<8x32xf32>
      tpu.vector_store %arg6[%c0_147, %c0_148], %318 {strides = array<i32>} : memref<8x32xf32, #tpu.memory_space<vmem>>, vector<8x32xf32>,
      %cst_149 = arith.constant 0.000000e+00 : f32
      %320 = vector.broadcast %cst_149 : f32 to vector<8x32xf32>
      %c0_150 = arith.constant 0 : index
      %c0_151 = arith.constant 0 : index
      %321 = vector.load %arg7[%c0_150, %c0_151] : memref<8x32xf32, #tpu.memory_space<vmem>>, vector<8x32xf32>
      tpu.vector_store %arg7[%c0_150, %c0_151], %320 {strides = array<i32>} : memref<8x32xf32, #tpu.memory_space<vmem>>, vector<8x32xf32>,
    } else {
    }
    %c0_i32_1 = arith.constant 0 : i32
    %3 = arith.index_cast %c0_i32_1 : i32 to index
    %c0 = arith.constant 0 : index
    %c0_2 = arith.constant 0 : index
    %4 = vector.load %arg2[%3, %c0, %c0_2] : memref<8x8x128xf32, #tpu.memory_space<vmem>>, vector<1x8x128xf32>
    %5 = vector.shape_cast %4 : vector<1x8x128xf32> to vector<8x128xf32>
    %c0_3 = arith.constant 0 : index
    %c0_4 = arith.constant 0 : index
    %6 = vector.load %arg6[%c0_3, %c0_4] : memref<8x32xf32, #tpu.memory_space<vmem>>, vector<8x32xf32>
    %c0_5 = arith.constant 0 : index
    %c0_6 = arith.constant 0 : index
    %7 = vector.load %arg8[%c0_5, %c0_6] : memref<32x128xf32, #tpu.memory_space<vmem>>, vector<32x128xf32>
    %cst = arith.constant dense<0.000000e+00> : vector<8x128xf32>
    %8 = tpu.matmul %6, %7, %cst {dimension_numbers = #tpu.dot_dimension_numbers<[1], [0], [0], [1], [0, 0, 1, 1], [], []>} : vector<8x32xf32>, vector<32x128xf32>, vector<8x128xf32> -> vector<8x128xf32>
    %9 = arith.addf %5, %8 : vector<8x128xf32>
    %10 = vector.extract_strided_slice %9 {offsets = [0, 0], sizes = [8, 32], strides = [1, 1]} : vector<8x128xf32> to vector<8x32xf32>
    %11 = arith.negf %10 : vector<8x32xf32>
    %12 = math.exp %11 : vector<8x32xf32>
    %cst_7 = arith.constant 1.000000e+00 : f32
    %13 = vector.broadcast %cst_7 : f32 to vector<8x32xf32>
    %14 = arith.addf %13, %12 : vector<8x32xf32>
    %15 = arith.divf %13, %14 : vector<8x32xf32>
    %16 = vector.extract_strided_slice %9 {offsets = [0, 32], sizes = [8, 32], strides = [1, 1]} : vector<8x128xf32> to vector<8x32xf32>
    %17 = arith.negf %16 : vector<8x32xf32>
    %18 = math.exp %17 : vector<8x32xf32>
    %cst_8 = arith.constant 1.000000e+00 : f32
    %19 = vector.broadcast %cst_8 : f32 to vector<8x32xf32>
    %20 = arith.addf %19, %18 : vector<8x32xf32>
    %21 = arith.divf %19, %20 : vector<8x32xf32>
    %22 = vector.extract_strided_slice %9 {offsets = [0, 64], sizes = [8, 32], strides = [1, 1]} : vector<8x128xf32> to vector<8x32xf32>
    %23 = math.tanh %22 : vector<8x32xf32>
    %24 = vector.extract_strided_slice %9 {offsets = [0, 96], sizes = [8, 32], strides = [1, 1]} : vector<8x128xf32> to vector<8x32xf32>
    %25 = arith.negf %24 : vector<8x32xf32>
    %26 = math.exp %25 : vector<8x32xf32>
    %cst_9 = arith.constant 1.000000e+00 : f32
    %27 = vector.broadcast %cst_9 : f32 to vector<8x32xf32>
    %28 = arith.addf %27, %26 : vector<8x32xf32>
    %29 = arith.divf %27, %28 : vector<8x32xf32>
    %c0_10 = arith.constant 0 : index
    %c0_11 = arith.constant 0 : index
    %30 = vector.load %arg7[%c0_10, %c0_11] : memref<8x32xf32, #tpu.memory_space<vmem>>, vector<8x32xf32>
    %31 = arith.mulf %21, %30 : vector<8x32xf32>
    %32 = arith.mulf %15, %23 : vector<8x32xf32>
    %33 = arith.addf %31, %32 : vector<8x32xf32>
    %34 = math.tanh %33 : vector<8x32xf32>
    %35 = arith.mulf %29, %34 : vector<8x32xf32>
    %c0_12 = arith.constant 0 : index
    %c0_13 = arith.constant 0 : index
    %36 = vector.load %arg7[%c0_12, %c0_13] : memref<8x32xf32, #tpu.memory_space<vmem>>, vector<8x32xf32>
    tpu.vector_store %arg7[%c0_12, %c0_13], %33 {strides = array<i32>} : memref<8x32xf32, #tpu.memory_space<vmem>>, vector<8x32xf32>,
    %c0_14 = arith.constant 0 : index
    %c0_15 = arith.constant 0 : index
    %37 = vector.load %arg6[%c0_14, %c0_15] : memref<8x32xf32, #tpu.memory_space<vmem>>, vector<8x32xf32>
    tpu.vector_store %arg6[%c0_14, %c0_15], %35 {strides = array<i32>} : memref<8x32xf32, #tpu.memory_space<vmem>>, vector<8x32xf32>,
    %38 = arith.index_cast %c0_i32_1 : i32 to index
    %c0_16 = arith.constant 0 : index
    %c0_17 = arith.constant 0 : index
    %39 = vector.load %arg4[%38, %c0_16, %c0_17] : memref<8x8x32xf32, #tpu.memory_space<vmem>>, vector<1x8x32xf32>
    %40 = vector.shape_cast %39 : vector<1x8x32xf32> to vector<8x32xf32>
    %41 = vector.shape_cast %35 : vector<8x32xf32> to vector<1x8x32xf32>
    tpu.vector_store %arg4[%38, %c0_16, %c0_17], %41 {strides = array<i32>} : memref<8x8x32xf32, #tpu.memory_space<vmem>>, vector<1x8x32xf32>,
    %c1_i32 = arith.constant 1 : i32
    %42 = arith.index_cast %c1_i32 : i32 to index
    %c0_18 = arith.constant 0 : index
    %c0_19 = arith.constant 0 : index
    %43 = vector.load %arg2[%42, %c0_18, %c0_19] : memref<8x8x128xf32, #tpu.memory_space<vmem>>, vector<1x8x128xf32>
    %44 = vector.shape_cast %43 : vector<1x8x128xf32> to vector<8x128xf32>
    %c0_20 = arith.constant 0 : index
    %c0_21 = arith.constant 0 : index
    %45 = vector.load %arg6[%c0_20, %c0_21] : memref<8x32xf32, #tpu.memory_space<vmem>>, vector<8x32xf32>
    %c0_22 = arith.constant 0 : index
    %c0_23 = arith.constant 0 : index
    %46 = vector.load %arg8[%c0_22, %c0_23] : memref<32x128xf32, #tpu.memory_space<vmem>>, vector<32x128xf32>
    %cst_24 = arith.constant dense<0.000000e+00> : vector<8x128xf32>
    %47 = tpu.matmul %45, %46, %cst_24 {dimension_numbers = #tpu.dot_dimension_numbers<[1], [0], [0], [1], [0, 0, 1, 1], [], []>} : vector<8x32xf32>, vector<32x128xf32>, vector<8x128xf32> -> vector<8x128xf32>
    %48 = arith.addf %44, %47 : vector<8x128xf32>
    %49 = vector.extract_strided_slice %48 {offsets = [0, 0], sizes = [8, 32], strides = [1, 1]} : vector<8x128xf32> to vector<8x32xf32>
    %50 = arith.negf %49 : vector<8x32xf32>
    %51 = math.exp %50 : vector<8x32xf32>
    %cst_25 = arith.constant 1.000000e+00 : f32
    %52 = vector.broadcast %cst_25 : f32 to vector<8x32xf32>
    %53 = arith.addf %52, %51 : vector<8x32xf32>
    %54 = arith.divf %52, %53 : vector<8x32xf32>
    %55 = vector.extract_strided_slice %48 {offsets = [0, 32], sizes = [8, 32], strides = [1, 1]} : vector<8x128xf32> to vector<8x32xf32>
    %56 = arith.negf %55 : vector<8x32xf32>
    %57 = math.exp %56 : vector<8x32xf32>
    %cst_26 = arith.constant 1.000000e+00 : f32
    %58 = vector.broadcast %cst_26 : f32 to vector<8x32xf32>
    %59 = arith.addf %58, %57 : vector<8x32xf32>
    %60 = arith.divf %58, %59 : vector<8x32xf32>
    %61 = vector.extract_strided_slice %48 {offsets = [0, 64], sizes = [8, 32], strides = [1, 1]} : vector<8x128xf32> to vector<8x32xf32>
    %62 = math.tanh %61 : vector<8x32xf32>
    %63 = vector.extract_strided_slice %48 {offsets = [0, 96], sizes = [8, 32], strides = [1, 1]} : vector<8x128xf32> to vector<8x32xf32>
    %64 = arith.negf %63 : vector<8x32xf32>
    %65 = math.exp %64 : vector<8x32xf32>
    %cst_27 = arith.constant 1.000000e+00 : f32
    %66 = vector.broadcast %cst_27 : f32 to vector<8x32xf32>
    %67 = arith.addf %66, %65 : vector<8x32xf32>
    %68 = arith.divf %66, %67 : vector<8x32xf32>
    %c0_28 = arith.constant 0 : index
    %c0_29 = arith.constant 0 : index
    %69 = vector.load %arg7[%c0_28, %c0_29] : memref<8x32xf32, #tpu.memory_space<vmem>>, vector<8x32xf32>
    %70 = arith.mulf %60, %69 : vector<8x32xf32>
    %71 = arith.mulf %54, %62 : vector<8x32xf32>
    %72 = arith.addf %70, %71 : vector<8x32xf32>
    %73 = math.tanh %72 : vector<8x32xf32>
    %74 = arith.mulf %68, %73 : vector<8x32xf32>
    %c0_30 = arith.constant 0 : index
    %c0_31 = arith.constant 0 : index
    %75 = vector.load %arg7[%c0_30, %c0_31] : memref<8x32xf32, #tpu.memory_space<vmem>>, vector<8x32xf32>
    tpu.vector_store %arg7[%c0_30, %c0_31], %72 {strides = array<i32>} : memref<8x32xf32, #tpu.memory_space<vmem>>, vector<8x32xf32>,
    %c0_32 = arith.constant 0 : index
    %c0_33 = arith.constant 0 : index
    %76 = vector.load %arg6[%c0_32, %c0_33] : memref<8x32xf32, #tpu.memory_space<vmem>>, vector<8x32xf32>
    tpu.vector_store %arg6[%c0_32, %c0_33], %74 {strides = array<i32>} : memref<8x32xf32, #tpu.memory_space<vmem>>, vector<8x32xf32>,
    %77 = arith.index_cast %c1_i32 : i32 to index
    %c0_34 = arith.constant 0 : index
    %c0_35 = arith.constant 0 : index
    %78 = vector.load %arg4[%77, %c0_34, %c0_35] : memref<8x8x32xf32, #tpu.memory_space<vmem>>, vector<1x8x32xf32>
    %79 = vector.shape_cast %78 : vector<1x8x32xf32> to vector<8x32xf32>
    %80 = vector.shape_cast %74 : vector<8x32xf32> to vector<1x8x32xf32>
    tpu.vector_store %arg4[%77, %c0_34, %c0_35], %80 {strides = array<i32>} : memref<8x8x32xf32, #tpu.memory_space<vmem>>, vector<1x8x32xf32>,
    %c2_i32 = arith.constant 2 : i32
    %81 = arith.index_cast %c2_i32 : i32 to index
    %c0_36 = arith.constant 0 : index
    %c0_37 = arith.constant 0 : index
    %82 = vector.load %arg2[%81, %c0_36, %c0_37] : memref<8x8x128xf32, #tpu.memory_space<vmem>>, vector<1x8x128xf32>
    %83 = vector.shape_cast %82 : vector<1x8x128xf32> to vector<8x128xf32>
    %c0_38 = arith.constant 0 : index
    %c0_39 = arith.constant 0 : index
    %84 = vector.load %arg6[%c0_38, %c0_39] : memref<8x32xf32, #tpu.memory_space<vmem>>, vector<8x32xf32>
    %c0_40 = arith.constant 0 : index
    %c0_41 = arith.constant 0 : index
    %85 = vector.load %arg8[%c0_40, %c0_41] : memref<32x128xf32, #tpu.memory_space<vmem>>, vector<32x128xf32>
    %cst_42 = arith.constant dense<0.000000e+00> : vector<8x128xf32>
    %86 = tpu.matmul %84, %85, %cst_42 {dimension_numbers = #tpu.dot_dimension_numbers<[1], [0], [0], [1], [0, 0, 1, 1], [], []>} : vector<8x32xf32>, vector<32x128xf32>, vector<8x128xf32> -> vector<8x128xf32>
    %87 = arith.addf %83, %86 : vector<8x128xf32>
    %88 = vector.extract_strided_slice %87 {offsets = [0, 0], sizes = [8, 32], strides = [1, 1]} : vector<8x128xf32> to vector<8x32xf32>
    %89 = arith.negf %88 : vector<8x32xf32>
    %90 = math.exp %89 : vector<8x32xf32>
    %cst_43 = arith.constant 1.000000e+00 : f32
    %91 = vector.broadcast %cst_43 : f32 to vector<8x32xf32>
    %92 = arith.addf %91, %90 : vector<8x32xf32>
    %93 = arith.divf %91, %92 : vector<8x32xf32>
    %94 = vector.extract_strided_slice %87 {offsets = [0, 32], sizes = [8, 32], strides = [1, 1]} : vector<8x128xf32> to vector<8x32xf32>
    %95 = arith.negf %94 : vector<8x32xf32>
    %96 = math.exp %95 : vector<8x32xf32>
    %cst_44 = arith.constant 1.000000e+00 : f32
    %97 = vector.broadcast %cst_44 : f32 to vector<8x32xf32>
    %98 = arith.addf %97, %96 : vector<8x32xf32>
    %99 = arith.divf %97, %98 : vector<8x32xf32>
    %100 = vector.extract_strided_slice %87 {offsets = [0, 64], sizes = [8, 32], strides = [1, 1]} : vector<8x128xf32> to vector<8x32xf32>
    %101 = math.tanh %100 : vector<8x32xf32>
    %102 = vector.extract_strided_slice %87 {offsets = [0, 96], sizes = [8, 32], strides = [1, 1]} : vector<8x128xf32> to vector<8x32xf32>
    %103 = arith.negf %102 : vector<8x32xf32>
    %104 = math.exp %103 : vector<8x32xf32>
    %cst_45 = arith.constant 1.000000e+00 : f32
    %105 = vector.broadcast %cst_45 : f32 to vector<8x32xf32>
    %106 = arith.addf %105, %104 : vector<8x32xf32>
    %107 = arith.divf %105, %106 : vector<8x32xf32>
    %c0_46 = arith.constant 0 : index
    %c0_47 = arith.constant 0 : index
    %108 = vector.load %arg7[%c0_46, %c0_47] : memref<8x32xf32, #tpu.memory_space<vmem>>, vector<8x32xf32>
    %109 = arith.mulf %99, %108 : vector<8x32xf32>
    %110 = arith.mulf %93, %101 : vector<8x32xf32>
    %111 = arith.addf %109, %110 : vector<8x32xf32>
    %112 = math.tanh %111 : vector<8x32xf32>
    %113 = arith.mulf %107, %112 : vector<8x32xf32>
    %c0_48 = arith.constant 0 : index
    %c0_49 = arith.constant 0 : index
    %114 = vector.load %arg7[%c0_48, %c0_49] : memref<8x32xf32, #tpu.memory_space<vmem>>, vector<8x32xf32>
    tpu.vector_store %arg7[%c0_48, %c0_49], %111 {strides = array<i32>} : memref<8x32xf32, #tpu.memory_space<vmem>>, vector<8x32xf32>,
    %c0_50 = arith.constant 0 : index
    %c0_51 = arith.constant 0 : index
    %115 = vector.load %arg6[%c0_50, %c0_51] : memref<8x32xf32, #tpu.memory_space<vmem>>, vector<8x32xf32>
    tpu.vector_store %arg6[%c0_50, %c0_51], %113 {strides = array<i32>} : memref<8x32xf32, #tpu.memory_space<vmem>>, vector<8x32xf32>,
    %116 = arith.index_cast %c2_i32 : i32 to index
    %c0_52 = arith.constant 0 : index
    %c0_53 = arith.constant 0 : index
    %117 = vector.load %arg4[%116, %c0_52, %c0_53] : memref<8x8x32xf32, #tpu.memory_space<vmem>>, vector<1x8x32xf32>
    %118 = vector.shape_cast %117 : vector<1x8x32xf32> to vector<8x32xf32>
    %119 = vector.shape_cast %113 : vector<8x32xf32> to vector<1x8x32xf32>
    tpu.vector_store %arg4[%116, %c0_52, %c0_53], %119 {strides = array<i32>} : memref<8x8x32xf32, #tpu.memory_space<vmem>>, vector<1x8x32xf32>,
    %c3_i32 = arith.constant 3 : i32
    %120 = arith.index_cast %c3_i32 : i32 to index
    %c0_54 = arith.constant 0 : index
    %c0_55 = arith.constant 0 : index
    %121 = vector.load %arg2[%120, %c0_54, %c0_55] : memref<8x8x128xf32, #tpu.memory_space<vmem>>, vector<1x8x128xf32>
    %122 = vector.shape_cast %121 : vector<1x8x128xf32> to vector<8x128xf32>
    %c0_56 = arith.constant 0 : index
    %c0_57 = arith.constant 0 : index
    %123 = vector.load %arg6[%c0_56, %c0_57] : memref<8x32xf32, #tpu.memory_space<vmem>>, vector<8x32xf32>
    %c0_58 = arith.constant 0 : index
    %c0_59 = arith.constant 0 : index
    %124 = vector.load %arg8[%c0_58, %c0_59] : memref<32x128xf32, #tpu.memory_space<vmem>>, vector<32x128xf32>
    %cst_60 = arith.constant dense<0.000000e+00> : vector<8x128xf32>
    %125 = tpu.matmul %123, %124, %cst_60 {dimension_numbers = #tpu.dot_dimension_numbers<[1], [0], [0], [1], [0, 0, 1, 1], [], []>} : vector<8x32xf32>, vector<32x128xf32>, vector<8x128xf32> -> vector<8x128xf32>
    %126 = arith.addf %122, %125 : vector<8x128xf32>
    %127 = vector.extract_strided_slice %126 {offsets = [0, 0], sizes = [8, 32], strides = [1, 1]} : vector<8x128xf32> to vector<8x32xf32>
    %128 = arith.negf %127 : vector<8x32xf32>
    %129 = math.exp %128 : vector<8x32xf32>
    %cst_61 = arith.constant 1.000000e+00 : f32
    %130 = vector.broadcast %cst_61 : f32 to vector<8x32xf32>
    %131 = arith.addf %130, %129 : vector<8x32xf32>
    %132 = arith.divf %130, %131 : vector<8x32xf32>
    %133 = vector.extract_strided_slice %126 {offsets = [0, 32], sizes = [8, 32], strides = [1, 1]} : vector<8x128xf32> to vector<8x32xf32>
    %134 = arith.negf %133 : vector<8x32xf32>
    %135 = math.exp %134 : vector<8x32xf32>
    %cst_62 = arith.constant 1.000000e+00 : f32
    %136 = vector.broadcast %cst_62 : f32 to vector<8x32xf32>
    %137 = arith.addf %136, %135 : vector<8x32xf32>
    %138 = arith.divf %136, %137 : vector<8x32xf32>
    %139 = vector.extract_strided_slice %126 {offsets = [0, 64], sizes = [8, 32], strides = [1, 1]} : vector<8x128xf32> to vector<8x32xf32>
    %140 = math.tanh %139 : vector<8x32xf32>
    %141 = vector.extract_strided_slice %126 {offsets = [0, 96], sizes = [8, 32], strides = [1, 1]} : vector<8x128xf32> to vector<8x32xf32>
    %142 = arith.negf %141 : vector<8x32xf32>
    %143 = math.exp %142 : vector<8x32xf32>
    %cst_63 = arith.constant 1.000000e+00 : f32
    %144 = vector.broadcast %cst_63 : f32 to vector<8x32xf32>
    %145 = arith.addf %144, %143 : vector<8x32xf32>
    %146 = arith.divf %144, %145 : vector<8x32xf32>
    %c0_64 = arith.constant 0 : index
    %c0_65 = arith.constant 0 : index
    %147 = vector.load %arg7[%c0_64, %c0_65] : memref<8x32xf32, #tpu.memory_space<vmem>>, vector<8x32xf32>
    %148 = arith.mulf %138, %147 : vector<8x32xf32>
    %149 = arith.mulf %132, %140 : vector<8x32xf32>
    %150 = arith.addf %148, %149 : vector<8x32xf32>
    %151 = math.tanh %150 : vector<8x32xf32>
    %152 = arith.mulf %146, %151 : vector<8x32xf32>
    %c0_66 = arith.constant 0 : index
    %c0_67 = arith.constant 0 : index
    %153 = vector.load %arg7[%c0_66, %c0_67] : memref<8x32xf32, #tpu.memory_space<vmem>>, vector<8x32xf32>
    tpu.vector_store %arg7[%c0_66, %c0_67], %150 {strides = array<i32>} : memref<8x32xf32, #tpu.memory_space<vmem>>, vector<8x32xf32>,
    %c0_68 = arith.constant 0 : index
    %c0_69 = arith.constant 0 : index
    %154 = vector.load %arg6[%c0_68, %c0_69] : memref<8x32xf32, #tpu.memory_space<vmem>>, vector<8x32xf32>
    tpu.vector_store %arg6[%c0_68, %c0_69], %152 {strides = array<i32>} : memref<8x32xf32, #tpu.memory_space<vmem>>, vector<8x32xf32>,
    %155 = arith.index_cast %c3_i32 : i32 to index
    %c0_70 = arith.constant 0 : index
    %c0_71 = arith.constant 0 : index
    %156 = vector.load %arg4[%155, %c0_70, %c0_71] : memref<8x8x32xf32, #tpu.memory_space<vmem>>, vector<1x8x32xf32>
    %157 = vector.shape_cast %156 : vector<1x8x32xf32> to vector<8x32xf32>
    %158 = vector.shape_cast %152 : vector<8x32xf32> to vector<1x8x32xf32>
    tpu.vector_store %arg4[%155, %c0_70, %c0_71], %158 {strides = array<i32>} : memref<8x8x32xf32, #tpu.memory_space<vmem>>, vector<1x8x32xf32>,
    %c4_i32 = arith.constant 4 : i32
    %159 = arith.index_cast %c4_i32 : i32 to index
    %c0_72 = arith.constant 0 : index
    %c0_73 = arith.constant 0 : index
    %160 = vector.load %arg2[%159, %c0_72, %c0_73] : memref<8x8x128xf32, #tpu.memory_space<vmem>>, vector<1x8x128xf32>
    %161 = vector.shape_cast %160 : vector<1x8x128xf32> to vector<8x128xf32>
    %c0_74 = arith.constant 0 : index
    %c0_75 = arith.constant 0 : index
    %162 = vector.load %arg6[%c0_74, %c0_75] : memref<8x32xf32, #tpu.memory_space<vmem>>, vector<8x32xf32>
    %c0_76 = arith.constant 0 : index
    %c0_77 = arith.constant 0 : index
    %163 = vector.load %arg8[%c0_76, %c0_77] : memref<32x128xf32, #tpu.memory_space<vmem>>, vector<32x128xf32>
    %cst_78 = arith.constant dense<0.000000e+00> : vector<8x128xf32>
    %164 = tpu.matmul %162, %163, %cst_78 {dimension_numbers = #tpu.dot_dimension_numbers<[1], [0], [0], [1], [0, 0, 1, 1], [], []>} : vector<8x32xf32>, vector<32x128xf32>, vector<8x128xf32> -> vector<8x128xf32>
    %165 = arith.addf %161, %164 : vector<8x128xf32>
    %166 = vector.extract_strided_slice %165 {offsets = [0, 0], sizes = [8, 32], strides = [1, 1]} : vector<8x128xf32> to vector<8x32xf32>
    %167 = arith.negf %166 : vector<8x32xf32>
    %168 = math.exp %167 : vector<8x32xf32>
    %cst_79 = arith.constant 1.000000e+00 : f32
    %169 = vector.broadcast %cst_79 : f32 to vector<8x32xf32>
    %170 = arith.addf %169, %168 : vector<8x32xf32>
    %171 = arith.divf %169, %170 : vector<8x32xf32>
    %172 = vector.extract_strided_slice %165 {offsets = [0, 32], sizes = [8, 32], strides = [1, 1]} : vector<8x128xf32> to vector<8x32xf32>
    %173 = arith.negf %172 : vector<8x32xf32>
    %174 = math.exp %173 : vector<8x32xf32>
    %cst_80 = arith.constant 1.000000e+00 : f32
    %175 = vector.broadcast %cst_80 : f32 to vector<8x32xf32>
    %176 = arith.addf %175, %174 : vector<8x32xf32>
    %177 = arith.divf %175, %176 : vector<8x32xf32>
    %178 = vector.extract_strided_slice %165 {offsets = [0, 64], sizes = [8, 32], strides = [1, 1]} : vector<8x128xf32> to vector<8x32xf32>
    %179 = math.tanh %178 : vector<8x32xf32>
    %180 = vector.extract_strided_slice %165 {offsets = [0, 96], sizes = [8, 32], strides = [1, 1]} : vector<8x128xf32> to vector<8x32xf32>
    %181 = arith.negf %180 : vector<8x32xf32>
    %182 = math.exp %181 : vector<8x32xf32>
    %cst_81 = arith.constant 1.000000e+00 : f32
    %183 = vector.broadcast %cst_81 : f32 to vector<8x32xf32>
    %184 = arith.addf %183, %182 : vector<8x32xf32>
    %185 = arith.divf %183, %184 : vector<8x32xf32>
    %c0_82 = arith.constant 0 : index
    %c0_83 = arith.constant 0 : index
    %186 = vector.load %arg7[%c0_82, %c0_83] : memref<8x32xf32, #tpu.memory_space<vmem>>, vector<8x32xf32>
    %187 = arith.mulf %177, %186 : vector<8x32xf32>
    %188 = arith.mulf %171, %179 : vector<8x32xf32>
    %189 = arith.addf %187, %188 : vector<8x32xf32>
    %190 = math.tanh %189 : vector<8x32xf32>
    %191 = arith.mulf %185, %190 : vector<8x32xf32>
    %c0_84 = arith.constant 0 : index
    %c0_85 = arith.constant 0 : index
    %192 = vector.load %arg7[%c0_84, %c0_85] : memref<8x32xf32, #tpu.memory_space<vmem>>, vector<8x32xf32>
    tpu.vector_store %arg7[%c0_84, %c0_85], %189 {strides = array<i32>} : memref<8x32xf32, #tpu.memory_space<vmem>>, vector<8x32xf32>,
    %c0_86 = arith.constant 0 : index
    %c0_87 = arith.constant 0 : index
    %193 = vector.load %arg6[%c0_86, %c0_87] : memref<8x32xf32, #tpu.memory_space<vmem>>, vector<8x32xf32>
    tpu.vector_store %arg6[%c0_86, %c0_87], %191 {strides = array<i32>} : memref<8x32xf32, #tpu.memory_space<vmem>>, vector<8x32xf32>,
    %194 = arith.index_cast %c4_i32 : i32 to index
    %c0_88 = arith.constant 0 : index
    %c0_89 = arith.constant 0 : index
    %195 = vector.load %arg4[%194, %c0_88, %c0_89] : memref<8x8x32xf32, #tpu.memory_space<vmem>>, vector<1x8x32xf32>
    %196 = vector.shape_cast %195 : vector<1x8x32xf32> to vector<8x32xf32>
    %197 = vector.shape_cast %191 : vector<8x32xf32> to vector<1x8x32xf32>
    tpu.vector_store %arg4[%194, %c0_88, %c0_89], %197 {strides = array<i32>} : memref<8x8x32xf32, #tpu.memory_space<vmem>>, vector<1x8x32xf32>,
    %c5_i32 = arith.constant 5 : i32
    %198 = arith.index_cast %c5_i32 : i32 to index
    %c0_90 = arith.constant 0 : index
    %c0_91 = arith.constant 0 : index
    %199 = vector.load %arg2[%198, %c0_90, %c0_91] : memref<8x8x128xf32, #tpu.memory_space<vmem>>, vector<1x8x128xf32>
    %200 = vector.shape_cast %199 : vector<1x8x128xf32> to vector<8x128xf32>
    %c0_92 = arith.constant 0 : index
    %c0_93 = arith.constant 0 : index
    %201 = vector.load %arg6[%c0_92, %c0_93] : memref<8x32xf32, #tpu.memory_space<vmem>>, vector<8x32xf32>
    %c0_94 = arith.constant 0 : index
    %c0_95 = arith.constant 0 : index
    %202 = vector.load %arg8[%c0_94, %c0_95] : memref<32x128xf32, #tpu.memory_space<vmem>>, vector<32x128xf32>
    %cst_96 = arith.constant dense<0.000000e+00> : vector<8x128xf32>
    %203 = tpu.matmul %201, %202, %cst_96 {dimension_numbers = #tpu.dot_dimension_numbers<[1], [0], [0], [1], [0, 0, 1, 1], [], []>} : vector<8x32xf32>, vector<32x128xf32>, vector<8x128xf32> -> vector<8x128xf32>
    %204 = arith.addf %200, %203 : vector<8x128xf32>
    %205 = vector.extract_strided_slice %204 {offsets = [0, 0], sizes = [8, 32], strides = [1, 1]} : vector<8x128xf32> to vector<8x32xf32>
    %206 = arith.negf %205 : vector<8x32xf32>
    %207 = math.exp %206 : vector<8x32xf32>
    %cst_97 = arith.constant 1.000000e+00 : f32
    %208 = vector.broadcast %cst_97 : f32 to vector<8x32xf32>
    %209 = arith.addf %208, %207 : vector<8x32xf32>
    %210 = arith.divf %208, %209 : vector<8x32xf32>
    %211 = vector.extract_strided_slice %204 {offsets = [0, 32], sizes = [8, 32], strides = [1, 1]} : vector<8x128xf32> to vector<8x32xf32>
    %212 = arith.negf %211 : vector<8x32xf32>
    %213 = math.exp %212 : vector<8x32xf32>
    %cst_98 = arith.constant 1.000000e+00 : f32
    %214 = vector.broadcast %cst_98 : f32 to vector<8x32xf32>
    %215 = arith.addf %214, %213 : vector<8x32xf32>
    %216 = arith.divf %214, %215 : vector<8x32xf32>
    %217 = vector.extract_strided_slice %204 {offsets = [0, 64], sizes = [8, 32], strides = [1, 1]} : vector<8x128xf32> to vector<8x32xf32>
    %218 = math.tanh %217 : vector<8x32xf32>
    %219 = vector.extract_strided_slice %204 {offsets = [0, 96], sizes = [8, 32], strides = [1, 1]} : vector<8x128xf32> to vector<8x32xf32>
    %220 = arith.negf %219 : vector<8x32xf32>
    %221 = math.exp %220 : vector<8x32xf32>
    %cst_99 = arith.constant 1.000000e+00 : f32
    %222 = vector.broadcast %cst_99 : f32 to vector<8x32xf32>
    %223 = arith.addf %222, %221 : vector<8x32xf32>
    %224 = arith.divf %222, %223 : vector<8x32xf32>
    %c0_100 = arith.constant 0 : index
    %c0_101 = arith.constant 0 : index
    %225 = vector.load %arg7[%c0_100, %c0_101] : memref<8x32xf32, #tpu.memory_space<vmem>>, vector<8x32xf32>
    %226 = arith.mulf %216, %225 : vector<8x32xf32>
    %227 = arith.mulf %210, %218 : vector<8x32xf32>
    %228 = arith.addf %226, %227 : vector<8x32xf32>
    %229 = math.tanh %228 : vector<8x32xf32>
    %230 = arith.mulf %224, %229 : vector<8x32xf32>
    %c0_102 = arith.constant 0 : index
    %c0_103 = arith.constant 0 : index
    %231 = vector.load %arg7[%c0_102, %c0_103] : memref<8x32xf32, #tpu.memory_space<vmem>>, vector<8x32xf32>
    tpu.vector_store %arg7[%c0_102, %c0_103], %228 {strides = array<i32>} : memref<8x32xf32, #tpu.memory_space<vmem>>, vector<8x32xf32>,
    %c0_104 = arith.constant 0 : index
    %c0_105 = arith.constant 0 : index
    %232 = vector.load %arg6[%c0_104, %c0_105] : memref<8x32xf32, #tpu.memory_space<vmem>>, vector<8x32xf32>
    tpu.vector_store %arg6[%c0_104, %c0_105], %230 {strides = array<i32>} : memref<8x32xf32, #tpu.memory_space<vmem>>, vector<8x32xf32>,
    %233 = arith.index_cast %c5_i32 : i32 to index
    %c0_106 = arith.constant 0 : index
    %c0_107 = arith.constant 0 : index
    %234 = vector.load %arg4[%233, %c0_106, %c0_107] : memref<8x8x32xf32, #tpu.memory_space<vmem>>, vector<1x8x32xf32>
    %235 = vector.shape_cast %234 : vector<1x8x32xf32> to vector<8x32xf32>
    %236 = vector.shape_cast %230 : vector<8x32xf32> to vector<1x8x32xf32>
    tpu.vector_store %arg4[%233, %c0_106, %c0_107], %236 {strides = array<i32>} : memref<8x8x32xf32, #tpu.memory_space<vmem>>, vector<1x8x32xf32>,
    %c6_i32 = arith.constant 6 : i32
    %237 = arith.index_cast %c6_i32 : i32 to index
    %c0_108 = arith.constant 0 : index
    %c0_109 = arith.constant 0 : index
    %238 = vector.load %arg2[%237, %c0_108, %c0_109] : memref<8x8x128xf32, #tpu.memory_space<vmem>>, vector<1x8x128xf32>
    %239 = vector.shape_cast %238 : vector<1x8x128xf32> to vector<8x128xf32>
    %c0_110 = arith.constant 0 : index
    %c0_111 = arith.constant 0 : index
    %240 = vector.load %arg6[%c0_110, %c0_111] : memref<8x32xf32, #tpu.memory_space<vmem>>, vector<8x32xf32>
    %c0_112 = arith.constant 0 : index
    %c0_113 = arith.constant 0 : index
    %241 = vector.load %arg8[%c0_112, %c0_113] : memref<32x128xf32, #tpu.memory_space<vmem>>, vector<32x128xf32>
    %cst_114 = arith.constant dense<0.000000e+00> : vector<8x128xf32>
    %242 = tpu.matmul %240, %241, %cst_114 {dimension_numbers = #tpu.dot_dimension_numbers<[1], [0], [0], [1], [0, 0, 1, 1], [], []>} : vector<8x32xf32>, vector<32x128xf32>, vector<8x128xf32> -> vector<8x128xf32>
    %243 = arith.addf %239, %242 : vector<8x128xf32>
    %244 = vector.extract_strided_slice %243 {offsets = [0, 0], sizes = [8, 32], strides = [1, 1]} : vector<8x128xf32> to vector<8x32xf32>
    %245 = arith.negf %244 : vector<8x32xf32>
    %246 = math.exp %245 : vector<8x32xf32>
    %cst_115 = arith.constant 1.000000e+00 : f32
    %247 = vector.broadcast %cst_115 : f32 to vector<8x32xf32>
    %248 = arith.addf %247, %246 : vector<8x32xf32>
    %249 = arith.divf %247, %248 : vector<8x32xf32>
    %250 = vector.extract_strided_slice %243 {offsets = [0, 32], sizes = [8, 32], strides = [1, 1]} : vector<8x128xf32> to vector<8x32xf32>
    %251 = arith.negf %250 : vector<8x32xf32>
    %252 = math.exp %251 : vector<8x32xf32>
    %cst_116 = arith.constant 1.000000e+00 : f32
    %253 = vector.broadcast %cst_116 : f32 to vector<8x32xf32>
    %254 = arith.addf %253, %252 : vector<8x32xf32>
    %255 = arith.divf %253, %254 : vector<8x32xf32>
    %256 = vector.extract_strided_slice %243 {offsets = [0, 64], sizes = [8, 32], strides = [1, 1]} : vector<8x128xf32> to vector<8x32xf32>
    %257 = math.tanh %256 : vector<8x32xf32>
    %258 = vector.extract_strided_slice %243 {offsets = [0, 96], sizes = [8, 32], strides = [1, 1]} : vector<8x128xf32> to vector<8x32xf32>
    %259 = arith.negf %258 : vector<8x32xf32>
    %260 = math.exp %259 : vector<8x32xf32>
    %cst_117 = arith.constant 1.000000e+00 : f32
    %261 = vector.broadcast %cst_117 : f32 to vector<8x32xf32>
    %262 = arith.addf %261, %260 : vector<8x32xf32>
    %263 = arith.divf %261, %262 : vector<8x32xf32>
    %c0_118 = arith.constant 0 : index
    %c0_119 = arith.constant 0 : index
    %264 = vector.load %arg7[%c0_118, %c0_119] : memref<8x32xf32, #tpu.memory_space<vmem>>, vector<8x32xf32>
    %265 = arith.mulf %255, %264 : vector<8x32xf32>
    %266 = arith.mulf %249, %257 : vector<8x32xf32>
    %267 = arith.addf %265, %266 : vector<8x32xf32>
    %268 = math.tanh %267 : vector<8x32xf32>
    %269 = arith.mulf %263, %268 : vector<8x32xf32>
    %c0_120 = arith.constant 0 : index
    %c0_121 = arith.constant 0 : index
    %270 = vector.load %arg7[%c0_120, %c0_121] : memref<8x32xf32, #tpu.memory_space<vmem>>, vector<8x32xf32>
    tpu.vector_store %arg7[%c0_120, %c0_121], %267 {strides = array<i32>} : memref<8x32xf32, #tpu.memory_space<vmem>>, vector<8x32xf32>,
    %c0_122 = arith.constant 0 : index
    %c0_123 = arith.constant 0 : index
    %271 = vector.load %arg6[%c0_122, %c0_123] : memref<8x32xf32, #tpu.memory_space<vmem>>, vector<8x32xf32>
    tpu.vector_store %arg6[%c0_122, %c0_123], %269 {strides = array<i32>} : memref<8x32xf32, #tpu.memory_space<vmem>>, vector<8x32xf32>,
    %272 = arith.index_cast %c6_i32 : i32 to index
    %c0_124 = arith.constant 0 : index
    %c0_125 = arith.constant 0 : index
    %273 = vector.load %arg4[%272, %c0_124, %c0_125] : memref<8x8x32xf32, #tpu.memory_space<vmem>>, vector<1x8x32xf32>
    %274 = vector.shape_cast %273 : vector<1x8x32xf32> to vector<8x32xf32>
    %275 = vector.shape_cast %269 : vector<8x32xf32> to vector<1x8x32xf32>
    tpu.vector_store %arg4[%272, %c0_124, %c0_125], %275 {strides = array<i32>} : memref<8x8x32xf32, #tpu.memory_space<vmem>>, vector<1x8x32xf32>,
    %c7_i32 = arith.constant 7 : i32
    %276 = arith.index_cast %c7_i32 : i32 to index
    %c0_126 = arith.constant 0 : index
    %c0_127 = arith.constant 0 : index
    %277 = vector.load %arg2[%276, %c0_126, %c0_127] : memref<8x8x128xf32, #tpu.memory_space<vmem>>, vector<1x8x128xf32>
    %278 = vector.shape_cast %277 : vector<1x8x128xf32> to vector<8x128xf32>
    %c0_128 = arith.constant 0 : index
    %c0_129 = arith.constant 0 : index
    %279 = vector.load %arg6[%c0_128, %c0_129] : memref<8x32xf32, #tpu.memory_space<vmem>>, vector<8x32xf32>
    %c0_130 = arith.constant 0 : index
    %c0_131 = arith.constant 0 : index
    %280 = vector.load %arg8[%c0_130, %c0_131] : memref<32x128xf32, #tpu.memory_space<vmem>>, vector<32x128xf32>
    %cst_132 = arith.constant dense<0.000000e+00> : vector<8x128xf32>
    %281 = tpu.matmul %279, %280, %cst_132 {dimension_numbers = #tpu.dot_dimension_numbers<[1], [0], [0], [1], [0, 0, 1, 1], [], []>} : vector<8x32xf32>, vector<32x128xf32>, vector<8x128xf32> -> vector<8x128xf32>
    %282 = arith.addf %278, %281 : vector<8x128xf32>
    %283 = vector.extract_strided_slice %282 {offsets = [0, 0], sizes = [8, 32], strides = [1, 1]} : vector<8x128xf32> to vector<8x32xf32>
    %284 = arith.negf %283 : vector<8x32xf32>
    %285 = math.exp %284 : vector<8x32xf32>
    %cst_133 = arith.constant 1.000000e+00 : f32
    %286 = vector.broadcast %cst_133 : f32 to vector<8x32xf32>
    %287 = arith.addf %286, %285 : vector<8x32xf32>
    %288 = arith.divf %286, %287 : vector<8x32xf32>
    %289 = vector.extract_strided_slice %282 {offsets = [0, 32], sizes = [8, 32], strides = [1, 1]} : vector<8x128xf32> to vector<8x32xf32>
    %290 = arith.negf %289 : vector<8x32xf32>
    %291 = math.exp %290 : vector<8x32xf32>
    %cst_134 = arith.constant 1.000000e+00 : f32
    %292 = vector.broadcast %cst_134 : f32 to vector<8x32xf32>
    %293 = arith.addf %292, %291 : vector<8x32xf32>
    %294 = arith.divf %292, %293 : vector<8x32xf32>
    %295 = vector.extract_strided_slice %282 {offsets = [0, 64], sizes = [8, 32], strides = [1, 1]} : vector<8x128xf32> to vector<8x32xf32>
    %296 = math.tanh %295 : vector<8x32xf32>
    %297 = vector.extract_strided_slice %282 {offsets = [0, 96], sizes = [8, 32], strides = [1, 1]} : vector<8x128xf32> to vector<8x32xf32>
    %298 = arith.negf %297 : vector<8x32xf32>
    %299 = math.exp %298 : vector<8x32xf32>
    %cst_135 = arith.constant 1.000000e+00 : f32
    %300 = vector.broadcast %cst_135 : f32 to vector<8x32xf32>
    %301 = arith.addf %300, %299 : vector<8x32xf32>
    %302 = arith.divf %300, %301 : vector<8x32xf32>
    %c0_136 = arith.constant 0 : index
    %c0_137 = arith.constant 0 : index
    %303 = vector.load %arg7[%c0_136, %c0_137] : memref<8x32xf32, #tpu.memory_space<vmem>>, vector<8x32xf32>
    %304 = arith.mulf %294, %303 : vector<8x32xf32>
    %305 = arith.mulf %288, %296 : vector<8x32xf32>
    %306 = arith.addf %304, %305 : vector<8x32xf32>
    %307 = math.tanh %306 : vector<8x32xf32>
    %308 = arith.mulf %302, %307 : vector<8x32xf32>
    %c0_138 = arith.constant 0 : index
    %c0_139 = arith.constant 0 : index
    %309 = vector.load %arg7[%c0_138, %c0_139] : memref<8x32xf32, #tpu.memory_space<vmem>>, vector<8x32xf32>
    tpu.vector_store %arg7[%c0_138, %c0_139], %306 {strides = array<i32>} : memref<8x32xf32, #tpu.memory_space<vmem>>, vector<8x32xf32>,
    %c0_140 = arith.constant 0 : index
    %c0_141 = arith.constant 0 : index
    %310 = vector.load %arg6[%c0_140, %c0_141] : memref<8x32xf32, #tpu.memory_space<vmem>>, vector<8x32xf32>
    tpu.vector_store %arg6[%c0_140, %c0_141], %308 {strides = array<i32>} : memref<8x32xf32, #tpu.memory_space<vmem>>, vector<8x32xf32>,
    %311 = arith.index_cast %c7_i32 : i32 to index
    %c0_142 = arith.constant 0 : index
    %c0_143 = arith.constant 0 : index
    %312 = vector.load %arg4[%311, %c0_142, %c0_143] : memref<8x8x32xf32, #tpu.memory_space<vmem>>, vector<1x8x32xf32>
    %313 = vector.shape_cast %312 : vector<1x8x32xf32> to vector<8x32xf32>
    %314 = vector.shape_cast %308 : vector<8x32xf32> to vector<1x8x32xf32>
    tpu.vector_store %arg4[%311, %c0_142, %c0_143], %314 {strides = array<i32>} : memref<8x8x32xf32, #tpu.memory_space<vmem>>, vector<1x8x32xf32>,
    %c8_i32 = arith.constant 8 : i32
    %c0_i32_144 = arith.constant 0 : i32
    %315 = arith.cmpi eq, %arg1, %c0_i32_144 : i32
    %316 = arith.extui %315 : i1 to i32
    %c0_i32_145 = arith.constant 0 : i32
    %317 = arith.cmpi ne, %316, %c0_i32_145 : i32
    scf.if %317 {
      %c0_146 = arith.constant 0 : index
      %c0_147 = arith.constant 0 : index
      %318 = vector.load %arg6[%c0_146, %c0_147] : memref<8x32xf32, #tpu.memory_space<vmem>>, vector<8x32xf32>
      %c0_148 = arith.constant 0 : index
      %c0_149 = arith.constant 0 : index
      %319 = vector.load %arg5[%c0_148, %c0_149] : memref<8x32xf32, #tpu.memory_space<vmem>>, vector<8x32xf32>
      tpu.vector_store %arg5[%c0_148, %c0_149], %318 {strides = array<i32>} : memref<8x32xf32, #tpu.memory_space<vmem>>, vector<8x32xf32>,
    } else {
    }
    return
  }
  func.func @transform_0(%arg0: i32, %arg1: i32) -> (i32, i32, i32) {
    %c0_i32 = arith.constant 0 : i32
    %c0_i32_0 = arith.constant 0 : i32
    return %arg1, %arg0, %c0_i32 : i32, i32, i32
  }
  func.func @transform_2(%arg0: i32, %arg1: i32) -> (i32, i32, i32) {
    %c0_i32 = arith.constant 0 : i32
    %c0_i32_0 = arith.constant 0 : i32
    return %arg1, %arg0, %c0_i32 : i32, i32, i32
  }
  func.func @transform_3(%arg0: i32, %arg1: i32) -> (i32, i32) {
    %c0_i32 = arith.constant 0 : i32
    %c0_i32_0 = arith.constant 0 : i32
    return %arg0, %c0_i32 : i32, i32
  }
}

module attributes {stable_mosaic.version = 11 : i64} {
  func.func @_linear_kernel(%arg0: i32, %arg1: memref<8x32xf32, #tpu.memory_space<vmem>>, %arg2: memref<32x10xf32, #tpu.memory_space<vmem>>, %arg3: memref<1x10xf32, #tpu.memory_space<vmem>>, %arg4: memref<8x10xf32, #tpu.memory_space<vmem>>) attributes {dimension_semantics = [#tpu.dimension_semantics<arbitrary>], iteration_bounds = array<i64: 1>, scalar_prefetch = 0 : i64, scratch_operands = 0 : i64, tpu.core_type = #tpu.core_type<tc>, window_params = [{pipeline_mode = #tpu.pipeline_mode<synchronous>, transform_indices = @transform_0, window_bounds = array<i64: 8, 32>}, {pipeline_mode = #tpu.pipeline_mode<synchronous>, transform_indices = @transform_1, window_bounds = array<i64: 32, 10>}, {pipeline_mode = #tpu.pipeline_mode<synchronous>, transform_indices = @transform_2, window_bounds = array<i64: 1, 10>}, {pipeline_mode = #tpu.pipeline_mode<synchronous>, transform_indices = @transform_3, window_bounds = array<i64: 8, 10>}]} {
    %c0 = arith.constant 0 : index
    %c0_0 = arith.constant 0 : index
    %0 = vector.load %arg1[%c0, %c0_0] : memref<8x32xf32, #tpu.memory_space<vmem>>, vector<8x32xf32>
    %c0_1 = arith.constant 0 : index
    %c0_2 = arith.constant 0 : index
    %1 = vector.load %arg2[%c0_1, %c0_2] : memref<32x10xf32, #tpu.memory_space<vmem>>, vector<32x10xf32>
    %cst = arith.constant dense<0.000000e+00> : vector<8x10xf32>
    %2 = tpu.matmul %0, %1, %cst {dimension_numbers = #tpu.dot_dimension_numbers<[1], [0], [0], [1], [0, 0, 1, 1], [], []>} : vector<8x32xf32>, vector<32x10xf32>, vector<8x10xf32> -> vector<8x10xf32>
    %c0_3 = arith.constant 0 : index
    %c0_4 = arith.constant 0 : index
    %3 = vector.load %arg3[%c0_3, %c0_4] : memref<1x10xf32, #tpu.memory_space<vmem>>, vector<1x10xf32>
    %4 = vector.broadcast %3 : vector<1x10xf32> to vector<8x10xf32>
    %5 = arith.addf %2, %4 : vector<8x10xf32>
    %c0_5 = arith.constant 0 : index
    %c0_6 = arith.constant 0 : index
    %6 = vector.load %arg4[%c0_5, %c0_6] : memref<8x10xf32, #tpu.memory_space<vmem>>, vector<8x10xf32>
    tpu.vector_store %arg4[%c0_5, %c0_6], %5 {strides = array<i32>} : memref<8x10xf32, #tpu.memory_space<vmem>>, vector<8x10xf32>,
    return
  }
  func.func @transform_0(%arg0: i32) -> (i32, i32) {
    %c0_i32 = arith.constant 0 : i32
    %c0_i32_0 = arith.constant 0 : i32
    %c0_i32_1 = arith.constant 0 : i32
    return %c0_i32, %c0_i32_0 : i32, i32
  }
  func.func @transform_1(%arg0: i32) -> (i32, i32) {
    %c0_i32 = arith.constant 0 : i32
    %c0_i32_0 = arith.constant 0 : i32
    %c0_i32_1 = arith.constant 0 : i32
    return %c0_i32, %c0_i32_0 : i32, i32
  }
  func.func @transform_2(%arg0: i32) -> (i32, i32) {
    %c0_i32 = arith.constant 0 : i32
    %c0_i32_0 = arith.constant 0 : i32
    %c0_i32_1 = arith.constant 0 : i32
    return %c0_i32, %c0_i32_0 : i32, i32
  }
  func.func @transform_3(%arg0: i32) -> (i32, i32) {
    %c0_i32 = arith.constant 0 : i32
    %c0_i32_0 = arith.constant 0 : i32
    %c0_i32_1 = arith.constant 0 : i32
    return %c0_i32, %c0_i32_0 : i32, i32
  }
}

</mosaic_0001>

<llo_original>
// kernel: _rnn_forward_impl.5
$region0: #{_rnn_forward_impl.5}
  #allocation0 [shape = 'u32[]', space=smem, size = 0x4, offset = 0x4, fixed_abs, tag = 'smem constant byte address 0x4 - core index']
  #allocation1 [shape = 'u32[144,128]{1,0:T(1,128)}', space=vmem, size = 0x12000, scoped, tag = 'internal scratch']
  %s0 = inlined_call_operand.vmem [shape: f32[64,16], index: 0, kind: input, shape index: {}]
  %s1 = inlined_call_operand.vmem [shape: f32[16,128], index: 1, kind: input, shape index: {}]
  %s2 = inlined_call_operand.vmem [shape: f32[1,128], index: 2, kind: input, shape index: {}]
  %s3 = inlined_call_operand.vmem [shape: f32[64,128], index: 3, kind: output, shape index: {}]
  %s4 = sld [smem:[#allocation0]]
  $region22: #{_rnn_forward_impl.5} parent=0
    _
  %s6 = ssub.s32 1, %s4
  %s7 = scalar_select 0, %s6, %s4
  // Predicated region
  $region2: #{_rnn_forward_impl.5} parent=0 // pred_check
    _
  $region3: #{_rnn_forward_impl.5} parent=0 // pred_check_branch
    %9 = sbr.rel (0) target = $region5
  $region4: #{_rnn_forward_impl.5} parent=0 // pred_region
    _
  $region5: #{_rnn_forward_impl.5} parent=0 // pred_fallthru
    _
  // Predicated region
  $region6: #{_rnn_forward_impl.5} parent=0 // pred_check
    _
  $region7: #{_rnn_forward_impl.5} parent=0 // pred_check_branch
    %11 = sbr.rel (0) target = $region9
  $region8: #{_rnn_forward_impl.5} parent=0 // pred_region
    _
  $region9: #{_rnn_forward_impl.5} parent=0 // pred_fallthru
    _
  // Predicated region
  $region10: #{_rnn_forward_impl.5} parent=0 // pred_check
    _
  $region11: #{_rnn_forward_impl.5} parent=0 // pred_check_branch
    %13 = sbr.rel (0) target = $region13
  $region12: #{_rnn_forward_impl.5} parent=0 // pred_region
    _
  $region13: #{_rnn_forward_impl.5} parent=0 // pred_fallthru
    _
  %v14 = vld [vmem:[%s0] sm:$0xff]
  %v15 = vld [vmem:[%s0 + $0x8] sm:$0xff]
  %v16 = vld [vmem:[%s0 + $0x10] sm:$0xff]
  %v17 = vld [vmem:[%s0 + $0x18] sm:$0xff]
  %v18 = vld [vmem:[%s0 + $0x20] sm:$0xff]
  %v19 = vld [vmem:[%s0 + $0x28] sm:$0xff]
  %v20 = vld [vmem:[%s0 + $0x30] sm:$0xff]
  %v21 = vld [vmem:[%s0 + $0x38] sm:$0xff]
  %v22 = vld [vmem:[%s1] sm:$0xff]
  %v23 = vld [vmem:[%s1 + $0x8] sm:$0xff]
  %v24 = vld [vmem:[%s2] sm:$0x1]
  %v26 = vlaneseq
  %v27 = vshrl.u32 %v26, 7
  %v28 = vsub.s32 0, %v27
  %v29 = vrot.slane %v24, %v28
  %vm31 = vcmask 130048
  %v33 = vsel %vm31, %v14, 0
  %v36 = vsel %vm31, %v15, 0
  %v39 = vsel %vm31, %v16, 0
  %v42 = vsel %vm31, %v17, 0
  %v45 = vsel %vm31, %v18, 0
  %v48 = vsel %vm31, %v19, 0
  %v51 = vsel %vm31, %v20, 0
  %v54 = vsel %vm31, %v21, 0
  %56 = vmatprep.subr.mxu0 0.0
  %57 = vmatpush1.msra.mxu0 %v22
  %58 = vmatprep.subr.mxu0 0.0
  %59 = vmatpush1.msra.mxu0 %v23
  %60 = vmatprep.subr.mxu0 0.0
  %61 = vmatpush1.msra.mxu0 0.0
  %62 = vmatprep.subr.mxu0 0.0
  %63 = vmatpush1.msra.mxu0 0.0
  %64 = vmatprep.subr.mxu0 0.0
  %65 = vmatpush1.msra.mxu0 0.0
  %66 = vmatprep.subr.mxu0 0.0
  %67 = vmatpush1.msra.mxu0 0.0
  %68 = vmatprep.subr.mxu0 0.0
  %69 = vmatpush1.msra.mxu0 0.0
  %70 = vmatprep.subr.mxu0 0.0
  %71 = vmatpush1.msra.mxu0 0.0
  %72 = vmatprep.subr.mxu0 0.0
  %73 = vmatpush1.msra.mxu0 0.0
  %74 = vmatprep.subr.mxu0 0.0
  %75 = vmatpush1.msra.mxu0 0.0
  %76 = vmatprep.subr.mxu0 0.0
  %77 = vmatpush1.msra.mxu0 0.0
  %78 = vmatprep.subr.mxu0 0.0
  %79 = vmatpush1.msra.mxu0 0.0
  %80 = vmatprep.subr.mxu0 0.0
  %81 = vmatpush1.msra.mxu0 0.0
  %82 = vmatprep.subr.mxu0 0.0
  %83 = vmatpush1.msra.mxu0 0.0
  %84 = vmatprep.subr.mxu0 0.0
  %85 = vmatpush1.msra.mxu0 0.0
  %86 = vmatprep.subr.mxu0 0.0
  %87 = vmatpush1.msra.mxu0 0.0
  %88 = vmatprep.subr.mxu0 0.0
  %89 = vmatpush1.msra.mxu0 0.0
  %90 = vmatprep.subr.mxu0 0.0
  %91 = vmatpush1.msra.mxu0 0.0
  %92 = vmatprep.subr.mxu0 0.0
  %93 = vmatpush1.msra.mxu0 0.0
  %94 = vmatprep.subr.mxu0 0.0
  %95 = vmatpush1.msra.mxu0 0.0
  %96 = vmatprep.subr.mxu0 0.0
  %97 = vmatpush1.msra.mxu0 0.0
  %98 = vmatprep.subr.mxu0 0.0
  %99 = vmatpush1.msra.mxu0 0.0
  %100 = vmatprep.subr.mxu0 0.0
  %101 = vmatpush1.msra.mxu0 0.0
  %102 = vmatprep.subr.mxu0 0.0
  %103 = vmatpush1.msra.mxu0 0.0
  %104 = vmatprep.subr.mxu0 0.0
  %105 = vmatpush1.msra.mxu0 0.0
  %106 = vmatprep.subr.mxu0 0.0
  %107 = vmatpush1.msra.mxu0 0.0
  %108 = vmatprep.subr.mxu0 0.0
  %109 = vmatpush1.msra.mxu0 0.0
  %110 = vmatprep.subr.mxu0 0.0
  %111 = vmatpush1.msra.mxu0 0.0
  %112 = vmatprep.subr.mxu0 0.0
  %113 = vmatpush1.msra.mxu0 0.0
  %114 = vmatprep.subr.mxu0 0.0
  %115 = vmatpush1.msra.mxu0 0.0
  %116 = vmatprep.subr.mxu0 0.0
  %117 = vmatpush1.msra.mxu0 0.0
  %118 = vmatprep.subr.mxu0 0.0
  %119 = vmatpush1.msra.mxu0 0.0
  %120 = vmatprep.mubr.f32.mxu0 0.0
  %121 = vmatmul.mubr.f32.gmra.mrb[0].mxu0 %v33
  %v122 = vpop.f32.mrb[0].mxu0
  %v123 = vadd.f32 %v29, %v122
  %v124 = vpop.f32.mrb[0].mxu0
  %125 = vmatprep.mubr.f32.mxu0 0.0
  %126 = vmatmul.mubr.f32.gmra.mrb[0].mxu0 %v36
  %v127 = vpop.f32.mrb[0].mxu0
  %v128 = vadd.f32 %v29, %v127
  %v129 = vpop.f32.mrb[0].mxu0
  %130 = vmatprep.mubr.f32.mxu0 0.0
  %131 = vmatmul.mubr.f32.gmra.mrb[0].mxu0 %v39
  %v132 = vpop.f32.mrb[0].mxu0
  %v133 = vadd.f32 %v29, %v132
  %v134 = vpop.f32.mrb[0].mxu0
  %135 = vmatprep.mubr.f32.mxu0 0.0
  %136 = vmatmul.mubr.f32.gmra.mrb[0].mxu0 %v42
  %v137 = vpop.f32.mrb[0].mxu0
  %v138 = vadd.f32 %v29, %v137
  %v139 = vpop.f32.mrb[0].mxu0
  %140 = vmatprep.mubr.f32.mxu0 0.0
  %141 = vmatmul.mubr.f32.gmra.mrb[0].mxu0 %v45
  %v142 = vpop.f32.mrb[0].mxu0
  %v143 = vadd.f32 %v29, %v142
  %v144 = vpop.f32.mrb[0].mxu0
  %145 = vmatprep.mubr.f32.mxu0 0.0
  %146 = vmatmul.mubr.f32.gmra.mrb[0].mxu0 %v48
  %v147 = vpop.f32.mrb[0].mxu0
  %v148 = vadd.f32 %v29, %v147
  %v149 = vpop.f32.mrb[0].mxu0
  %150 = vmatprep.mubr.f32.mxu0 0.0
  %151 = vmatmul.mubr.f32.gmra.mrb[0].mxu0 %v51
  %v152 = vpop.f32.mrb[0].mxu0
  %v153 = vadd.f32 %v29, %v152
  %v154 = vpop.f32.mrb[0].mxu0
  %155 = vmatprep.mubr.f32.mxu0 0.0
  %156 = vmatmul.mubr.f32.gmra.mrb[0].mxu0 %v54
  %v157 = vpop.f32.mrb[0].mxu0
  %v158 = vadd.f32 %v29, %v157
  %v159 = vpop.f32.mrb[0].mxu0
  %160 = vdwg.mxu0
  %161 = vst [vmem:[%s3] sm:$0xff] %v123
  %162 = vst [vmem:[%s3 + $0x8] sm:$0xff] %v128
  %163 = vst [vmem:[%s3 + $0x10] sm:$0xff] %v133
  %164 = vst [vmem:[%s3 + $0x18] sm:$0xff] %v138
  %165 = vst [vmem:[%s3 + $0x20] sm:$0xff] %v143
  %166 = vst [vmem:[%s3 + $0x28] sm:$0xff] %v148
  %167 = vst [vmem:[%s3 + $0x30] sm:$0xff] %v153
  %168 = vst [vmem:[%s3 + $0x38] sm:$0xff] %v158
  // Predicated region
  $region14: #{_rnn_forward_impl.5} parent=0 // pred_check
    _
  $region15: #{_rnn_forward_impl.5} parent=0 // pred_check_branch
    %170 = sbr.rel (0) target = $region17
  $region16: #{_rnn_forward_impl.5} parent=0 // pred_region
    _
  $region17: #{_rnn_forward_impl.5} parent=0 // pred_fallthru
    _
  // Predicated region
  $region18: #{_rnn_forward_impl.5} parent=0 // pred_check
    _
  $region19: #{_rnn_forward_impl.5} parent=0 // pred_check_branch
    %172 = sbr.rel (0) target = $region21
  $region20: #{_rnn_forward_impl.5} parent=0 // pred_region
    _
  $region21: #{_rnn_forward_impl.5} parent=0 // pred_fallthru
    _

// kernel: _rnn_forward_impl.7
$region0: #{_rnn_forward_impl.7}
  #allocation0 [shape = 'u32[]', space=smem, size = 0x4, offset = 0x4, fixed_abs, tag = 'smem constant byte address 0x4 - core index']
  #allocation1 [shape = 'u32[144,128]{1,0:T(1,128)}', space=vmem, size = 0x12000, scoped, tag = 'internal scratch']
  %s0 = inlined_call_operand.vmem [shape: f32[64,32], index: 0, kind: input, shape index: {}]
  %s1 = inlined_call_operand.vmem [shape: f32[32,128], index: 1, kind: input, shape index: {}]
  %s2 = inlined_call_operand.vmem [shape: f32[1,128], index: 2, kind: input, shape index: {}]
  %s3 = inlined_call_operand.vmem [shape: f32[64,128], index: 3, kind: output, shape index: {}]
  %s4 = sld [smem:[#allocation0]]
  $region22: #{_rnn_forward_impl.7} parent=0
    _
  %s6 = ssub.s32 1, %s4
  %s7 = scalar_select 0, %s6, %s4
  // Predicated region
  $region2: #{_rnn_forward_impl.7} parent=0 // pred_check
    _
  $region3: #{_rnn_forward_impl.7} parent=0 // pred_check_branch
    %9 = sbr.rel (0) target = $region5
  $region4: #{_rnn_forward_impl.7} parent=0 // pred_region
    _
  $region5: #{_rnn_forward_impl.7} parent=0 // pred_fallthru
    _
  // Predicated region
  $region6: #{_rnn_forward_impl.7} parent=0 // pred_check
    _
  $region7: #{_rnn_forward_impl.7} parent=0 // pred_check_branch
    %11 = sbr.rel (0) target = $region9
  $region8: #{_rnn_forward_impl.7} parent=0 // pred_region
    _
  $region9: #{_rnn_forward_impl.7} parent=0 // pred_fallthru
    _
  // Predicated region
  $region10: #{_rnn_forward_impl.7} parent=0 // pred_check
    _
  $region11: #{_rnn_forward_impl.7} parent=0 // pred_check_branch
    %13 = sbr.rel (0) target = $region13
  $region12: #{_rnn_forward_impl.7} parent=0 // pred_region
    _
  $region13: #{_rnn_forward_impl.7} parent=0 // pred_fallthru
    _
  %v14 = vld [vmem:[%s0] sm:$0xff]
  %v15 = vld [vmem:[%s0 + $0x8] sm:$0xff]
  %v16 = vld [vmem:[%s0 + $0x10] sm:$0xff]
  %v17 = vld [vmem:[%s0 + $0x18] sm:$0xff]
  %v18 = vld [vmem:[%s0 + $0x20] sm:$0xff]
  %v19 = vld [vmem:[%s0 + $0x28] sm:$0xff]
  %v20 = vld [vmem:[%s0 + $0x30] sm:$0xff]
  %v21 = vld [vmem:[%s0 + $0x38] sm:$0xff]
  %v22 = vld [vmem:[%s1] sm:$0xff]
  %v23 = vld [vmem:[%s1 + $0x8] sm:$0xff]
  %v24 = vld [vmem:[%s1 + $0x10] sm:$0xff]
  %v25 = vld [vmem:[%s1 + $0x18] sm:$0xff]
  %v26 = vld [vmem:[%s2] sm:$0x1]
  %v28 = vlaneseq
  %v29 = vshrl.u32 %v28, 7
  %v30 = vsub.s32 0, %v29
  %v31 = vrot.slane %v26, %v30
  %vm33 = vcmask 261120
  %v35 = vsel %vm33, %v14, 0
  %v38 = vsel %vm33, %v15, 0
  %v41 = vsel %vm33, %v16, 0
  %v44 = vsel %vm33, %v17, 0
  %v47 = vsel %vm33, %v18, 0
  %v50 = vsel %vm33, %v19, 0
  %v53 = vsel %vm33, %v20, 0
  %v56 = vsel %vm33, %v21, 0
  %58 = vmatprep.subr.mxu0 0.0
  %59 = vmatpush1.msra.mxu0 %v22
  %60 = vmatprep.subr.mxu0 0.0
  %61 = vmatpush1.msra.mxu0 %v23
  %62 = vmatprep.subr.mxu0 0.0
  %63 = vmatpush1.msra.mxu0 %v24
  %64 = vmatprep.subr.mxu0 0.0
  %65 = vmatpush1.msra.mxu0 %v25
  %66 = vmatprep.subr.mxu0 0.0
  %67 = vmatpush1.msra.mxu0 0.0
  %68 = vmatprep.subr.mxu0 0.0
  %69 = vmatpush1.msra.mxu0 0.0
  %70 = vmatprep.subr.mxu0 0.0
  %71 = vmatpush1.msra.mxu0 0.0
  %72 = vmatprep.subr.mxu0 0.0
  %73 = vmatpush1.msra.mxu0 0.0
  %74 = vmatprep.subr.mxu0 0.0
  %75 = vmatpush1.msra.mxu0 0.0
  %76 = vmatprep.subr.mxu0 0.0
  %77 = vmatpush1.msra.mxu0 0.0
  %78 = vmatprep.subr.mxu0 0.0
  %79 = vmatpush1.msra.mxu0 0.0
  %80 = vmatprep.subr.mxu0 0.0
  %81 = vmatpush1.msra.mxu0 0.0
  %82 = vmatprep.subr.mxu0 0.0
  %83 = vmatpush1.msra.mxu0 0.0
  %84 = vmatprep.subr.mxu0 0.0
  %85 = vmatpush1.msra.mxu0 0.0
  %86 = vmatprep.subr.mxu0 0.0
  %87 = vmatpush1.msra.mxu0 0.0
  %88 = vmatprep.subr.mxu0 0.0
  %89 = vmatpush1.msra.mxu0 0.0
  %90 = vmatprep.subr.mxu0 0.0
  %91 = vmatpush1.msra.mxu0 0.0
  %92 = vmatprep.subr.mxu0 0.0
  %93 = vmatpush1.msra.mxu0 0.0
  %94 = vmatprep.subr.mxu0 0.0
  %95 = vmatpush1.msra.mxu0 0.0
  %96 = vmatprep.subr.mxu0 0.0
  %97 = vmatpush1.msra.mxu0 0.0
  %98 = vmatprep.subr.mxu0 0.0
  %99 = vmatpush1.msra.mxu0 0.0
  %100 = vmatprep.subr.mxu0 0.0
  %101 = vmatpush1.msra.mxu0 0.0
  %102 = vmatprep.subr.mxu0 0.0
  %103 = vmatpush1.msra.mxu0 0.0
  %104 = vmatprep.subr.mxu0 0.0
  %105 = vmatpush1.msra.mxu0 0.0
  %106 = vmatprep.subr.mxu0 0.0
  %107 = vmatpush1.msra.mxu0 0.0
  %108 = vmatprep.subr.mxu0 0.0
  %109 = vmatpush1.msra.mxu0 0.0
  %110 = vmatprep.subr.mxu0 0.0
  %111 = vmatpush1.msra.mxu0 0.0
  %112 = vmatprep.subr.mxu0 0.0
  %113 = vmatpush1.msra.mxu0 0.0
  %114 = vmatprep.subr.mxu0 0.0
  %115 = vmatpush1.msra.mxu0 0.0
  %116 = vmatprep.subr.mxu0 0.0
  %117 = vmatpush1.msra.mxu0 0.0
  %118 = vmatprep.subr.mxu0 0.0
  %119 = vmatpush1.msra.mxu0 0.0
  %120 = vmatprep.subr.mxu0 0.0
  %121 = vmatpush1.msra.mxu0 0.0
  %122 = vmatprep.mubr.f32.mxu0 0.0
  %123 = vmatmul.mubr.f32.gmra.mrb[0].mxu0 %v35
  %v124 = vpop.f32.mrb[0].mxu0
  %v125 = vadd.f32 %v31, %v124
  %v126 = vpop.f32.mrb[0].mxu0
  %127 = vmatprep.mubr.f32.mxu0 0.0
  %128 = vmatmul.mubr.f32.gmra.mrb[0].mxu0 %v38
  %v129 = vpop.f32.mrb[0].mxu0
  %v130 = vadd.f32 %v31, %v129
  %v131 = vpop.f32.mrb[0].mxu0
  %132 = vmatprep.mubr.f32.mxu0 0.0
  %133 = vmatmul.mubr.f32.gmra.mrb[0].mxu0 %v41
  %v134 = vpop.f32.mrb[0].mxu0
  %v135 = vadd.f32 %v31, %v134
  %v136 = vpop.f32.mrb[0].mxu0
  %137 = vmatprep.mubr.f32.mxu0 0.0
  %138 = vmatmul.mubr.f32.gmra.mrb[0].mxu0 %v44
  %v139 = vpop.f32.mrb[0].mxu0
  %v140 = vadd.f32 %v31, %v139
  %v141 = vpop.f32.mrb[0].mxu0
  %142 = vmatprep.mubr.f32.mxu0 0.0
  %143 = vmatmul.mubr.f32.gmra.mrb[0].mxu0 %v47
  %v144 = vpop.f32.mrb[0].mxu0
  %v145 = vadd.f32 %v31, %v144
  %v146 = vpop.f32.mrb[0].mxu0
  %147 = vmatprep.mubr.f32.mxu0 0.0
  %148 = vmatmul.mubr.f32.gmra.mrb[0].mxu0 %v50
  %v149 = vpop.f32.mrb[0].mxu0
  %v150 = vadd.f32 %v31, %v149
  %v151 = vpop.f32.mrb[0].mxu0
  %152 = vmatprep.mubr.f32.mxu0 0.0
  %153 = vmatmul.mubr.f32.gmra.mrb[0].mxu0 %v53
  %v154 = vpop.f32.mrb[0].mxu0
  %v155 = vadd.f32 %v31, %v154
  %v156 = vpop.f32.mrb[0].mxu0
  %157 = vmatprep.mubr.f32.mxu0 0.0
  %158 = vmatmul.mubr.f32.gmra.mrb[0].mxu0 %v56
  %v159 = vpop.f32.mrb[0].mxu0
  %v160 = vadd.f32 %v31, %v159
  %v161 = vpop.f32.mrb[0].mxu0
  %162 = vdwg.mxu0
  %163 = vst [vmem:[%s3] sm:$0xff] %v125
  %164 = vst [vmem:[%s3 + $0x8] sm:$0xff] %v130
  %165 = vst [vmem:[%s3 + $0x10] sm:$0xff] %v135
  %166 = vst [vmem:[%s3 + $0x18] sm:$0xff] %v140
  %167 = vst [vmem:[%s3 + $0x20] sm:$0xff] %v145
  %168 = vst [vmem:[%s3 + $0x28] sm:$0xff] %v150
  %169 = vst [vmem:[%s3 + $0x30] sm:$0xff] %v155
  %170 = vst [vmem:[%s3 + $0x38] sm:$0xff] %v160
  // Predicated region
  $region14: #{_rnn_forward_impl.7} parent=0 // pred_check
    _
  $region15: #{_rnn_forward_impl.7} parent=0 // pred_check_branch
    %172 = sbr.rel (0) target = $region17
  $region16: #{_rnn_forward_impl.7} parent=0 // pred_region
    _
  $region17: #{_rnn_forward_impl.7} parent=0 // pred_fallthru
    _
  // Predicated region
  $region18: #{_rnn_forward_impl.7} parent=0 // pred_check
    _
  $region19: #{_rnn_forward_impl.7} parent=0 // pred_check_branch
    %174 = sbr.rel (0) target = $region21
  $region20: #{_rnn_forward_impl.7} parent=0 // pred_region
    _
  $region21: #{_rnn_forward_impl.7} parent=0 // pred_fallthru
    _

// kernel: _rnn_forward_impl.9
$region0: #{_rnn_forward_impl.9}
  #allocation0 [shape = 'u32[]', space=smem, size = 0x4, offset = 0x4, fixed_abs, tag = 'smem constant byte address 0x4 - core index']
  #allocation1 [shape = 'u32[144,128]{1,0:T(1,128)}', space=vmem, size = 0x12000, scoped, tag = 'internal scratch']
  %s0 = inlined_call_operand.vmem [shape: f32[8,32], index: 0, kind: input, shape index: {}]
  %s1 = inlined_call_operand.vmem [shape: f32[32,10], index: 1, kind: input, shape index: {}]
  %s2 = inlined_call_operand.vmem [shape: f32[1,10], index: 2, kind: input, shape index: {}]
  %s3 = inlined_call_operand.vmem [shape: f32[8,10], index: 3, kind: output, shape index: {}]
  %s4 = sld [smem:[#allocation0]]
  $region22: #{_rnn_forward_impl.9} parent=0
    _
  %s6 = ssub.s32 1, %s4
  %s7 = scalar_select 0, %s6, %s4
  // Predicated region
  $region2: #{_rnn_forward_impl.9} parent=0 // pred_check
    _
  $region3: #{_rnn_forward_impl.9} parent=0 // pred_check_branch
    %9 = sbr.rel (0) target = $region5
  $region4: #{_rnn_forward_impl.9} parent=0 // pred_region
    _
  $region5: #{_rnn_forward_impl.9} parent=0 // pred_fallthru
    _
  // Predicated region
  $region6: #{_rnn_forward_impl.9} parent=0 // pred_check
    _
  $region7: #{_rnn_forward_impl.9} parent=0 // pred_check_branch
    %11 = sbr.rel (0) target = $region9
  $region8: #{_rnn_forward_impl.9} parent=0 // pred_region
    _
  $region9: #{_rnn_forward_impl.9} parent=0 // pred_fallthru
    _
  // Predicated region
  $region10: #{_rnn_forward_impl.9} parent=0 // pred_check
    _
  $region11: #{_rnn_forward_impl.9} parent=0 // pred_check_branch
    %13 = sbr.rel (0) target = $region13
  $region12: #{_rnn_forward_impl.9} parent=0 // pred_region
    _
  $region13: #{_rnn_forward_impl.9} parent=0 // pred_fallthru
    _
  %v14 = vld [vmem:[%s0] sm:$0xff]
  %v15 = vld [vmem:[%s1] sm:$0xff]
  %v16 = vld [vmem:[%s1 + $0x8] sm:$0xff]
  %v17 = vld [vmem:[%s1 + $0x10] sm:$0xff]
  %v18 = vld [vmem:[%s1 + $0x18] sm:$0xff]
  %v19 = vld [vmem:[%s2] sm:$0x1]
  %v21 = vlaneseq
  %v22 = vshrl.u32 %v21, 7
  %v23 = vsub.s32 0, %v22
  %v24 = vrot.slane %v19, %v23
  %vm26 = vcmask 261120
  %v28 = vsel %vm26, %v14, 0
  %30 = vmatprep.subr.mxu0 0.0
  %31 = vmatpush1.msra.mxu0 %v15
  %32 = vmatprep.subr.mxu0 0.0
  %33 = vmatpush1.msra.mxu0 %v16
  %34 = vmatprep.subr.mxu0 0.0
  %35 = vmatpush1.msra.mxu0 %v17
  %36 = vmatprep.subr.mxu0 0.0
  %37 = vmatpush1.msra.mxu0 %v18
  %38 = vmatprep.subr.mxu0 0.0
  %39 = vmatpush1.msra.mxu0 0.0
  %40 = vmatprep.subr.mxu0 0.0
  %41 = vmatpush1.msra.mxu0 0.0
  %42 = vmatprep.subr.mxu0 0.0
  %43 = vmatpush1.msra.mxu0 0.0
  %44 = vmatprep.subr.mxu0 0.0
  %45 = vmatpush1.msra.mxu0 0.0
  %46 = vmatprep.subr.mxu0 0.0
  %47 = vmatpush1.msra.mxu0 0.0
  %48 = vmatprep.subr.mxu0 0.0
  %49 = vmatpush1.msra.mxu0 0.0
  %50 = vmatprep.subr.mxu0 0.0
  %51 = vmatpush1.msra.mxu0 0.0
  %52 = vmatprep.subr.mxu0 0.0
  %53 = vmatpush1.msra.mxu0 0.0
  %54 = vmatprep.subr.mxu0 0.0
  %55 = vmatpush1.msra.mxu0 0.0
  %56 = vmatprep.subr.mxu0 0.0
  %57 = vmatpush1.msra.mxu0 0.0
  %58 = vmatprep.subr.mxu0 0.0
  %59 = vmatpush1.msra.mxu0 0.0
  %60 = vmatprep.subr.mxu0 0.0
  %61 = vmatpush1.msra.mxu0 0.0
  %62 = vmatprep.subr.mxu0 0.0
  %63 = vmatpush1.msra.mxu0 0.0
  %64 = vmatprep.subr.mxu0 0.0
  %65 = vmatpush1.msra.mxu0 0.0
  %66 = vmatprep.subr.mxu0 0.0
  %67 = vmatpush1.msra.mxu0 0.0
  %68 = vmatprep.subr.mxu0 0.0
  %69 = vmatpush1.msra.mxu0 0.0
  %70 = vmatprep.subr.mxu0 0.0
  %71 = vmatpush1.msra.mxu0 0.0
  %72 = vmatprep.subr.mxu0 0.0
  %73 = vmatpush1.msra.mxu0 0.0
  %74 = vmatprep.subr.mxu0 0.0
  %75 = vmatpush1.msra.mxu0 0.0
  %76 = vmatprep.subr.mxu0 0.0
  %77 = vmatpush1.msra.mxu0 0.0
  %78 = vmatprep.subr.mxu0 0.0
  %79 = vmatpush1.msra.mxu0 0.0
  %80 = vmatprep.subr.mxu0 0.0
  %81 = vmatpush1.msra.mxu0 0.0
  %82 = vmatprep.subr.mxu0 0.0
  %83 = vmatpush1.msra.mxu0 0.0
  %84 = vmatprep.subr.mxu0 0.0
  %85 = vmatpush1.msra.mxu0 0.0
  %86 = vmatprep.subr.mxu0 0.0
  %87 = vmatpush1.msra.mxu0 0.0
  %88 = vmatprep.subr.mxu0 0.0
  %89 = vmatpush1.msra.mxu0 0.0
  %90 = vmatprep.subr.mxu0 0.0
  %91 = vmatpush1.msra.mxu0 0.0
  %92 = vmatprep.subr.mxu0 0.0
  %93 = vmatpush1.msra.mxu0 0.0
  %94 = vmatprep.mubr.f32.mxu0 0.0
  %95 = vmatmul.mubr.f32.gmra.mrb[0].mxu0 %v28
  %v96 = vpop.f32.mrb[0].mxu0
  %v97 = vadd.f32 %v24, %v96
  %v98 = vpop.f32.mrb[0].mxu0
  %99 = vdwg.mxu0
  %vm100 = vcmask 80896
  %101 = vst.msk [vmem:[%s3] sm:$0xff] %vm100, %v97
  // Predicated region
  $region14: #{_rnn_forward_impl.9} parent=0 // pred_check
    _
  $region15: #{_rnn_forward_impl.9} parent=0 // pred_check_branch
    %103 = sbr.rel (0) target = $region17
  $region16: #{_rnn_forward_impl.9} parent=0 // pred_region
    _
  $region17: #{_rnn_forward_impl.9} parent=0 // pred_fallthru
    _
  // Predicated region
  $region18: #{_rnn_forward_impl.9} parent=0 // pred_check
    _
  $region19: #{_rnn_forward_impl.9} parent=0 // pred_check_branch
    %105 = sbr.rel (0) target = $region21
  $region20: #{_rnn_forward_impl.9} parent=0 // pred_region
    _
  $region21: #{_rnn_forward_impl.9} parent=0 // pred_fallthru
    _

// kernel: _rnn_forward_impl.6
$region0: #{_rnn_forward_impl.6}
  #allocation0 [shape = 'u32[]', space=smem, size = 0x4, offset = 0x4, fixed_abs, tag = 'smem constant byte address 0x4 - core index']
  #allocation1 [shape = 'u32[144,128]{1,0:T(1,128)}', space=vmem, size = 0x12000, scoped, tag = 'internal scratch']
  #allocation2 [shape = 'f32[8,32]{1,0:T(8,128)}', space=vmem, size = 0x1000, scoped, tag = 'scratch operand']
  #allocation3 [shape = 'f32[8,32]{1,0:T(8,128)}', space=vmem, size = 0x1000, scoped, tag = 'scratch operand']
  #allocation4 [shape = 'f32[32,128]{1,0:T(8,128)}', space=vmem, size = 0x4000, scoped, tag = 'scratch operand']
  #allocation5 [shape = 's32[1]{0}', space=sflag, size = 0x4, scoped, tag = 'scratch operand']
  #allocation8 [shape = 's32[]', space=sflag, size = 0x4, offset = 0, fixed_abs, tag = 'sflag constant byte address 0x0 - dummy sync flag']
  %s0 = inlined_call_operand.vmem [shape: f32[8,8,128], index: 0, kind: input, shape index: {}]
  %s1 = inlined_call_operand.vmem [shape: f32[32,128], index: 1, kind: input, shape index: {}]
  %s2 = inlined_call_operand.vmem [shape: f32[8,8,32], index: 2, kind: output, shape index: {0}]
  %s3 = inlined_call_operand.hbm [shape: f32[8,32], index: 3, kind: output, shape index: {1}]
  %4 = xla_tuple %s2, %s3
  %s5 = sld [smem:[#allocation0]]
  $region64: #{_rnn_forward_impl.6} parent=0
    _
  %s7 = ssub.s32 1, %s5
  %s8 = scalar_select 0, %s7, %s5
  $region1: #{_rnn_forward_impl.6} parent=0
    #allocation6 [shape = 'u8[4096]{0}', space=vmem, size = 0x1000, scoped, tag = 'output window, operand 1, single buffered']
    #allocation7 [shape = 's32[1]{0}', space=sflag, size = 0x4, scoped, tag = 'scoped memory for _rnn_forward_impl.6']
    %9 = vsyncpa [#allocation7], 0
    // Predicated region
    $region2: #{_rnn_forward_impl.6} parent=1 // pred_check
      _
    $region3: #{_rnn_forward_impl.6} parent=1 // pred_check_branch
      %11 = sbr.rel (0) target = $region5
    $region4: #{_rnn_forward_impl.6} parent=1 // pred_region
      _
    $region5: #{_rnn_forward_impl.6} parent=1 // pred_fallthru
      _
    %p12 = scmp.eq.s32.totalorder 0, 0
    // Predicated region
    $region6: #{_rnn_forward_impl.6} parent=1 // pred_check
      %p13 = pneg %p12
    $region7: #{_rnn_forward_impl.6} parent=1 // pred_check_branch
      %15 = sbr.rel (%p13) target = $region9
    $region8: #{_rnn_forward_impl.6} parent=1 // pred_region
      %p17 = scmp.lt.u32.totalorder 32, 8
      %p18 = pneg %p17
      // Predicated region
      $region10: #{_rnn_forward_impl.6} parent=8 // pred_check
        _
      $region11: #{_rnn_forward_impl.6} parent=8 // pred_check_branch
        %20 = sbr.rel (%p17) target = $region13
      $region12: #{_rnn_forward_impl.6} parent=8 // pred_region
        %s35 = sand.u32 32, 7
        %p36 = scmp.eq.s32.totalorder %s35, 0
        // Predicated region
        $region25: #{_rnn_forward_impl.6} parent=12 // pred_check
          %p37 = pneg %p36
        $region26: #{_rnn_forward_impl.6} parent=12 // pred_check_branch
          %39 = sbr.rel (%p37) target = $region28
        $region27: #{_rnn_forward_impl.6} parent=12 // pred_region
          loop: start=0, step=1, limit=1
          $region29: #{_rnn_forward_impl.6} parent=27 // loop_pre_header
            _
          $region30: #{_rnn_forward_impl.6} parent=27 // loop_header
            %s41 = sphi 0, %s45
            %p42 = scmp.ge.s32.totalorder %s41, 1
            %s46 = sphi %s1, %s1
            %s47 = sphi [#allocation4], [#allocation4]
          $region31: #{_rnn_forward_impl.6} parent=27 // loop_header_branch
            %44 = sbr.rel (%p42) target = $region35
          $region32: #{_rnn_forward_impl.6} parent=27 // loop_body
            %v48 = vld [vmem:[%s46] sm:$0xff]
            %49 = vst [vmem:[%s47] sm:$0xff] %v48
            %v50 = vld [vmem:[%s46 + $0x8] sm:$0xff]
            %51 = vst [vmem:[%s47 + $0x8] sm:$0xff] %v50
            %v52 = vld [vmem:[%s46 + $0x10] sm:$0xff]
            %53 = vst [vmem:[%s47 + $0x10] sm:$0xff] %v52
            %v54 = vld [vmem:[%s46 + $0x18] sm:$0xff]
            %55 = vst [vmem:[%s47 + $0x18] sm:$0xff] %v54
          $region33: #{_rnn_forward_impl.6} parent=27 // loop_footer
            %s45 = sadd.s32 1, %s41
          $region34: #{_rnn_forward_impl.6} parent=27 // loop_footer_branch
            %40 = sbr.rel target = $region30
          $region35: #{_rnn_forward_impl.6} parent=27 // loop_exit
            _
        $region28: #{_rnn_forward_impl.6} parent=12 // pred_fallthru
          _
        %p56 = pneg %p36
        // Predicated region
        $region36: #{_rnn_forward_impl.6} parent=12 // pred_check
          _
        $region37: #{_rnn_forward_impl.6} parent=12 // pred_check_branch
          %58 = sbr.rel (%p36) target = $region39
        $region38: #{_rnn_forward_impl.6} parent=12 // pred_region
          %s59 = sand.u32 32, 7
        $region39: #{_rnn_forward_impl.6} parent=12 // pred_fallthru
          _
      $region13: #{_rnn_forward_impl.6} parent=8 // pred_fallthru
        _
      // Predicated region
      $region14: #{_rnn_forward_impl.6} parent=8 // pred_check
        %p21 = pneg %p17
      $region15: #{_rnn_forward_impl.6} parent=8 // pred_check_branch
        %23 = sbr.rel (%p21) target = $region17
      $region16: #{_rnn_forward_impl.6} parent=8 // pred_region
        %s24 = sshllo.u32 0, 32
        loop: start=0, step=1, limit=1
        $region18: #{_rnn_forward_impl.6} parent=16 // loop_pre_header
          _
        $region19: #{_rnn_forward_impl.6} parent=16 // loop_header
          %s26 = sphi 0, %s30
          %p27 = scmp.ge.s32.totalorder %s26, 1
          %s31 = sphi %s1, %s1
          %s32 = sphi [#allocation4], [#allocation4]
        $region20: #{_rnn_forward_impl.6} parent=16 // loop_header_branch
          %29 = sbr.rel (%p27) target = $region24
        $region21: #{_rnn_forward_impl.6} parent=16 // loop_body
          %v33 = vld [vmem:[%s31] sm:%s24]
          %34 = vst [vmem:[%s32] sm:%s24] %v33
        $region22: #{_rnn_forward_impl.6} parent=16 // loop_footer
          %s30 = sadd.s32 1, %s26
        $region23: #{_rnn_forward_impl.6} parent=16 // loop_footer_branch
          %25 = sbr.rel target = $region19
        $region24: #{_rnn_forward_impl.6} parent=16 // loop_exit
          _
      $region17: #{_rnn_forward_impl.6} parent=8 // pred_fallthru
        _
      // Predicated region
      $region40: #{_rnn_forward_impl.6} parent=8 // pred_check
        _
      $region41: #{_rnn_forward_impl.6} parent=8 // pred_check_branch
        %62 = sbr.rel (0) target = $region43
      $region42: #{_rnn_forward_impl.6} parent=8 // pred_region
        %63 = vsyncadd [#allocation5], 512
      $region43: #{_rnn_forward_impl.6} parent=8 // pred_fallthru
        _
      %s64 = smul.u32 32, 1
      %s65 = sshll.u32 %s64, 4
      %66 = dma.done [#allocation5], %s65
      %vm67 = vcmask 261120
      %68 = vst.msk [vmem:[#allocation2] sm:$0xff] %vm67, 0.0
      %69 = vst.msk [vmem:[#allocation3] sm:$0xff] %vm67, 0.0
    $region9: #{_rnn_forward_impl.6} parent=1 // pred_fallthru
      _
    %v70 = vld [vmem:[%s0] sm:$0xff]
    %v71 = vld [vmem:[#allocation2] sm:$0xff]
    %v72 = vld [vmem:[#allocation4] sm:$0xff]
    %v73 = vld [vmem:[#allocation4 + $0x8] sm:$0xff]
    %v74 = vld [vmem:[#allocation4 + $0x10] sm:$0xff]
    %v75 = vld [vmem:[#allocation4 + $0x18] sm:$0xff]
    %vm76 = vcmask 261120
    %v78 = vsel %vm76, %v71, 0
    %80 = vmatprep.subr.mxu0 0.0
    %81 = vmatpush1.msra.mxu0 %v72
    %82 = vmatprep.subr.mxu0 0.0
    %83 = vmatpush1.msra.mxu0 %v73
    %84 = vmatprep.subr.mxu0 0.0
    %85 = vmatpush1.msra.mxu0 %v74
    %86 = vmatprep.subr.mxu0 0.0
    %87 = vmatpush1.msra.mxu0 %v75
    %88 = vmatprep.subr.mxu0 0.0
    %89 = vmatpush1.msra.mxu0 0.0
    %90 = vmatprep.subr.mxu0 0.0
    %91 = vmatpush1.msra.mxu0 0.0
    %92 = vmatprep.subr.mxu0 0.0
    %93 = vmatpush1.msra.mxu0 0.0
    %94 = vmatprep.subr.mxu0 0.0
    %95 = vmatpush1.msra.mxu0 0.0
    %96 = vmatprep.subr.mxu0 0.0
    %97 = vmatpush1.msra.mxu0 0.0
    %98 = vmatprep.subr.mxu0 0.0
    %99 = vmatpush1.msra.mxu0 0.0
    %100 = vmatprep.subr.mxu0 0.0
    %101 = vmatpush1.msra.mxu0 0.0
    %102 = vmatprep.subr.mxu0 0.0
    %103 = vmatpush1.msra.mxu0 0.0
    %104 = vmatprep.subr.mxu0 0.0
    %105 = vmatpush1.msra.mxu0 0.0
    %106 = vmatprep.subr.mxu0 0.0
    %107 = vmatpush1.msra.mxu0 0.0
    %108 = vmatprep.subr.mxu0 0.0
    %109 = vmatpush1.msra.mxu0 0.0
    %110 = vmatprep.subr.mxu0 0.0
    %111 = vmatpush1.msra.mxu0 0.0
    %112 = vmatprep.subr.mxu0 0.0
    %113 = vmatpush1.msra.mxu0 0.0
    %114 = vmatprep.subr.mxu0 0.0
    %115 = vmatpush1.msra.mxu0 0.0
    %116 = vmatprep.subr.mxu0 0.0
    %117 = vmatpush1.msra.mxu0 0.0
    %118 = vmatprep.subr.mxu0 0.0
    %119 = vmatpush1.msra.mxu0 0.0
    %120 = vmatprep.subr.mxu0 0.0
    %121 = vmatpush1.msra.mxu0 0.0
    %122 = vmatprep.subr.mxu0 0.0
    %123 = vmatpush1.msra.mxu0 0.0
    %124 = vmatprep.subr.mxu0 0.0
    %125 = vmatpush1.msra.mxu0 0.0
    %126 = vmatprep.subr.mxu0 0.0
    %127 = vmatpush1.msra.mxu0 0.0
    %128 = vmatprep.subr.mxu0 0.0
    %129 = vmatpush1.msra.mxu0 0.0
    %130 = vmatprep.subr.mxu0 0.0
    %131 = vmatpush1.msra.mxu0 0.0
    %132 = vmatprep.subr.mxu0 0.0
    %133 = vmatpush1.msra.mxu0 0.0
    %134 = vmatprep.subr.mxu0 0.0
    %135 = vmatpush1.msra.mxu0 0.0
    %136 = vmatprep.subr.mxu0 0.0
    %137 = vmatpush1.msra.mxu0 0.0
    %138 = vmatprep.subr.mxu0 0.0
    %139 = vmatpush1.msra.mxu0 0.0
    %140 = vmatprep.subr.mxu0 0.0
    %141 = vmatpush1.msra.mxu0 0.0
    %142 = vmatprep.subr.mxu0 0.0
    %143 = vmatpush1.msra.mxu0 0.0
    %144 = vmatprep.mubr.f32.mxu0 0.0
    %145 = vmatmul.mubr.f32.gmra.mrb[0].mxu0 %v78
    %v146 = vpop.f32.mrb[0].mxu0
    %v147 = vadd.f32 0.0, %v146
    %v148 = vpop.f32.mrb[0].mxu0
    %149 = vdwg.mxu0
    %v150 = vadd.f32 %v70, %v147
    %v151 = vxor.u32 %v150, 2147483648
    %v152 = vmul.f32 %v151, 1.442695
    %v153 = vpow.pop %v152
    %v154 = vadd.f32 %v153, 1.0
    %v155 = vrcp.pop %v154
    %v156 = vmul.f32 1.0, %v155
    %v157 = vtanh.pop %v150
    %v158 = vld [vmem:[#allocation3] sm:$0xff]
    %160 = vrot.lane.b32.xlu0 %v158, 32
    %v161 = vpop.permute.xlu0 %160
    %v163 = vmul.f32 %v156, %v161
    %165 = vrot.lane.b32.xlu0 %v157, 64
    %v166 = vpop.permute.xlu0 %165
    %v168 = vmul.f32 %v156, %v166
    %170 = vrot.lane.b32.xlu0 %v168, 32
    %v171 = vpop.permute.xlu0 %170
    %v173 = vadd.f32 %v163, %v171
    %v174 = vtanh.pop %v173
    %176 = vrot.lane.b32.xlu0 %v174, 64
    %v177 = vpop.permute.xlu0 %176
    %v179 = vmul.f32 %v156, %v177
    %181 = vrot.lane.b32.xlu0 %v173, 96
    %v182 = vpop.permute.xlu0 %181
    %184 = vst.msk [vmem:[#allocation3] sm:$0xff] %vm76, %v182
    %186 = vrot.lane.b32.xlu0 %v179, 32
    %v187 = vpop.permute.xlu0 %186
    %189 = vst.msk [vmem:[#allocation2] sm:$0xff] %vm76, %v187
    %190 = vst.msk [vmem:[%s2] sm:$0xff] %vm76, %v187
    %s191 = scalar_lea.vmem %s0, 8
    %v192 = vld [vmem:[%s191] sm:$0xff]
    %v193 = vld [vmem:[#allocation2] sm:$0xff]
    %v194 = vld [vmem:[#allocation4] sm:$0xff]
    %v195 = vld [vmem:[#allocation4 + $0x8] sm:$0xff]
    %v196 = vld [vmem:[#allocation4 + $0x10] sm:$0xff]
    %v197 = vld [vmem:[#allocation4 + $0x18] sm:$0xff]
    %v199 = vsel %vm76, %v193, 0
    %201 = vmatprep.subr.mxu0 0.0
    %202 = vmatpush1.msra.mxu0 %v194
    %203 = vmatprep.subr.mxu0 0.0
    %204 = vmatpush1.msra.mxu0 %v195
    %205 = vmatprep.subr.mxu0 0.0
    %206 = vmatpush1.msra.mxu0 %v196
    %207 = vmatprep.subr.mxu0 0.0
    %208 = vmatpush1.msra.mxu0 %v197
    %209 = vmatprep.subr.mxu0 0.0
    %210 = vmatpush1.msra.mxu0 0.0
    %211 = vmatprep.subr.mxu0 0.0
    %212 = vmatpush1.msra.mxu0 0.0
    %213 = vmatprep.subr.mxu0 0.0
    %214 = vmatpush1.msra.mxu0 0.0
    %215 = vmatprep.subr.mxu0 0.0
    %216 = vmatpush1.msra.mxu0 0.0
    %217 = vmatprep.subr.mxu0 0.0
    %218 = vmatpush1.msra.mxu0 0.0
    %219 = vmatprep.subr.mxu0 0.0
    %220 = vmatpush1.msra.mxu0 0.0
    %221 = vmatprep.subr.mxu0 0.0
    %222 = vmatpush1.msra.mxu0 0.0
    %223 = vmatprep.subr.mxu0 0.0
    %224 = vmatpush1.msra.mxu0 0.0
    %225 = vmatprep.subr.mxu0 0.0
    %226 = vmatpush1.msra.mxu0 0.0
    %227 = vmatprep.subr.mxu0 0.0
    %228 = vmatpush1.msra.mxu0 0.0
    %229 = vmatprep.subr.mxu0 0.0
    %230 = vmatpush1.msra.mxu0 0.0
    %231 = vmatprep.subr.mxu0 0.0
    %232 = vmatpush1.msra.mxu0 0.0
    %233 = vmatprep.subr.mxu0 0.0
    %234 = vmatpush1.msra.mxu0 0.0
    %235 = vmatprep.subr.mxu0 0.0
    %236 = vmatpush1.msra.mxu0 0.0
    %237 = vmatprep.subr.mxu0 0.0
    %238 = vmatpush1.msra.mxu0 0.0
    %239 = vmatprep.subr.mxu0 0.0
    %240 = vmatpush1.msra.mxu0 0.0
    %241 = vmatprep.subr.mxu0 0.0
    %242 = vmatpush1.msra.mxu0 0.0
    %243 = vmatprep.subr.mxu0 0.0
    %244 = vmatpush1.msra.mxu0 0.0
    %245 = vmatprep.subr.mxu0 0.0
    %246 = vmatpush1.msra.mxu0 0.0
    %247 = vmatprep.subr.mxu0 0.0
    %248 = vmatpush1.msra.mxu0 0.0
    %249 = vmatprep.subr.mxu0 0.0
    %250 = vmatpush1.msra.mxu0 0.0
    %251 = vmatprep.subr.mxu0 0.0
    %252 = vmatpush1.msra.mxu0 0.0
    %253 = vmatprep.subr.mxu0 0.0
    %254 = vmatpush1.msra.mxu0 0.0
    %255 = vmatprep.subr.mxu0 0.0
    %256 = vmatpush1.msra.mxu0 0.0
    %257 = vmatprep.subr.mxu0 0.0
    %258 = vmatpush1.msra.mxu0 0.0
    %259 = vmatprep.subr.mxu0 0.0
    %260 = vmatpush1.msra.mxu0 0.0
    %261 = vmatprep.subr.mxu0 0.0
    %262 = vmatpush1.msra.mxu0 0.0
    %263 = vmatprep.subr.mxu0 0.0
    %264 = vmatpush1.msra.mxu0 0.0
    %265 = vmatprep.mubr.f32.mxu0 0.0
    %266 = vmatmul.mubr.f32.gmra.mrb[0].mxu0 %v199
    %v267 = vpop.f32.mrb[0].mxu0
    %v268 = vadd.f32 0.0, %v267
    %v269 = vpop.f32.mrb[0].mxu0
    %270 = vdwg.mxu0
    %v271 = vadd.f32 %v192, %v268
    %v272 = vxor.u32 %v271, 2147483648
    %v273 = vmul.f32 %v272, 1.442695
    %v274 = vpow.pop %v273
    %v275 = vadd.f32 %v274, 1.0
    %v276 = vrcp.pop %v275
    %v277 = vmul.f32 1.0, %v276
    %v278 = vtanh.pop %v271
    %v279 = vld [vmem:[#allocation3] sm:$0xff]
    %281 = vrot.lane.b32.xlu0 %v279, 32
    %v282 = vpop.permute.xlu0 %281
    %v284 = vmul.f32 %v277, %v282
    %286 = vrot.lane.b32.xlu0 %v278, 64
    %v287 = vpop.permute.xlu0 %286
    %v289 = vmul.f32 %v277, %v287
    %291 = vrot.lane.b32.xlu0 %v289, 32
    %v292 = vpop.permute.xlu0 %291
    %v294 = vadd.f32 %v284, %v292
    %v295 = vtanh.pop %v294
    %297 = vrot.lane.b32.xlu0 %v295, 64
    %v298 = vpop.permute.xlu0 %297
    %v300 = vmul.f32 %v277, %v298
    %302 = vrot.lane.b32.xlu0 %v294, 96
    %v303 = vpop.permute.xlu0 %302
    %305 = vst.msk [vmem:[#allocation3] sm:$0xff] %vm76, %v303
    %307 = vrot.lane.b32.xlu0 %v300, 32
    %v308 = vpop.permute.xlu0 %307
    %310 = vst.msk [vmem:[#allocation2] sm:$0xff] %vm76, %v308
    %s311 = scalar_lea.vmem %s2, 8
    %312 = vst.msk [vmem:[%s311] sm:$0xff] %vm76, %v308
    %s313 = scalar_lea.vmem %s0, 16
    %v314 = vld [vmem:[%s313] sm:$0xff]
    %v315 = vld [vmem:[#allocation2] sm:$0xff]
    %v316 = vld [vmem:[#allocation4] sm:$0xff]
    %v317 = vld [vmem:[#allocation4 + $0x8] sm:$0xff]
    %v318 = vld [vmem:[#allocation4 + $0x10] sm:$0xff]
    %v319 = vld [vmem:[#allocation4 + $0x18] sm:$0xff]
    %v321 = vsel %vm76, %v315, 0
    %323 = vmatprep.subr.mxu0 0.0
    %324 = vmatpush1.msra.mxu0 %v316
    %325 = vmatprep.subr.mxu0 0.0
    %326 = vmatpush1.msra.mxu0 %v317
    %327 = vmatprep.subr.mxu0 0.0
    %328 = vmatpush1.msra.mxu0 %v318
    %329 = vmatprep.subr.mxu0 0.0
    %330 = vmatpush1.msra.mxu0 %v319
    %331 = vmatprep.subr.mxu0 0.0
    %332 = vmatpush1.msra.mxu0 0.0
    %333 = vmatprep.subr.mxu0 0.0
    %334 = vmatpush1.msra.mxu0 0.0
    %335 = vmatprep.subr.mxu0 0.0
    %336 = vmatpush1.msra.mxu0 0.0
    %337 = vmatprep.subr.mxu0 0.0
    %338 = vmatpush1.msra.mxu0 0.0
    %339 = vmatprep.subr.mxu0 0.0
    %340 = vmatpush1.msra.mxu0 0.0
    %341 = vmatprep.subr.mxu0 0.0
    %342 = vmatpush1.msra.mxu0 0.0
    %343 = vmatprep.subr.mxu0 0.0
    %344 = vmatpush1.msra.mxu0 0.0
    %345 = vmatprep.subr.mxu0 0.0
    %346 = vmatpush1.msra.mxu0 0.0
    %347 = vmatprep.subr.mxu0 0.0
    %348 = vmatpush1.msra.mxu0 0.0
    %349 = vmatprep.subr.mxu0 0.0
    %350 = vmatpush1.msra.mxu0 0.0
    %351 = vmatprep.subr.mxu0 0.0
    %352 = vmatpush1.msra.mxu0 0.0
    %353 = vmatprep.subr.mxu0 0.0
    %354 = vmatpush1.msra.mxu0 0.0
    %355 = vmatprep.subr.mxu0 0.0
    %356 = vmatpush1.msra.mxu0 0.0
    %357 = vmatprep.subr.mxu0 0.0
    %358 = vmatpush1.msra.mxu0 0.0
    %359 = vmatprep.subr.mxu0 0.0
    %360 = vmatpush1.msra.mxu0 0.0
    %361 = vmatprep.subr.mxu0 0.0
    %362 = vmatpush1.msra.mxu0 0.0
    %363 = vmatprep.subr.mxu0 0.0
    %364 = vmatpush1.msra.mxu0 0.0
    %365 = vmatprep.subr.mxu0 0.0
    %366 = vmatpush1.msra.mxu0 0.0
    %367 = vmatprep.subr.mxu0 0.0
    %368 = vmatpush1.msra.mxu0 0.0
    %369 = vmatprep.subr.mxu0 0.0
    %370 = vmatpush1.msra.mxu0 0.0
    %371 = vmatprep.subr.mxu0 0.0
    %372 = vmatpush1.msra.mxu0 0.0
    %373 = vmatprep.subr.mxu0 0.0
    %374 = vmatpush1.msra.mxu0 0.0
    %375 = vmatprep.subr.mxu0 0.0
    %376 = vmatpush1.msra.mxu0 0.0
    %377 = vmatprep.subr.mxu0 0.0
    %378 = vmatpush1.msra.mxu0 0.0
    %379 = vmatprep.subr.mxu0 0.0
    %380 = vmatpush1.msra.mxu0 0.0
    %381 = vmatprep.subr.mxu0 0.0
    %382 = vmatpush1.msra.mxu0 0.0
    %383 = vmatprep.subr.mxu0 0.0
    %384 = vmatpush1.msra.mxu0 0.0
    %385 = vmatprep.subr.mxu0 0.0
    %386 = vmatpush1.msra.mxu0 0.0
    %387 = vmatprep.mubr.f32.mxu0 0.0
    %388 = vmatmul.mubr.f32.gmra.mrb[0].mxu0 %v321
    %v389 = vpop.f32.mrb[0].mxu0
    %v390 = vadd.f32 0.0, %v389
    %v391 = vpop.f32.mrb[0].mxu0
    %392 = vdwg.mxu0
    %v393 = vadd.f32 %v314, %v390
    %v394 = vxor.u32 %v393, 2147483648
    %v395 = vmul.f32 %v394, 1.442695
    %v396 = vpow.pop %v395
    %v397 = vadd.f32 %v396, 1.0
    %v398 = vrcp.pop %v397
    %v399 = vmul.f32 1.0, %v398
    %v400 = vtanh.pop %v393
    %v401 = vld [vmem:[#allocation3] sm:$0xff]
    %403 = vrot.lane.b32.xlu0 %v401, 32
    %v404 = vpop.permute.xlu0 %403
    %v406 = vmul.f32 %v399, %v404
    %408 = vrot.lane.b32.xlu0 %v400, 64
    %v409 = vpop.permute.xlu0 %408
    %v411 = vmul.f32 %v399, %v409
    %413 = vrot.lane.b32.xlu0 %v411, 32
    %v414 = vpop.permute.xlu0 %413
    %v416 = vadd.f32 %v406, %v414
    %v417 = vtanh.pop %v416
    %419 = vrot.lane.b32.xlu0 %v417, 64
    %v420 = vpop.permute.xlu0 %419
    %v422 = vmul.f32 %v399, %v420
    %424 = vrot.lane.b32.xlu0 %v416, 96
    %v425 = vpop.permute.xlu0 %424
    %427 = vst.msk [vmem:[#allocation3] sm:$0xff] %vm76, %v425
    %429 = vrot.lane.b32.xlu0 %v422, 32
    %v430 = vpop.permute.xlu0 %429
    %432 = vst.msk [vmem:[#allocation2] sm:$0xff] %vm76, %v430
    %s433 = scalar_lea.vmem %s2, 16
    %434 = vst.msk [vmem:[%s433] sm:$0xff] %vm76, %v430
    %s435 = scalar_lea.vmem %s0, 24
    %v436 = vld [vmem:[%s435] sm:$0xff]
    %v437 = vld [vmem:[#allocation2] sm:$0xff]
    %v438 = vld [vmem:[#allocation4] sm:$0xff]
    %v439 = vld [vmem:[#allocation4 + $0x8] sm:$0xff]
    %v440 = vld [vmem:[#allocation4 + $0x10] sm:$0xff]
    %v441 = vld [vmem:[#allocation4 + $0x18] sm:$0xff]
    %v443 = vsel %vm76, %v437, 0
    %445 = vmatprep.subr.mxu0 0.0
    %446 = vmatpush1.msra.mxu0 %v438
    %447 = vmatprep.subr.mxu0 0.0
    %448 = vmatpush1.msra.mxu0 %v439
    %449 = vmatprep.subr.mxu0 0.0
    %450 = vmatpush1.msra.mxu0 %v440
    %451 = vmatprep.subr.mxu0 0.0
    %452 = vmatpush1.msra.mxu0 %v441
    %453 = vmatprep.subr.mxu0 0.0
    %454 = vmatpush1.msra.mxu0 0.0
    %455 = vmatprep.subr.mxu0 0.0
    %456 = vmatpush1.msra.mxu0 0.0
    %457 = vmatprep.subr.mxu0 0.0
    %458 = vmatpush1.msra.mxu0 0.0
    %459 = vmatprep.subr.mxu0 0.0
    %460 = vmatpush1.msra.mxu0 0.0
    %461 = vmatprep.subr.mxu0 0.0
    %462 = vmatpush1.msra.mxu0 0.0
    %463 = vmatprep.subr.mxu0 0.0
    %464 = vmatpush1.msra.mxu0 0.0
    %465 = vmatprep.subr.mxu0 0.0
    %466 = vmatpush1.msra.mxu0 0.0
    %467 = vmatprep.subr.mxu0 0.0
    %468 = vmatpush1.msra.mxu0 0.0
    %469 = vmatprep.subr.mxu0 0.0
    %470 = vmatpush1.msra.mxu0 0.0
    %471 = vmatprep.subr.mxu0 0.0
    %472 = vmatpush1.msra.mxu0 0.0
    %473 = vmatprep.subr.mxu0 0.0
    %474 = vmatpush1.msra.mxu0 0.0
    %475 = vmatprep.subr.mxu0 0.0
    %476 = vmatpush1.msra.mxu0 0.0
    %477 = vmatprep.subr.mxu0 0.0
    %478 = vmatpush1.msra.mxu0 0.0
    %479 = vmatprep.subr.mxu0 0.0
    %480 = vmatpush1.msra.mxu0 0.0
    %481 = vmatprep.subr.mxu0 0.0
    %482 = vmatpush1.msra.mxu0 0.0
    %483 = vmatprep.subr.mxu0 0.0
    %484 = vmatpush1.msra.mxu0 0.0
    %485 = vmatprep.subr.mxu0 0.0
    %486 = vmatpush1.msra.mxu0 0.0
    %487 = vmatprep.subr.mxu0 0.0
    %488 = vmatpush1.msra.mxu0 0.0
    %489 = vmatprep.subr.mxu0 0.0
    %490 = vmatpush1.msra.mxu0 0.0
    %491 = vmatprep.subr.mxu0 0.0
    %492 = vmatpush1.msra.mxu0 0.0
    %493 = vmatprep.subr.mxu0 0.0
    %494 = vmatpush1.msra.mxu0 0.0
    %495 = vmatprep.subr.mxu0 0.0
    %496 = vmatpush1.msra.mxu0 0.0
    %497 = vmatprep.subr.mxu0 0.0
    %498 = vmatpush1.msra.mxu0 0.0
    %499 = vmatprep.subr.mxu0 0.0
    %500 = vmatpush1.msra.mxu0 0.0
    %501 = vmatprep.subr.mxu0 0.0
    %502 = vmatpush1.msra.mxu0 0.0
    %503 = vmatprep.subr.mxu0 0.0
    %504 = vmatpush1.msra.mxu0 0.0
    %505 = vmatprep.subr.mxu0 0.0
    %506 = vmatpush1.msra.mxu0 0.0
    %507 = vmatprep.subr.mxu0 0.0
    %508 = vmatpush1.msra.mxu0 0.0
    %509 = vmatprep.mubr.f32.mxu0 0.0
    %510 = vmatmul.mubr.f32.gmra.mrb[0].mxu0 %v443
    %v511 = vpop.f32.mrb[0].mxu0
    %v512 = vadd.f32 0.0, %v511
    %v513 = vpop.f32.mrb[0].mxu0
    %514 = vdwg.mxu0
    %v515 = vadd.f32 %v436, %v512
    %v516 = vxor.u32 %v515, 2147483648
    %v517 = vmul.f32 %v516, 1.442695
    %v518 = vpow.pop %v517
    %v519 = vadd.f32 %v518, 1.0
    %v520 = vrcp.pop %v519
    %v521 = vmul.f32 1.0, %v520
    %v522 = vtanh.pop %v515
    %v523 = vld [vmem:[#allocation3] sm:$0xff]
    %525 = vrot.lane.b32.xlu0 %v523, 32
    %v526 = vpop.permute.xlu0 %525
    %v528 = vmul.f32 %v521, %v526
    %530 = vrot.lane.b32.xlu0 %v522, 64
    %v531 = vpop.permute.xlu0 %530
    %v533 = vmul.f32 %v521, %v531
    %535 = vrot.lane.b32.xlu0 %v533, 32
    %v536 = vpop.permute.xlu0 %535
    %v538 = vadd.f32 %v528, %v536
    %v539 = vtanh.pop %v538
    %541 = vrot.lane.b32.xlu0 %v539, 64
    %v542 = vpop.permute.xlu0 %541
    %v544 = vmul.f32 %v521, %v542
    %546 = vrot.lane.b32.xlu0 %v538, 96
    %v547 = vpop.permute.xlu0 %546
    %549 = vst.msk [vmem:[#allocation3] sm:$0xff] %vm76, %v547
    %551 = vrot.lane.b32.xlu0 %v544, 32
    %v552 = vpop.permute.xlu0 %551
    %554 = vst.msk [vmem:[#allocation2] sm:$0xff] %vm76, %v552
    %s555 = scalar_lea.vmem %s2, 24
    %556 = vst.msk [vmem:[%s555] sm:$0xff] %vm76, %v552
    %s557 = scalar_lea.vmem %s0, 32
    %v558 = vld [vmem:[%s557] sm:$0xff]
    %v559 = vld [vmem:[#allocation2] sm:$0xff]
    %v560 = vld [vmem:[#allocation4] sm:$0xff]
    %v561 = vld [vmem:[#allocation4 + $0x8] sm:$0xff]
    %v562 = vld [vmem:[#allocation4 + $0x10] sm:$0xff]
    %v563 = vld [vmem:[#allocation4 + $0x18] sm:$0xff]
    %v565 = vsel %vm76, %v559, 0
    %567 = vmatprep.subr.mxu0 0.0
    %568 = vmatpush1.msra.mxu0 %v560
    %569 = vmatprep.subr.mxu0 0.0
    %570 = vmatpush1.msra.mxu0 %v561
    %571 = vmatprep.subr.mxu0 0.0
    %572 = vmatpush1.msra.mxu0 %v562
    %573 = vmatprep.subr.mxu0 0.0
    %574 = vmatpush1.msra.mxu0 %v563
    %575 = vmatprep.subr.mxu0 0.0
    %576 = vmatpush1.msra.mxu0 0.0
    %577 = vmatprep.subr.mxu0 0.0
    %578 = vmatpush1.msra.mxu0 0.0
    %579 = vmatprep.subr.mxu0 0.0
    %580 = vmatpush1.msra.mxu0 0.0
    %581 = vmatprep.subr.mxu0 0.0
    %582 = vmatpush1.msra.mxu0 0.0
    %583 = vmatprep.subr.mxu0 0.0
    %584 = vmatpush1.msra.mxu0 0.0
    %585 = vmatprep.subr.mxu0 0.0
    %586 = vmatpush1.msra.mxu0 0.0
    %587 = vmatprep.subr.mxu0 0.0
    %588 = vmatpush1.msra.mxu0 0.0
    %589 = vmatprep.subr.mxu0 0.0
    %590 = vmatpush1.msra.mxu0 0.0
    %591 = vmatprep.subr.mxu0 0.0
    %592 = vmatpush1.msra.mxu0 0.0
    %593 = vmatprep.subr.mxu0 0.0
    %594 = vmatpush1.msra.mxu0 0.0
    %595 = vmatprep.subr.mxu0 0.0
    %596 = vmatpush1.msra.mxu0 0.0
    %597 = vmatprep.subr.mxu0 0.0
    %598 = vmatpush1.msra.mxu0 0.0
    %599 = vmatprep.subr.mxu0 0.0
    %600 = vmatpush1.msra.mxu0 0.0
    %601 = vmatprep.subr.mxu0 0.0
    %602 = vmatpush1.msra.mxu0 0.0
    %603 = vmatprep.subr.mxu0 0.0
    %604 = vmatpush1.msra.mxu0 0.0
    %605 = vmatprep.subr.mxu0 0.0
    %606 = vmatpush1.msra.mxu0 0.0
    %607 = vmatprep.subr.mxu0 0.0
    %608 = vmatpush1.msra.mxu0 0.0
    %609 = vmatprep.subr.mxu0 0.0
    %610 = vmatpush1.msra.mxu0 0.0
    %611 = vmatprep.subr.mxu0 0.0
    %612 = vmatpush1.msra.mxu0 0.0
    %613 = vmatprep.subr.mxu0 0.0
    %614 = vmatpush1.msra.mxu0 0.0
    %615 = vmatprep.subr.mxu0 0.0
    %616 = vmatpush1.msra.mxu0 0.0
    %617 = vmatprep.subr.mxu0 0.0
    %618 = vmatpush1.msra.mxu0 0.0
    %619 = vmatprep.subr.mxu0 0.0
    %620 = vmatpush1.msra.mxu0 0.0
    %621 = vmatprep.subr.mxu0 0.0
    %622 = vmatpush1.msra.mxu0 0.0
    %623 = vmatprep.subr.mxu0 0.0
    %624 = vmatpush1.msra.mxu0 0.0
    %625 = vmatprep.subr.mxu0 0.0
    %626 = vmatpush1.msra.mxu0 0.0
    %627 = vmatprep.subr.mxu0 0.0
    %628 = vmatpush1.msra.mxu0 0.0
    %629 = vmatprep.subr.mxu0 0.0
    %630 = vmatpush1.msra.mxu0 0.0
    %631 = vmatprep.mubr.f32.mxu0 0.0
    %632 = vmatmul.mubr.f32.gmra.mrb[0].mxu0 %v565
    %v633 = vpop.f32.mrb[0].mxu0
    %v634 = vadd.f32 0.0, %v633
    %v635 = vpop.f32.mrb[0].mxu0
    %636 = vdwg.mxu0
    %v637 = vadd.f32 %v558, %v634
    %v638 = vxor.u32 %v637, 2147483648
    %v639 = vmul.f32 %v638, 1.442695
    %v640 = vpow.pop %v639
    %v641 = vadd.f32 %v640, 1.0
    %v642 = vrcp.pop %v641
    %v643 = vmul.f32 1.0, %v642
    %v644 = vtanh.pop %v637
    %v645 = vld [vmem:[#allocation3] sm:$0xff]
    %647 = vrot.lane.b32.xlu0 %v645, 32
    %v648 = vpop.permute.xlu0 %647
    %v650 = vmul.f32 %v643, %v648
    %652 = vrot.lane.b32.xlu0 %v644, 64
    %v653 = vpop.permute.xlu0 %652
    %v655 = vmul.f32 %v643, %v653
    %657 = vrot.lane.b32.xlu0 %v655, 32
    %v658 = vpop.permute.xlu0 %657
    %v660 = vadd.f32 %v650, %v658
    %v661 = vtanh.pop %v660
    %663 = vrot.lane.b32.xlu0 %v661, 64
    %v664 = vpop.permute.xlu0 %663
    %v666 = vmul.f32 %v643, %v664
    %668 = vrot.lane.b32.xlu0 %v660, 96
    %v669 = vpop.permute.xlu0 %668
    %671 = vst.msk [vmem:[#allocation3] sm:$0xff] %vm76, %v669
    %673 = vrot.lane.b32.xlu0 %v666, 32
    %v674 = vpop.permute.xlu0 %673
    %676 = vst.msk [vmem:[#allocation2] sm:$0xff] %vm76, %v674
    %s677 = scalar_lea.vmem %s2, 32
    %678 = vst.msk [vmem:[%s677] sm:$0xff] %vm76, %v674
    %s679 = scalar_lea.vmem %s0, 40
    %v680 = vld [vmem:[%s679] sm:$0xff]
    %v681 = vld [vmem:[#allocation2] sm:$0xff]
    %v682 = vld [vmem:[#allocation4] sm:$0xff]
    %v683 = vld [vmem:[#allocation4 + $0x8] sm:$0xff]
    %v684 = vld [vmem:[#allocation4 + $0x10] sm:$0xff]
    %v685 = vld [vmem:[#allocation4 + $0x18] sm:$0xff]
    %v687 = vsel %vm76, %v681, 0
    %689 = vmatprep.subr.mxu0 0.0
    %690 = vmatpush1.msra.mxu0 %v682
    %691 = vmatprep.subr.mxu0 0.0
    %692 = vmatpush1.msra.mxu0 %v683
    %693 = vmatprep.subr.mxu0 0.0
    %694 = vmatpush1.msra.mxu0 %v684
    %695 = vmatprep.subr.mxu0 0.0
    %696 = vmatpush1.msra.mxu0 %v685
    %697 = vmatprep.subr.mxu0 0.0
    %698 = vmatpush1.msra.mxu0 0.0
    %699 = vmatprep.subr.mxu0 0.0
    %700 = vmatpush1.msra.mxu0 0.0
    %701 = vmatprep.subr.mxu0 0.0
    %702 = vmatpush1.msra.mxu0 0.0
    %703 = vmatprep.subr.mxu0 0.0
    %704 = vmatpush1.msra.mxu0 0.0
    %705 = vmatprep.subr.mxu0 0.0
    %706 = vmatpush1.msra.mxu0 0.0
    %707 = vmatprep.subr.mxu0 0.0
    %708 = vmatpush1.msra.mxu0 0.0
    %709 = vmatprep.subr.mxu0 0.0
    %710 = vmatpush1.msra.mxu0 0.0
    %711 = vmatprep.subr.mxu0 0.0
    %712 = vmatpush1.msra.mxu0 0.0
    %713 = vmatprep.subr.mxu0 0.0
    %714 = vmatpush1.msra.mxu0 0.0
    %715 = vmatprep.subr.mxu0 0.0
    %716 = vmatpush1.msra.mxu0 0.0
    %717 = vmatprep.subr.mxu0 0.0
    %718 = vmatpush1.msra.mxu0 0.0
    %719 = vmatprep.subr.mxu0 0.0
    %720 = vmatpush1.msra.mxu0 0.0
    %721 = vmatprep.subr.mxu0 0.0
    %722 = vmatpush1.msra.mxu0 0.0
    %723 = vmatprep.subr.mxu0 0.0
    %724 = vmatpush1.msra.mxu0 0.0
    %725 = vmatprep.subr.mxu0 0.0
    %726 = vmatpush1.msra.mxu0 0.0
    %727 = vmatprep.subr.mxu0 0.0
    %728 = vmatpush1.msra.mxu0 0.0
    %729 = vmatprep.subr.mxu0 0.0
    %730 = vmatpush1.msra.mxu0 0.0
    %731 = vmatprep.subr.mxu0 0.0
    %732 = vmatpush1.msra.mxu0 0.0
    %733 = vmatprep.subr.mxu0 0.0
    %734 = vmatpush1.msra.mxu0 0.0
    %735 = vmatprep.subr.mxu0 0.0
    %736 = vmatpush1.msra.mxu0 0.0
    %737 = vmatprep.subr.mxu0 0.0
    %738 = vmatpush1.msra.mxu0 0.0
    %739 = vmatprep.subr.mxu0 0.0
    %740 = vmatpush1.msra.mxu0 0.0
    %741 = vmatprep.subr.mxu0 0.0
    %742 = vmatpush1.msra.mxu0 0.0
    %743 = vmatprep.subr.mxu0 0.0
    %744 = vmatpush1.msra.mxu0 0.0
    %745 = vmatprep.subr.mxu0 0.0
    %746 = vmatpush1.msra.mxu0 0.0
    %747 = vmatprep.subr.mxu0 0.0
    %748 = vmatpush1.msra.mxu0 0.0
    %749 = vmatprep.subr.mxu0 0.0
    %750 = vmatpush1.msra.mxu0 0.0
    %751 = vmatprep.subr.mxu0 0.0
    %752 = vmatpush1.msra.mxu0 0.0
    %753 = vmatprep.mubr.f32.mxu0 0.0
    %754 = vmatmul.mubr.f32.gmra.mrb[0].mxu0 %v687
    %v755 = vpop.f32.mrb[0].mxu0
    %v756 = vadd.f32 0.0, %v755
    %v757 = vpop.f32.mrb[0].mxu0
    %758 = vdwg.mxu0
    %v759 = vadd.f32 %v680, %v756
    %v760 = vxor.u32 %v759, 2147483648
    %v761 = vmul.f32 %v760, 1.442695
    %v762 = vpow.pop %v761
    %v763 = vadd.f32 %v762, 1.0
    %v764 = vrcp.pop %v763
    %v765 = vmul.f32 1.0, %v764
    %v766 = vtanh.pop %v759
    %v767 = vld [vmem:[#allocation3] sm:$0xff]
    %769 = vrot.lane.b32.xlu0 %v767, 32
    %v770 = vpop.permute.xlu0 %769
    %v772 = vmul.f32 %v765, %v770
    %774 = vrot.lane.b32.xlu0 %v766, 64
    %v775 = vpop.permute.xlu0 %774
    %v777 = vmul.f32 %v765, %v775
    %779 = vrot.lane.b32.xlu0 %v777, 32
    %v780 = vpop.permute.xlu0 %779
    %v782 = vadd.f32 %v772, %v780
    %v783 = vtanh.pop %v782
    %785 = vrot.lane.b32.xlu0 %v783, 64
    %v786 = vpop.permute.xlu0 %785
    %v788 = vmul.f32 %v765, %v786
    %790 = vrot.lane.b32.xlu0 %v782, 96
    %v791 = vpop.permute.xlu0 %790
    %793 = vst.msk [vmem:[#allocation3] sm:$0xff] %vm76, %v791
    %795 = vrot.lane.b32.xlu0 %v788, 32
    %v796 = vpop.permute.xlu0 %795
    %798 = vst.msk [vmem:[#allocation2] sm:$0xff] %vm76, %v796
    %s799 = scalar_lea.vmem %s2, 40
    %800 = vst.msk [vmem:[%s799] sm:$0xff] %vm76, %v796
    %s801 = scalar_lea.vmem %s0, 48
    %v802 = vld [vmem:[%s801] sm:$0xff]
    %v803 = vld [vmem:[#allocation2] sm:$0xff]
    %v804 = vld [vmem:[#allocation4] sm:$0xff]
    %v805 = vld [vmem:[#allocation4 + $0x8] sm:$0xff]
    %v806 = vld [vmem:[#allocation4 + $0x10] sm:$0xff]
    %v807 = vld [vmem:[#allocation4 + $0x18] sm:$0xff]
    %v809 = vsel %vm76, %v803, 0
    %811 = vmatprep.subr.mxu0 0.0
    %812 = vmatpush1.msra.mxu0 %v804
    %813 = vmatprep.subr.mxu0 0.0
    %814 = vmatpush1.msra.mxu0 %v805
    %815 = vmatprep.subr.mxu0 0.0
    %816 = vmatpush1.msra.mxu0 %v806
    %817 = vmatprep.subr.mxu0 0.0
    %818 = vmatpush1.msra.mxu0 %v807
    %819 = vmatprep.subr.mxu0 0.0
    %820 = vmatpush1.msra.mxu0 0.0
    %821 = vmatprep.subr.mxu0 0.0
    %822 = vmatpush1.msra.mxu0 0.0
    %823 = vmatprep.subr.mxu0 0.0
    %824 = vmatpush1.msra.mxu0 0.0
    %825 = vmatprep.subr.mxu0 0.0
    %826 = vmatpush1.msra.mxu0 0.0
    %827 = vmatprep.subr.mxu0 0.0
    %828 = vmatpush1.msra.mxu0 0.0
    %829 = vmatprep.subr.mxu0 0.0
    %830 = vmatpush1.msra.mxu0 0.0
    %831 = vmatprep.subr.mxu0 0.0
    %832 = vmatpush1.msra.mxu0 0.0
    %833 = vmatprep.subr.mxu0 0.0
    %834 = vmatpush1.msra.mxu0 0.0
    %835 = vmatprep.subr.mxu0 0.0
    %836 = vmatpush1.msra.mxu0 0.0
    %837 = vmatprep.subr.mxu0 0.0
    %838 = vmatpush1.msra.mxu0 0.0
    %839 = vmatprep.subr.mxu0 0.0
    %840 = vmatpush1.msra.mxu0 0.0
    %841 = vmatprep.subr.mxu0 0.0
    %842 = vmatpush1.msra.mxu0 0.0
    %843 = vmatprep.subr.mxu0 0.0
    %844 = vmatpush1.msra.mxu0 0.0
    %845 = vmatprep.subr.mxu0 0.0
    %846 = vmatpush1.msra.mxu0 0.0
    %847 = vmatprep.subr.mxu0 0.0
    %848 = vmatpush1.msra.mxu0 0.0
    %849 = vmatprep.subr.mxu0 0.0
    %850 = vmatpush1.msra.mxu0 0.0
    %851 = vmatprep.subr.mxu0 0.0
    %852 = vmatpush1.msra.mxu0 0.0
    %853 = vmatprep.subr.mxu0 0.0
    %854 = vmatpush1.msra.mxu0 0.0
    %855 = vmatprep.subr.mxu0 0.0
    %856 = vmatpush1.msra.mxu0 0.0
    %857 = vmatprep.subr.mxu0 0.0
    %858 = vmatpush1.msra.mxu0 0.0
    %859 = vmatprep.subr.mxu0 0.0
    %860 = vmatpush1.msra.mxu0 0.0
    %861 = vmatprep.subr.mxu0 0.0
    %862 = vmatpush1.msra.mxu0 0.0
    %863 = vmatprep.subr.mxu0 0.0
    %864 = vmatpush1.msra.mxu0 0.0
    %865 = vmatprep.subr.mxu0 0.0
    %866 = vmatpush1.msra.mxu0 0.0
    %867 = vmatprep.subr.mxu0 0.0
    %868 = vmatpush1.msra.mxu0 0.0
    %869 = vmatprep.subr.mxu0 0.0
    %870 = vmatpush1.msra.mxu0 0.0
    %871 = vmatprep.subr.mxu0 0.0
    %872 = vmatpush1.msra.mxu0 0.0
    %873 = vmatprep.subr.mxu0 0.0
    %874 = vmatpush1.msra.mxu0 0.0
    %875 = vmatprep.mubr.f32.mxu0 0.0
    %876 = vmatmul.mubr.f32.gmra.mrb[0].mxu0 %v809
    %v877 = vpop.f32.mrb[0].mxu0
    %v878 = vadd.f32 0.0, %v877
    %v879 = vpop.f32.mrb[0].mxu0
    %880 = vdwg.mxu0
    %v881 = vadd.f32 %v802, %v878
    %v882 = vxor.u32 %v881, 2147483648
    %v883 = vmul.f32 %v882, 1.442695
    %v884 = vpow.pop %v883
    %v885 = vadd.f32 %v884, 1.0
    %v886 = vrcp.pop %v885
    %v887 = vmul.f32 1.0, %v886
    %v888 = vtanh.pop %v881
    %v889 = vld [vmem:[#allocation3] sm:$0xff]
    %891 = vrot.lane.b32.xlu0 %v889, 32
    %v892 = vpop.permute.xlu0 %891
    %v894 = vmul.f32 %v887, %v892
    %896 = vrot.lane.b32.xlu0 %v888, 64
    %v897 = vpop.permute.xlu0 %896
    %v899 = vmul.f32 %v887, %v897
    %901 = vrot.lane.b32.xlu0 %v899, 32
    %v902 = vpop.permute.xlu0 %901
    %v904 = vadd.f32 %v894, %v902
    %v905 = vtanh.pop %v904
    %907 = vrot.lane.b32.xlu0 %v905, 64
    %v908 = vpop.permute.xlu0 %907
    %v910 = vmul.f32 %v887, %v908
    %912 = vrot.lane.b32.xlu0 %v904, 96
    %v913 = vpop.permute.xlu0 %912
    %915 = vst.msk [vmem:[#allocation3] sm:$0xff] %vm76, %v913
    %917 = vrot.lane.b32.xlu0 %v910, 32
    %v918 = vpop.permute.xlu0 %917
    %920 = vst.msk [vmem:[#allocation2] sm:$0xff] %vm76, %v918
    %s921 = scalar_lea.vmem %s2, 48
    %922 = vst.msk [vmem:[%s921] sm:$0xff] %vm76, %v918
    %s923 = scalar_lea.vmem %s0, 56
    %v924 = vld [vmem:[%s923] sm:$0xff]
    %v925 = vld [vmem:[#allocation2] sm:$0xff]
    %v926 = vld [vmem:[#allocation4] sm:$0xff]
    %v927 = vld [vmem:[#allocation4 + $0x8] sm:$0xff]
    %v928 = vld [vmem:[#allocation4 + $0x10] sm:$0xff]
    %v929 = vld [vmem:[#allocation4 + $0x18] sm:$0xff]
    %v931 = vsel %vm76, %v925, 0
    %933 = vmatprep.subr.mxu0 0.0
    %934 = vmatpush1.msra.mxu0 %v926
    %935 = vmatprep.subr.mxu0 0.0
    %936 = vmatpush1.msra.mxu0 %v927
    %937 = vmatprep.subr.mxu0 0.0
    %938 = vmatpush1.msra.mxu0 %v928
    %939 = vmatprep.subr.mxu0 0.0
    %940 = vmatpush1.msra.mxu0 %v929
    %941 = vmatprep.subr.mxu0 0.0
    %942 = vmatpush1.msra.mxu0 0.0
    %943 = vmatprep.subr.mxu0 0.0
    %944 = vmatpush1.msra.mxu0 0.0
    %945 = vmatprep.subr.mxu0 0.0
    %946 = vmatpush1.msra.mxu0 0.0
    %947 = vmatprep.subr.mxu0 0.0
    %948 = vmatpush1.msra.mxu0 0.0
    %949 = vmatprep.subr.mxu0 0.0
    %950 = vmatpush1.msra.mxu0 0.0
    %951 = vmatprep.subr.mxu0 0.0
    %952 = vmatpush1.msra.mxu0 0.0
    %953 = vmatprep.subr.mxu0 0.0
    %954 = vmatpush1.msra.mxu0 0.0
    %955 = vmatprep.subr.mxu0 0.0
    %956 = vmatpush1.msra.mxu0 0.0
    %957 = vmatprep.subr.mxu0 0.0
    %958 = vmatpush1.msra.mxu0 0.0
    %959 = vmatprep.subr.mxu0 0.0
    %960 = vmatpush1.msra.mxu0 0.0
    %961 = vmatprep.subr.mxu0 0.0
    %962 = vmatpush1.msra.mxu0 0.0
    %963 = vmatprep.subr.mxu0 0.0
    %964 = vmatpush1.msra.mxu0 0.0
    %965 = vmatprep.subr.mxu0 0.0
    %966 = vmatpush1.msra.mxu0 0.0
    %967 = vmatprep.subr.mxu0 0.0
    %968 = vmatpush1.msra.mxu0 0.0
    %969 = vmatprep.subr.mxu0 0.0
    %970 = vmatpush1.msra.mxu0 0.0
    %971 = vmatprep.subr.mxu0 0.0
    %972 = vmatpush1.msra.mxu0 0.0
    %973 = vmatprep.subr.mxu0 0.0
    %974 = vmatpush1.msra.mxu0 0.0
    %975 = vmatprep.subr.mxu0 0.0
    %976 = vmatpush1.msra.mxu0 0.0
    %977 = vmatprep.subr.mxu0 0.0
    %978 = vmatpush1.msra.mxu0 0.0
    %979 = vmatprep.subr.mxu0 0.0
    %980 = vmatpush1.msra.mxu0 0.0
    %981 = vmatprep.subr.mxu0 0.0
    %982 = vmatpush1.msra.mxu0 0.0
    %983 = vmatprep.subr.mxu0 0.0
    %984 = vmatpush1.msra.mxu0 0.0
    %985 = vmatprep.subr.mxu0 0.0
    %986 = vmatpush1.msra.mxu0 0.0
    %987 = vmatprep.subr.mxu0 0.0
    %988 = vmatpush1.msra.mxu0 0.0
    %989 = vmatprep.subr.mxu0 0.0
    %990 = vmatpush1.msra.mxu0 0.0
    %991 = vmatprep.subr.mxu0 0.0
    %992 = vmatpush1.msra.mxu0 0.0
    %993 = vmatprep.subr.mxu0 0.0
    %994 = vmatpush1.msra.mxu0 0.0
    %995 = vmatprep.subr.mxu0 0.0
    %996 = vmatpush1.msra.mxu0 0.0
    %997 = vmatprep.mubr.f32.mxu0 0.0
    %998 = vmatmul.mubr.f32.gmra.mrb[0].mxu0 %v931
    %v999 = vpop.f32.mrb[0].mxu0
    %v1000 = vadd.f32 0.0, %v999
    %v1001 = vpop.f32.mrb[0].mxu0
    %1002 = vdwg.mxu0
    %v1003 = vadd.f32 %v924, %v1000
    %v1004 = vxor.u32 %v1003, 2147483648
    %v1005 = vmul.f32 %v1004, 1.442695
    %v1006 = vpow.pop %v1005
    %v1007 = vadd.f32 %v1006, 1.0
    %v1008 = vrcp.pop %v1007
    %v1009 = vmul.f32 1.0, %v1008
    %v1010 = vtanh.pop %v1003
    %v1011 = vld [vmem:[#allocation3] sm:$0xff]
    %1013 = vrot.lane.b32.xlu0 %v1011, 32
    %v1014 = vpop.permute.xlu0 %1013
    %v1016 = vmul.f32 %v1009, %v1014
    %1018 = vrot.lane.b32.xlu0 %v1010, 64
    %v1019 = vpop.permute.xlu0 %1018
    %v1021 = vmul.f32 %v1009, %v1019
    %1023 = vrot.lane.b32.xlu0 %v1021, 32
    %v1024 = vpop.permute.xlu0 %1023
    %v1026 = vadd.f32 %v1016, %v1024
    %v1027 = vtanh.pop %v1026
    %1029 = vrot.lane.b32.xlu0 %v1027, 64
    %v1030 = vpop.permute.xlu0 %1029
    %v1032 = vmul.f32 %v1009, %v1030
    %1034 = vrot.lane.b32.xlu0 %v1026, 96
    %v1035 = vpop.permute.xlu0 %1034
    %1037 = vst.msk [vmem:[#allocation3] sm:$0xff] %vm76, %v1035
    %1039 = vrot.lane.b32.xlu0 %v1032, 32
    %v1040 = vpop.permute.xlu0 %1039
    %1042 = vst.msk [vmem:[#allocation2] sm:$0xff] %vm76, %v1040
    %s1043 = scalar_lea.vmem %s2, 56
    %1044 = vst.msk [vmem:[%s1043] sm:$0xff] %vm76, %v1040
    // Predicated region
    $region44: #{_rnn_forward_impl.6} parent=1 // pred_check
      %p1045 = pneg %p12
    $region45: #{_rnn_forward_impl.6} parent=1 // pred_check_branch
      %1047 = sbr.rel (%p1045) target = $region47
    $region46: #{_rnn_forward_impl.6} parent=1 // pred_region
      %v1048 = vld [vmem:[#allocation2] sm:$0xff]
      %1049 = vst.msk [vmem:[#allocation6] sm:$0xff] %vm76, %v1048
    $region47: #{_rnn_forward_impl.6} parent=1 // pred_fallthru
      _
    // Predicated region
    $region48: #{_rnn_forward_impl.6} parent=1 // pred_check
      _
    $region49: #{_rnn_forward_impl.6} parent=1 // pred_check_branch
      %1051 = sbr.rel (0) target = $region51
    $region50: #{_rnn_forward_impl.6} parent=1 // pred_region
      _
    $region51: #{_rnn_forward_impl.6} parent=1 // pred_fallthru
      _
    // Predicated region
    $region52: #{_rnn_forward_impl.6} parent=1 // pred_check
      _
    $region53: #{_rnn_forward_impl.6} parent=1 // pred_check_branch
      %1053 = sbr.rel (0) target = $region55
    $region54: #{_rnn_forward_impl.6} parent=1 // pred_region
      %s1055 = ssub.s32 128, 128
      %1056 = vsyncadd [#allocation7], %s1055
      %s1058 = sshll.u32 [#allocation6], 4
      %s1059 = int_to_ptr.vmem [resolvable:$true] %s1058
      %1061 = dma.vmem_to_hbm [thread:$0]  %s1059, 128, %s3, [#allocation7]
    $region55: #{_rnn_forward_impl.6} parent=1 // pred_fallthru
      _
    // Predicated region
    $region56: #{_rnn_forward_impl.6} parent=1 // pred_check
      _
    $region57: #{_rnn_forward_impl.6} parent=1 // pred_check_branch
      %1063 = sbr.rel (0) target = $region59
    $region58: #{_rnn_forward_impl.6} parent=1 // pred_region
      _
    $region59: #{_rnn_forward_impl.6} parent=1 // pred_fallthru
      _
    // Predicated region
    $region60: #{_rnn_forward_impl.6} parent=1 // pred_check
      _
    $region61: #{_rnn_forward_impl.6} parent=1 // pred_check_branch
      %1065 = sbr.rel (0) target = $region63
    $region62: #{_rnn_forward_impl.6} parent=1 // pred_region
      %1066 = dma.done [#allocation7], 128
    $region63: #{_rnn_forward_impl.6} parent=1 // pred_fallthru
      _
    %1067 = vsyncpa [#allocation7], 1
  %1068 = vsyncmov [#allocation5]
  %s1069 = vpop.sfrf %1068
  %p1070 = scmp.eq.s32.totalorder %s1069, 0
  %p1071 = pneg %p1070
  %1073 = shalt.err (%p1071)

// kernel: _rnn_forward_impl.8
$region0: #{_rnn_forward_impl.8}
  #allocation0 [shape = 'u32[]', space=smem, size = 0x4, offset = 0x4, fixed_abs, tag = 'smem constant byte address 0x4 - core index']
  #allocation1 [shape = 'u32[144,128]{1,0:T(1,128)}', space=vmem, size = 0x12000, scoped, tag = 'internal scratch']
  #allocation2 [shape = 'f32[8,32]{1,0:T(8,128)}', space=vmem, size = 0x1000, scoped, tag = 'scratch operand']
  #allocation3 [shape = 'f32[8,32]{1,0:T(8,128)}', space=vmem, size = 0x1000, scoped, tag = 'scratch operand']
  #allocation4 [shape = 'f32[32,128]{1,0:T(8,128)}', space=vmem, size = 0x4000, scoped, tag = 'scratch operand']
  #allocation5 [shape = 's32[1]{0}', space=sflag, size = 0x4, scoped, tag = 'scratch operand']
  #allocation8 [shape = 's32[]', space=sflag, size = 0x4, offset = 0, fixed_abs, tag = 'sflag constant byte address 0x0 - dummy sync flag']
  %s0 = inlined_call_operand.vmem [shape: f32[8,8,128], index: 0, kind: input, shape index: {}]
  %s1 = inlined_call_operand.vmem [shape: f32[32,128], index: 1, kind: input, shape index: {}]
  %s2 = inlined_call_operand.hbm [shape: f32[8,8,32], index: 2, kind: output, shape index: {0}]
  %s3 = inlined_call_operand.vmem [shape: f32[8,32], index: 3, kind: output, shape index: {1}]
  %4 = xla_tuple %s2, %s3
  %s5 = sld [smem:[#allocation0]]
  $region64: #{_rnn_forward_impl.8} parent=0
    _
  %s7 = ssub.s32 1, %s5
  %s8 = scalar_select 0, %s7, %s5
  $region1: #{_rnn_forward_impl.8} parent=0
    #allocation6 [shape = 'u8[32768]{0}', space=vmem, size = 0x8000, scoped, tag = 'output window, operand 0, single buffered']
    #allocation7 [shape = 's32[1]{0}', space=sflag, size = 0x4, scoped, tag = 'scoped memory for _rnn_forward_impl.8']
    %9 = vsyncpa [#allocation7], 0
    // Predicated region
    $region2: #{_rnn_forward_impl.8} parent=1 // pred_check
      _
    $region3: #{_rnn_forward_impl.8} parent=1 // pred_check_branch
      %11 = sbr.rel (0) target = $region5
    $region4: #{_rnn_forward_impl.8} parent=1 // pred_region
      _
    $region5: #{_rnn_forward_impl.8} parent=1 // pred_fallthru
      _
    %p12 = scmp.eq.s32.totalorder 0, 0
    // Predicated region
    $region6: #{_rnn_forward_impl.8} parent=1 // pred_check
      %p13 = pneg %p12
    $region7: #{_rnn_forward_impl.8} parent=1 // pred_check_branch
      %15 = sbr.rel (%p13) target = $region9
    $region8: #{_rnn_forward_impl.8} parent=1 // pred_region
      %p17 = scmp.lt.u32.totalorder 32, 8
      %p18 = pneg %p17
      // Predicated region
      $region10: #{_rnn_forward_impl.8} parent=8 // pred_check
        _
      $region11: #{_rnn_forward_impl.8} parent=8 // pred_check_branch
        %20 = sbr.rel (%p17) target = $region13
      $region12: #{_rnn_forward_impl.8} parent=8 // pred_region
        %s35 = sand.u32 32, 7
        %p36 = scmp.eq.s32.totalorder %s35, 0
        // Predicated region
        $region25: #{_rnn_forward_impl.8} parent=12 // pred_check
          %p37 = pneg %p36
        $region26: #{_rnn_forward_impl.8} parent=12 // pred_check_branch
          %39 = sbr.rel (%p37) target = $region28
        $region27: #{_rnn_forward_impl.8} parent=12 // pred_region
          loop: start=0, step=1, limit=1
          $region29: #{_rnn_forward_impl.8} parent=27 // loop_pre_header
            _
          $region30: #{_rnn_forward_impl.8} parent=27 // loop_header
            %s41 = sphi 0, %s45
            %p42 = scmp.ge.s32.totalorder %s41, 1
            %s46 = sphi %s1, %s1
            %s47 = sphi [#allocation4], [#allocation4]
          $region31: #{_rnn_forward_impl.8} parent=27 // loop_header_branch
            %44 = sbr.rel (%p42) target = $region35
          $region32: #{_rnn_forward_impl.8} parent=27 // loop_body
            %v48 = vld [vmem:[%s46] sm:$0xff]
            %49 = vst [vmem:[%s47] sm:$0xff] %v48
            %v50 = vld [vmem:[%s46 + $0x8] sm:$0xff]
            %51 = vst [vmem:[%s47 + $0x8] sm:$0xff] %v50
            %v52 = vld [vmem:[%s46 + $0x10] sm:$0xff]
            %53 = vst [vmem:[%s47 + $0x10] sm:$0xff] %v52
            %v54 = vld [vmem:[%s46 + $0x18] sm:$0xff]
            %55 = vst [vmem:[%s47 + $0x18] sm:$0xff] %v54
          $region33: #{_rnn_forward_impl.8} parent=27 // loop_footer
            %s45 = sadd.s32 1, %s41
          $region34: #{_rnn_forward_impl.8} parent=27 // loop_footer_branch
            %40 = sbr.rel target = $region30
          $region35: #{_rnn_forward_impl.8} parent=27 // loop_exit
            _
        $region28: #{_rnn_forward_impl.8} parent=12 // pred_fallthru
          _
        %p56 = pneg %p36
        // Predicated region
        $region36: #{_rnn_forward_impl.8} parent=12 // pred_check
          _
        $region37: #{_rnn_forward_impl.8} parent=12 // pred_check_branch
          %58 = sbr.rel (%p36) target = $region39
        $region38: #{_rnn_forward_impl.8} parent=12 // pred_region
          %s59 = sand.u32 32, 7
        $region39: #{_rnn_forward_impl.8} parent=12 // pred_fallthru
          _
      $region13: #{_rnn_forward_impl.8} parent=8 // pred_fallthru
        _
      // Predicated region
      $region14: #{_rnn_forward_impl.8} parent=8 // pred_check
        %p21 = pneg %p17
      $region15: #{_rnn_forward_impl.8} parent=8 // pred_check_branch
        %23 = sbr.rel (%p21) target = $region17
      $region16: #{_rnn_forward_impl.8} parent=8 // pred_region
        %s24 = sshllo.u32 0, 32
        loop: start=0, step=1, limit=1
        $region18: #{_rnn_forward_impl.8} parent=16 // loop_pre_header
          _
        $region19: #{_rnn_forward_impl.8} parent=16 // loop_header
          %s26 = sphi 0, %s30
          %p27 = scmp.ge.s32.totalorder %s26, 1
          %s31 = sphi %s1, %s1
          %s32 = sphi [#allocation4], [#allocation4]
        $region20: #{_rnn_forward_impl.8} parent=16 // loop_header_branch
          %29 = sbr.rel (%p27) target = $region24
        $region21: #{_rnn_forward_impl.8} parent=16 // loop_body
          %v33 = vld [vmem:[%s31] sm:%s24]
          %34 = vst [vmem:[%s32] sm:%s24] %v33
        $region22: #{_rnn_forward_impl.8} parent=16 // loop_footer
          %s30 = sadd.s32 1, %s26
        $region23: #{_rnn_forward_impl.8} parent=16 // loop_footer_branch
          %25 = sbr.rel target = $region19
        $region24: #{_rnn_forward_impl.8} parent=16 // loop_exit
          _
      $region17: #{_rnn_forward_impl.8} parent=8 // pred_fallthru
        _
      // Predicated region
      $region40: #{_rnn_forward_impl.8} parent=8 // pred_check
        _
      $region41: #{_rnn_forward_impl.8} parent=8 // pred_check_branch
        %62 = sbr.rel (0) target = $region43
      $region42: #{_rnn_forward_impl.8} parent=8 // pred_region
        %63 = vsyncadd [#allocation5], 512
      $region43: #{_rnn_forward_impl.8} parent=8 // pred_fallthru
        _
      %s64 = smul.u32 32, 1
      %s65 = sshll.u32 %s64, 4
      %66 = dma.done [#allocation5], %s65
      %vm67 = vcmask 261120
      %68 = vst.msk [vmem:[#allocation2] sm:$0xff] %vm67, 0.0
      %69 = vst.msk [vmem:[#allocation3] sm:$0xff] %vm67, 0.0
    $region9: #{_rnn_forward_impl.8} parent=1 // pred_fallthru
      _
    %v70 = vld [vmem:[%s0] sm:$0xff]
    %v71 = vld [vmem:[#allocation2] sm:$0xff]
    %v72 = vld [vmem:[#allocation4] sm:$0xff]
    %v73 = vld [vmem:[#allocation4 + $0x8] sm:$0xff]
    %v74 = vld [vmem:[#allocation4 + $0x10] sm:$0xff]
    %v75 = vld [vmem:[#allocation4 + $0x18] sm:$0xff]
    %vm76 = vcmask 261120
    %v78 = vsel %vm76, %v71, 0
    %80 = vmatprep.subr.mxu0 0.0
    %81 = vmatpush1.msra.mxu0 %v72
    %82 = vmatprep.subr.mxu0 0.0
    %83 = vmatpush1.msra.mxu0 %v73
    %84 = vmatprep.subr.mxu0 0.0
    %85 = vmatpush1.msra.mxu0 %v74
    %86 = vmatprep.subr.mxu0 0.0
    %87 = vmatpush1.msra.mxu0 %v75
    %88 = vmatprep.subr.mxu0 0.0
    %89 = vmatpush1.msra.mxu0 0.0
    %90 = vmatprep.subr.mxu0 0.0
    %91 = vmatpush1.msra.mxu0 0.0
    %92 = vmatprep.subr.mxu0 0.0
    %93 = vmatpush1.msra.mxu0 0.0
    %94 = vmatprep.subr.mxu0 0.0
    %95 = vmatpush1.msra.mxu0 0.0
    %96 = vmatprep.subr.mxu0 0.0
    %97 = vmatpush1.msra.mxu0 0.0
    %98 = vmatprep.subr.mxu0 0.0
    %99 = vmatpush1.msra.mxu0 0.0
    %100 = vmatprep.subr.mxu0 0.0
    %101 = vmatpush1.msra.mxu0 0.0
    %102 = vmatprep.subr.mxu0 0.0
    %103 = vmatpush1.msra.mxu0 0.0
    %104 = vmatprep.subr.mxu0 0.0
    %105 = vmatpush1.msra.mxu0 0.0
    %106 = vmatprep.subr.mxu0 0.0
    %107 = vmatpush1.msra.mxu0 0.0
    %108 = vmatprep.subr.mxu0 0.0
    %109 = vmatpush1.msra.mxu0 0.0
    %110 = vmatprep.subr.mxu0 0.0
    %111 = vmatpush1.msra.mxu0 0.0
    %112 = vmatprep.subr.mxu0 0.0
    %113 = vmatpush1.msra.mxu0 0.0
    %114 = vmatprep.subr.mxu0 0.0
    %115 = vmatpush1.msra.mxu0 0.0
    %116 = vmatprep.subr.mxu0 0.0
    %117 = vmatpush1.msra.mxu0 0.0
    %118 = vmatprep.subr.mxu0 0.0
    %119 = vmatpush1.msra.mxu0 0.0
    %120 = vmatprep.subr.mxu0 0.0
    %121 = vmatpush1.msra.mxu0 0.0
    %122 = vmatprep.subr.mxu0 0.0
    %123 = vmatpush1.msra.mxu0 0.0
    %124 = vmatprep.subr.mxu0 0.0
    %125 = vmatpush1.msra.mxu0 0.0
    %126 = vmatprep.subr.mxu0 0.0
    %127 = vmatpush1.msra.mxu0 0.0
    %128 = vmatprep.subr.mxu0 0.0
    %129 = vmatpush1.msra.mxu0 0.0
    %130 = vmatprep.subr.mxu0 0.0
    %131 = vmatpush1.msra.mxu0 0.0
    %132 = vmatprep.subr.mxu0 0.0
    %133 = vmatpush1.msra.mxu0 0.0
    %134 = vmatprep.subr.mxu0 0.0
    %135 = vmatpush1.msra.mxu0 0.0
    %136 = vmatprep.subr.mxu0 0.0
    %137 = vmatpush1.msra.mxu0 0.0
    %138 = vmatprep.subr.mxu0 0.0
    %139 = vmatpush1.msra.mxu0 0.0
    %140 = vmatprep.subr.mxu0 0.0
    %141 = vmatpush1.msra.mxu0 0.0
    %142 = vmatprep.subr.mxu0 0.0
    %143 = vmatpush1.msra.mxu0 0.0
    %144 = vmatprep.mubr.f32.mxu0 0.0
    %145 = vmatmul.mubr.f32.gmra.mrb[0].mxu0 %v78
    %v146 = vpop.f32.mrb[0].mxu0
    %v147 = vadd.f32 0.0, %v146
    %v148 = vpop.f32.mrb[0].mxu0
    %149 = vdwg.mxu0
    %v150 = vadd.f32 %v70, %v147
    %v151 = vxor.u32 %v150, 2147483648
    %v152 = vmul.f32 %v151, 1.442695
    %v153 = vpow.pop %v152
    %v154 = vadd.f32 %v153, 1.0
    %v155 = vrcp.pop %v154
    %v156 = vmul.f32 1.0, %v155
    %v157 = vtanh.pop %v150
    %v158 = vld [vmem:[#allocation3] sm:$0xff]
    %160 = vrot.lane.b32.xlu0 %v158, 32
    %v161 = vpop.permute.xlu0 %160
    %v163 = vmul.f32 %v156, %v161
    %165 = vrot.lane.b32.xlu0 %v157, 64
    %v166 = vpop.permute.xlu0 %165
    %v168 = vmul.f32 %v156, %v166
    %170 = vrot.lane.b32.xlu0 %v168, 32
    %v171 = vpop.permute.xlu0 %170
    %v173 = vadd.f32 %v163, %v171
    %v174 = vtanh.pop %v173
    %176 = vrot.lane.b32.xlu0 %v174, 64
    %v177 = vpop.permute.xlu0 %176
    %v179 = vmul.f32 %v156, %v177
    %181 = vrot.lane.b32.xlu0 %v173, 96
    %v182 = vpop.permute.xlu0 %181
    %184 = vst.msk [vmem:[#allocation3] sm:$0xff] %vm76, %v182
    %186 = vrot.lane.b32.xlu0 %v179, 32
    %v187 = vpop.permute.xlu0 %186
    %189 = vst.msk [vmem:[#allocation2] sm:$0xff] %vm76, %v187
    %190 = vst.msk [vmem:[#allocation6] sm:$0xff] %vm76, %v187
    %s191 = scalar_lea.vmem %s0, 8
    %v192 = vld [vmem:[%s191] sm:$0xff]
    %v193 = vld [vmem:[#allocation2] sm:$0xff]
    %v194 = vld [vmem:[#allocation4] sm:$0xff]
    %v195 = vld [vmem:[#allocation4 + $0x8] sm:$0xff]
    %v196 = vld [vmem:[#allocation4 + $0x10] sm:$0xff]
    %v197 = vld [vmem:[#allocation4 + $0x18] sm:$0xff]
    %v199 = vsel %vm76, %v193, 0
    %201 = vmatprep.subr.mxu0 0.0
    %202 = vmatpush1.msra.mxu0 %v194
    %203 = vmatprep.subr.mxu0 0.0
    %204 = vmatpush1.msra.mxu0 %v195
    %205 = vmatprep.subr.mxu0 0.0
    %206 = vmatpush1.msra.mxu0 %v196
    %207 = vmatprep.subr.mxu0 0.0
    %208 = vmatpush1.msra.mxu0 %v197
    %209 = vmatprep.subr.mxu0 0.0
    %210 = vmatpush1.msra.mxu0 0.0
    %211 = vmatprep.subr.mxu0 0.0
    %212 = vmatpush1.msra.mxu0 0.0
    %213 = vmatprep.subr.mxu0 0.0
    %214 = vmatpush1.msra.mxu0 0.0
    %215 = vmatprep.subr.mxu0 0.0
    %216 = vmatpush1.msra.mxu0 0.0
    %217 = vmatprep.subr.mxu0 0.0
    %218 = vmatpush1.msra.mxu0 0.0
    %219 = vmatprep.subr.mxu0 0.0
    %220 = vmatpush1.msra.mxu0 0.0
    %221 = vmatprep.subr.mxu0 0.0
    %222 = vmatpush1.msra.mxu0 0.0
    %223 = vmatprep.subr.mxu0 0.0
    %224 = vmatpush1.msra.mxu0 0.0
    %225 = vmatprep.subr.mxu0 0.0
    %226 = vmatpush1.msra.mxu0 0.0
    %227 = vmatprep.subr.mxu0 0.0
    %228 = vmatpush1.msra.mxu0 0.0
    %229 = vmatprep.subr.mxu0 0.0
    %230 = vmatpush1.msra.mxu0 0.0
    %231 = vmatprep.subr.mxu0 0.0
    %232 = vmatpush1.msra.mxu0 0.0
    %233 = vmatprep.subr.mxu0 0.0
    %234 = vmatpush1.msra.mxu0 0.0
    %235 = vmatprep.subr.mxu0 0.0
    %236 = vmatpush1.msra.mxu0 0.0
    %237 = vmatprep.subr.mxu0 0.0
    %238 = vmatpush1.msra.mxu0 0.0
    %239 = vmatprep.subr.mxu0 0.0
    %240 = vmatpush1.msra.mxu0 0.0
    %241 = vmatprep.subr.mxu0 0.0
    %242 = vmatpush1.msra.mxu0 0.0
    %243 = vmatprep.subr.mxu0 0.0
    %244 = vmatpush1.msra.mxu0 0.0
    %245 = vmatprep.subr.mxu0 0.0
    %246 = vmatpush1.msra.mxu0 0.0
    %247 = vmatprep.subr.mxu0 0.0
    %248 = vmatpush1.msra.mxu0 0.0
    %249 = vmatprep.subr.mxu0 0.0
    %250 = vmatpush1.msra.mxu0 0.0
    %251 = vmatprep.subr.mxu0 0.0
    %252 = vmatpush1.msra.mxu0 0.0
    %253 = vmatprep.subr.mxu0 0.0
    %254 = vmatpush1.msra.mxu0 0.0
    %255 = vmatprep.subr.mxu0 0.0
    %256 = vmatpush1.msra.mxu0 0.0
    %257 = vmatprep.subr.mxu0 0.0
    %258 = vmatpush1.msra.mxu0 0.0
    %259 = vmatprep.subr.mxu0 0.0
    %260 = vmatpush1.msra.mxu0 0.0
    %261 = vmatprep.subr.mxu0 0.0
    %262 = vmatpush1.msra.mxu0 0.0
    %263 = vmatprep.subr.mxu0 0.0
    %264 = vmatpush1.msra.mxu0 0.0
    %265 = vmatprep.mubr.f32.mxu0 0.0
    %266 = vmatmul.mubr.f32.gmra.mrb[0].mxu0 %v199
    %v267 = vpop.f32.mrb[0].mxu0
    %v268 = vadd.f32 0.0, %v267
    %v269 = vpop.f32.mrb[0].mxu0
    %270 = vdwg.mxu0
    %v271 = vadd.f32 %v192, %v268
    %v272 = vxor.u32 %v271, 2147483648
    %v273 = vmul.f32 %v272, 1.442695
    %v274 = vpow.pop %v273
    %v275 = vadd.f32 %v274, 1.0
    %v276 = vrcp.pop %v275
    %v277 = vmul.f32 1.0, %v276
    %v278 = vtanh.pop %v271
    %v279 = vld [vmem:[#allocation3] sm:$0xff]
    %281 = vrot.lane.b32.xlu0 %v279, 32
    %v282 = vpop.permute.xlu0 %281
    %v284 = vmul.f32 %v277, %v282
    %286 = vrot.lane.b32.xlu0 %v278, 64
    %v287 = vpop.permute.xlu0 %286
    %v289 = vmul.f32 %v277, %v287
    %291 = vrot.lane.b32.xlu0 %v289, 32
    %v292 = vpop.permute.xlu0 %291
    %v294 = vadd.f32 %v284, %v292
    %v295 = vtanh.pop %v294
    %297 = vrot.lane.b32.xlu0 %v295, 64
    %v298 = vpop.permute.xlu0 %297
    %v300 = vmul.f32 %v277, %v298
    %302 = vrot.lane.b32.xlu0 %v294, 96
    %v303 = vpop.permute.xlu0 %302
    %305 = vst.msk [vmem:[#allocation3] sm:$0xff] %vm76, %v303
    %307 = vrot.lane.b32.xlu0 %v300, 32
    %v308 = vpop.permute.xlu0 %307
    %310 = vst.msk [vmem:[#allocation2] sm:$0xff] %vm76, %v308
    %s311 = scalar_lea.vmem [#allocation6], 8
    %312 = vst.msk [vmem:[%s311] sm:$0xff] %vm76, %v308
    %s313 = scalar_lea.vmem %s0, 16
    %v314 = vld [vmem:[%s313] sm:$0xff]
    %v315 = vld [vmem:[#allocation2] sm:$0xff]
    %v316 = vld [vmem:[#allocation4] sm:$0xff]
    %v317 = vld [vmem:[#allocation4 + $0x8] sm:$0xff]
    %v318 = vld [vmem:[#allocation4 + $0x10] sm:$0xff]
    %v319 = vld [vmem:[#allocation4 + $0x18] sm:$0xff]
    %v321 = vsel %vm76, %v315, 0
    %323 = vmatprep.subr.mxu0 0.0
    %324 = vmatpush1.msra.mxu0 %v316
    %325 = vmatprep.subr.mxu0 0.0
    %326 = vmatpush1.msra.mxu0 %v317
    %327 = vmatprep.subr.mxu0 0.0
    %328 = vmatpush1.msra.mxu0 %v318
    %329 = vmatprep.subr.mxu0 0.0
    %330 = vmatpush1.msra.mxu0 %v319
    %331 = vmatprep.subr.mxu0 0.0
    %332 = vmatpush1.msra.mxu0 0.0
    %333 = vmatprep.subr.mxu0 0.0
    %334 = vmatpush1.msra.mxu0 0.0
    %335 = vmatprep.subr.mxu0 0.0
    %336 = vmatpush1.msra.mxu0 0.0
    %337 = vmatprep.subr.mxu0 0.0
    %338 = vmatpush1.msra.mxu0 0.0
    %339 = vmatprep.subr.mxu0 0.0
    %340 = vmatpush1.msra.mxu0 0.0
    %341 = vmatprep.subr.mxu0 0.0
    %342 = vmatpush1.msra.mxu0 0.0
    %343 = vmatprep.subr.mxu0 0.0
    %344 = vmatpush1.msra.mxu0 0.0
    %345 = vmatprep.subr.mxu0 0.0
    %346 = vmatpush1.msra.mxu0 0.0
    %347 = vmatprep.subr.mxu0 0.0
    %348 = vmatpush1.msra.mxu0 0.0
    %349 = vmatprep.subr.mxu0 0.0
    %350 = vmatpush1.msra.mxu0 0.0
    %351 = vmatprep.subr.mxu0 0.0
    %352 = vmatpush1.msra.mxu0 0.0
    %353 = vmatprep.subr.mxu0 0.0
    %354 = vmatpush1.msra.mxu0 0.0
    %355 = vmatprep.subr.mxu0 0.0
    %356 = vmatpush1.msra.mxu0 0.0
    %357 = vmatprep.subr.mxu0 0.0
    %358 = vmatpush1.msra.mxu0 0.0
    %359 = vmatprep.subr.mxu0 0.0
    %360 = vmatpush1.msra.mxu0 0.0
    %361 = vmatprep.subr.mxu0 0.0
    %362 = vmatpush1.msra.mxu0 0.0
    %363 = vmatprep.subr.mxu0 0.0
    %364 = vmatpush1.msra.mxu0 0.0
    %365 = vmatprep.subr.mxu0 0.0
    %366 = vmatpush1.msra.mxu0 0.0
    %367 = vmatprep.subr.mxu0 0.0
    %368 = vmatpush1.msra.mxu0 0.0
    %369 = vmatprep.subr.mxu0 0.0
    %370 = vmatpush1.msra.mxu0 0.0
    %371 = vmatprep.subr.mxu0 0.0
    %372 = vmatpush1.msra.mxu0 0.0
    %373 = vmatprep.subr.mxu0 0.0
    %374 = vmatpush1.msra.mxu0 0.0
    %375 = vmatprep.subr.mxu0 0.0
    %376 = vmatpush1.msra.mxu0 0.0
    %377 = vmatprep.subr.mxu0 0.0
    %378 = vmatpush1.msra.mxu0 0.0
    %379 = vmatprep.subr.mxu0 0.0
    %380 = vmatpush1.msra.mxu0 0.0
    %381 = vmatprep.subr.mxu0 0.0
    %382 = vmatpush1.msra.mxu0 0.0
    %383 = vmatprep.subr.mxu0 0.0
    %384 = vmatpush1.msra.mxu0 0.0
    %385 = vmatprep.subr.mxu0 0.0
    %386 = vmatpush1.msra.mxu0 0.0
    %387 = vmatprep.mubr.f32.mxu0 0.0
    %388 = vmatmul.mubr.f32.gmra.mrb[0].mxu0 %v321
    %v389 = vpop.f32.mrb[0].mxu0
    %v390 = vadd.f32 0.0, %v389
    %v391 = vpop.f32.mrb[0].mxu0
    %392 = vdwg.mxu0
    %v393 = vadd.f32 %v314, %v390
    %v394 = vxor.u32 %v393, 2147483648
    %v395 = vmul.f32 %v394, 1.442695
    %v396 = vpow.pop %v395
    %v397 = vadd.f32 %v396, 1.0
    %v398 = vrcp.pop %v397
    %v399 = vmul.f32 1.0, %v398
    %v400 = vtanh.pop %v393
    %v401 = vld [vmem:[#allocation3] sm:$0xff]
    %403 = vrot.lane.b32.xlu0 %v401, 32
    %v404 = vpop.permute.xlu0 %403
    %v406 = vmul.f32 %v399, %v404
    %408 = vrot.lane.b32.xlu0 %v400, 64
    %v409 = vpop.permute.xlu0 %408
    %v411 = vmul.f32 %v399, %v409
    %413 = vrot.lane.b32.xlu0 %v411, 32
    %v414 = vpop.permute.xlu0 %413
    %v416 = vadd.f32 %v406, %v414
    %v417 = vtanh.pop %v416
    %419 = vrot.lane.b32.xlu0 %v417, 64
    %v420 = vpop.permute.xlu0 %419
    %v422 = vmul.f32 %v399, %v420
    %424 = vrot.lane.b32.xlu0 %v416, 96
    %v425 = vpop.permute.xlu0 %424
    %427 = vst.msk [vmem:[#allocation3] sm:$0xff] %vm76, %v425
    %429 = vrot.lane.b32.xlu0 %v422, 32
    %v430 = vpop.permute.xlu0 %429
    %432 = vst.msk [vmem:[#allocation2] sm:$0xff] %vm76, %v430
    %s433 = scalar_lea.vmem [#allocation6], 16
    %434 = vst.msk [vmem:[%s433] sm:$0xff] %vm76, %v430
    %s435 = scalar_lea.vmem %s0, 24
    %v436 = vld [vmem:[%s435] sm:$0xff]
    %v437 = vld [vmem:[#allocation2] sm:$0xff]
    %v438 = vld [vmem:[#allocation4] sm:$0xff]
    %v439 = vld [vmem:[#allocation4 + $0x8] sm:$0xff]
    %v440 = vld [vmem:[#allocation4 + $0x10] sm:$0xff]
    %v441 = vld [vmem:[#allocation4 + $0x18] sm:$0xff]
    %v443 = vsel %vm76, %v437, 0
    %445 = vmatprep.subr.mxu0 0.0
    %446 = vmatpush1.msra.mxu0 %v438
    %447 = vmatprep.subr.mxu0 0.0
    %448 = vmatpush1.msra.mxu0 %v439
    %449 = vmatprep.subr.mxu0 0.0
    %450 = vmatpush1.msra.mxu0 %v440
    %451 = vmatprep.subr.mxu0 0.0
    %452 = vmatpush1.msra.mxu0 %v441
    %453 = vmatprep.subr.mxu0 0.0
    %454 = vmatpush1.msra.mxu0 0.0
    %455 = vmatprep.subr.mxu0 0.0
    %456 = vmatpush1.msra.mxu0 0.0
    %457 = vmatprep.subr.mxu0 0.0
    %458 = vmatpush1.msra.mxu0 0.0
    %459 = vmatprep.subr.mxu0 0.0
    %460 = vmatpush1.msra.mxu0 0.0
    %461 = vmatprep.subr.mxu0 0.0
    %462 = vmatpush1.msra.mxu0 0.0
    %463 = vmatprep.subr.mxu0 0.0
    %464 = vmatpush1.msra.mxu0 0.0
    %465 = vmatprep.subr.mxu0 0.0
    %466 = vmatpush1.msra.mxu0 0.0
    %467 = vmatprep.subr.mxu0 0.0
    %468 = vmatpush1.msra.mxu0 0.0
    %469 = vmatprep.subr.mxu0 0.0
    %470 = vmatpush1.msra.mxu0 0.0
    %471 = vmatprep.subr.mxu0 0.0
    %472 = vmatpush1.msra.mxu0 0.0
    %473 = vmatprep.subr.mxu0 0.0
    %474 = vmatpush1.msra.mxu0 0.0
    %475 = vmatprep.subr.mxu0 0.0
    %476 = vmatpush1.msra.mxu0 0.0
    %477 = vmatprep.subr.mxu0 0.0
    %478 = vmatpush1.msra.mxu0 0.0
    %479 = vmatprep.subr.mxu0 0.0
    %480 = vmatpush1.msra.mxu0 0.0
    %481 = vmatprep.subr.mxu0 0.0
    %482 = vmatpush1.msra.mxu0 0.0
    %483 = vmatprep.subr.mxu0 0.0
    %484 = vmatpush1.msra.mxu0 0.0
    %485 = vmatprep.subr.mxu0 0.0
    %486 = vmatpush1.msra.mxu0 0.0
    %487 = vmatprep.subr.mxu0 0.0
    %488 = vmatpush1.msra.mxu0 0.0
    %489 = vmatprep.subr.mxu0 0.0
    %490 = vmatpush1.msra.mxu0 0.0
    %491 = vmatprep.subr.mxu0 0.0
    %492 = vmatpush1.msra.mxu0 0.0
    %493 = vmatprep.subr.mxu0 0.0
    %494 = vmatpush1.msra.mxu0 0.0
    %495 = vmatprep.subr.mxu0 0.0
    %496 = vmatpush1.msra.mxu0 0.0
    %497 = vmatprep.subr.mxu0 0.0
    %498 = vmatpush1.msra.mxu0 0.0
    %499 = vmatprep.subr.mxu0 0.0
    %500 = vmatpush1.msra.mxu0 0.0
    %501 = vmatprep.subr.mxu0 0.0
    %502 = vmatpush1.msra.mxu0 0.0
    %503 = vmatprep.subr.mxu0 0.0
    %504 = vmatpush1.msra.mxu0 0.0
    %505 = vmatprep.subr.mxu0 0.0
    %506 = vmatpush1.msra.mxu0 0.0
    %507 = vmatprep.subr.mxu0 0.0
    %508 = vmatpush1.msra.mxu0 0.0
    %509 = vmatprep.mubr.f32.mxu0 0.0
    %510 = vmatmul.mubr.f32.gmra.mrb[0].mxu0 %v443
    %v511 = vpop.f32.mrb[0].mxu0
    %v512 = vadd.f32 0.0, %v511
    %v513 = vpop.f32.mrb[0].mxu0
    %514 = vdwg.mxu0
    %v515 = vadd.f32 %v436, %v512
    %v516 = vxor.u32 %v515, 2147483648
    %v517 = vmul.f32 %v516, 1.442695
    %v518 = vpow.pop %v517
    %v519 = vadd.f32 %v518, 1.0
    %v520 = vrcp.pop %v519
    %v521 = vmul.f32 1.0, %v520
    %v522 = vtanh.pop %v515
    %v523 = vld [vmem:[#allocation3] sm:$0xff]
    %525 = vrot.lane.b32.xlu0 %v523, 32
    %v526 = vpop.permute.xlu0 %525
    %v528 = vmul.f32 %v521, %v526
    %530 = vrot.lane.b32.xlu0 %v522, 64
    %v531 = vpop.permute.xlu0 %530
    %v533 = vmul.f32 %v521, %v531
    %535 = vrot.lane.b32.xlu0 %v533, 32
    %v536 = vpop.permute.xlu0 %535
    %v538 = vadd.f32 %v528, %v536
    %v539 = vtanh.pop %v538
    %541 = vrot.lane.b32.xlu0 %v539, 64
    %v542 = vpop.permute.xlu0 %541
    %v544 = vmul.f32 %v521, %v542
    %546 = vrot.lane.b32.xlu0 %v538, 96
    %v547 = vpop.permute.xlu0 %546
    %549 = vst.msk [vmem:[#allocation3] sm:$0xff] %vm76, %v547
    %551 = vrot.lane.b32.xlu0 %v544, 32
    %v552 = vpop.permute.xlu0 %551
    %554 = vst.msk [vmem:[#allocation2] sm:$0xff] %vm76, %v552
    %s555 = scalar_lea.vmem [#allocation6], 24
    %556 = vst.msk [vmem:[%s555] sm:$0xff] %vm76, %v552
    %s557 = scalar_lea.vmem %s0, 32
    %v558 = vld [vmem:[%s557] sm:$0xff]
    %v559 = vld [vmem:[#allocation2] sm:$0xff]
    %v560 = vld [vmem:[#allocation4] sm:$0xff]
    %v561 = vld [vmem:[#allocation4 + $0x8] sm:$0xff]
    %v562 = vld [vmem:[#allocation4 + $0x10] sm:$0xff]
    %v563 = vld [vmem:[#allocation4 + $0x18] sm:$0xff]
    %v565 = vsel %vm76, %v559, 0
    %567 = vmatprep.subr.mxu0 0.0
    %568 = vmatpush1.msra.mxu0 %v560
    %569 = vmatprep.subr.mxu0 0.0
    %570 = vmatpush1.msra.mxu0 %v561
    %571 = vmatprep.subr.mxu0 0.0
    %572 = vmatpush1.msra.mxu0 %v562
    %573 = vmatprep.subr.mxu0 0.0
    %574 = vmatpush1.msra.mxu0 %v563
    %575 = vmatprep.subr.mxu0 0.0
    %576 = vmatpush1.msra.mxu0 0.0
    %577 = vmatprep.subr.mxu0 0.0
    %578 = vmatpush1.msra.mxu0 0.0
    %579 = vmatprep.subr.mxu0 0.0
    %580 = vmatpush1.msra.mxu0 0.0
    %581 = vmatprep.subr.mxu0 0.0
    %582 = vmatpush1.msra.mxu0 0.0
    %583 = vmatprep.subr.mxu0 0.0
    %584 = vmatpush1.msra.mxu0 0.0
    %585 = vmatprep.subr.mxu0 0.0
    %586 = vmatpush1.msra.mxu0 0.0
    %587 = vmatprep.subr.mxu0 0.0
    %588 = vmatpush1.msra.mxu0 0.0
    %589 = vmatprep.subr.mxu0 0.0
    %590 = vmatpush1.msra.mxu0 0.0
    %591 = vmatprep.subr.mxu0 0.0
    %592 = vmatpush1.msra.mxu0 0.0
    %593 = vmatprep.subr.mxu0 0.0
    %594 = vmatpush1.msra.mxu0 0.0
    %595 = vmatprep.subr.mxu0 0.0
    %596 = vmatpush1.msra.mxu0 0.0
    %597 = vmatprep.subr.mxu0 0.0
    %598 = vmatpush1.msra.mxu0 0.0
    %599 = vmatprep.subr.mxu0 0.0
    %600 = vmatpush1.msra.mxu0 0.0
    %601 = vmatprep.subr.mxu0 0.0
    %602 = vmatpush1.msra.mxu0 0.0
    %603 = vmatprep.subr.mxu0 0.0
    %604 = vmatpush1.msra.mxu0 0.0
    %605 = vmatprep.subr.mxu0 0.0
    %606 = vmatpush1.msra.mxu0 0.0
    %607 = vmatprep.subr.mxu0 0.0
    %608 = vmatpush1.msra.mxu0 0.0
    %609 = vmatprep.subr.mxu0 0.0
    %610 = vmatpush1.msra.mxu0 0.0
    %611 = vmatprep.subr.mxu0 0.0
    %612 = vmatpush1.msra.mxu0 0.0
    %613 = vmatprep.subr.mxu0 0.0
    %614 = vmatpush1.msra.mxu0 0.0
    %615 = vmatprep.subr.mxu0 0.0
    %616 = vmatpush1.msra.mxu0 0.0
    %617 = vmatprep.subr.mxu0 0.0
    %618 = vmatpush1.msra.mxu0 0.0
    %619 = vmatprep.subr.mxu0 0.0
    %620 = vmatpush1.msra.mxu0 0.0
    %621 = vmatprep.subr.mxu0 0.0
    %622 = vmatpush1.msra.mxu0 0.0
    %623 = vmatprep.subr.mxu0 0.0
    %624 = vmatpush1.msra.mxu0 0.0
    %625 = vmatprep.subr.mxu0 0.0
    %626 = vmatpush1.msra.mxu0 0.0
    %627 = vmatprep.subr.mxu0 0.0
    %628 = vmatpush1.msra.mxu0 0.0
    %629 = vmatprep.subr.mxu0 0.0
    %630 = vmatpush1.msra.mxu0 0.0
    %631 = vmatprep.mubr.f32.mxu0 0.0
    %632 = vmatmul.mubr.f32.gmra.mrb[0].mxu0 %v565
    %v633 = vpop.f32.mrb[0].mxu0
    %v634 = vadd.f32 0.0, %v633
    %v635 = vpop.f32.mrb[0].mxu0
    %636 = vdwg.mxu0
    %v637 = vadd.f32 %v558, %v634
    %v638 = vxor.u32 %v637, 2147483648
    %v639 = vmul.f32 %v638, 1.442695
    %v640 = vpow.pop %v639
    %v641 = vadd.f32 %v640, 1.0
    %v642 = vrcp.pop %v641
    %v643 = vmul.f32 1.0, %v642
    %v644 = vtanh.pop %v637
    %v645 = vld [vmem:[#allocation3] sm:$0xff]
    %647 = vrot.lane.b32.xlu0 %v645, 32
    %v648 = vpop.permute.xlu0 %647
    %v650 = vmul.f32 %v643, %v648
    %652 = vrot.lane.b32.xlu0 %v644, 64
    %v653 = vpop.permute.xlu0 %652
    %v655 = vmul.f32 %v643, %v653
    %657 = vrot.lane.b32.xlu0 %v655, 32
    %v658 = vpop.permute.xlu0 %657
    %v660 = vadd.f32 %v650, %v658
    %v661 = vtanh.pop %v660
    %663 = vrot.lane.b32.xlu0 %v661, 64
    %v664 = vpop.permute.xlu0 %663
    %v666 = vmul.f32 %v643, %v664
    %668 = vrot.lane.b32.xlu0 %v660, 96
    %v669 = vpop.permute.xlu0 %668
    %671 = vst.msk [vmem:[#allocation3] sm:$0xff] %vm76, %v669
    %673 = vrot.lane.b32.xlu0 %v666, 32
    %v674 = vpop.permute.xlu0 %673
    %676 = vst.msk [vmem:[#allocation2] sm:$0xff] %vm76, %v674
    %s677 = scalar_lea.vmem [#allocation6], 32
    %678 = vst.msk [vmem:[%s677] sm:$0xff] %vm76, %v674
    %s679 = scalar_lea.vmem %s0, 40
    %v680 = vld [vmem:[%s679] sm:$0xff]
    %v681 = vld [vmem:[#allocation2] sm:$0xff]
    %v682 = vld [vmem:[#allocation4] sm:$0xff]
    %v683 = vld [vmem:[#allocation4 + $0x8] sm:$0xff]
    %v684 = vld [vmem:[#allocation4 + $0x10] sm:$0xff]
    %v685 = vld [vmem:[#allocation4 + $0x18] sm:$0xff]
    %v687 = vsel %vm76, %v681, 0
    %689 = vmatprep.subr.mxu0 0.0
    %690 = vmatpush1.msra.mxu0 %v682
    %691 = vmatprep.subr.mxu0 0.0
    %692 = vmatpush1.msra.mxu0 %v683
    %693 = vmatprep.subr.mxu0 0.0
    %694 = vmatpush1.msra.mxu0 %v684
    %695 = vmatprep.subr.mxu0 0.0
    %696 = vmatpush1.msra.mxu0 %v685
    %697 = vmatprep.subr.mxu0 0.0
    %698 = vmatpush1.msra.mxu0 0.0
    %699 = vmatprep.subr.mxu0 0.0
    %700 = vmatpush1.msra.mxu0 0.0
    %701 = vmatprep.subr.mxu0 0.0
    %702 = vmatpush1.msra.mxu0 0.0
    %703 = vmatprep.subr.mxu0 0.0
    %704 = vmatpush1.msra.mxu0 0.0
    %705 = vmatprep.subr.mxu0 0.0
    %706 = vmatpush1.msra.mxu0 0.0
    %707 = vmatprep.subr.mxu0 0.0
    %708 = vmatpush1.msra.mxu0 0.0
    %709 = vmatprep.subr.mxu0 0.0
    %710 = vmatpush1.msra.mxu0 0.0
    %711 = vmatprep.subr.mxu0 0.0
    %712 = vmatpush1.msra.mxu0 0.0
    %713 = vmatprep.subr.mxu0 0.0
    %714 = vmatpush1.msra.mxu0 0.0
    %715 = vmatprep.subr.mxu0 0.0
    %716 = vmatpush1.msra.mxu0 0.0
    %717 = vmatprep.subr.mxu0 0.0
    %718 = vmatpush1.msra.mxu0 0.0
    %719 = vmatprep.subr.mxu0 0.0
    %720 = vmatpush1.msra.mxu0 0.0
    %721 = vmatprep.subr.mxu0 0.0
    %722 = vmatpush1.msra.mxu0 0.0
    %723 = vmatprep.subr.mxu0 0.0
    %724 = vmatpush1.msra.mxu0 0.0
    %725 = vmatprep.subr.mxu0 0.0
    %726 = vmatpush1.msra.mxu0 0.0
    %727 = vmatprep.subr.mxu0 0.0
    %728 = vmatpush1.msra.mxu0 0.0
    %729 = vmatprep.subr.mxu0 0.0
    %730 = vmatpush1.msra.mxu0 0.0
    %731 = vmatprep.subr.mxu0 0.0
    %732 = vmatpush1.msra.mxu0 0.0
    %733 = vmatprep.subr.mxu0 0.0
    %734 = vmatpush1.msra.mxu0 0.0
    %735 = vmatprep.subr.mxu0 0.0
    %736 = vmatpush1.msra.mxu0 0.0
    %737 = vmatprep.subr.mxu0 0.0
    %738 = vmatpush1.msra.mxu0 0.0
    %739 = vmatprep.subr.mxu0 0.0
    %740 = vmatpush1.msra.mxu0 0.0
    %741 = vmatprep.subr.mxu0 0.0
    %742 = vmatpush1.msra.mxu0 0.0
    %743 = vmatprep.subr.mxu0 0.0
    %744 = vmatpush1.msra.mxu0 0.0
    %745 = vmatprep.subr.mxu0 0.0
    %746 = vmatpush1.msra.mxu0 0.0
    %747 = vmatprep.subr.mxu0 0.0
    %748 = vmatpush1.msra.mxu0 0.0
    %749 = vmatprep.subr.mxu0 0.0
    %750 = vmatpush1.msra.mxu0 0.0
    %751 = vmatprep.subr.mxu0 0.0
    %752 = vmatpush1.msra.mxu0 0.0
    %753 = vmatprep.mubr.f32.mxu0 0.0
    %754 = vmatmul.mubr.f32.gmra.mrb[0].mxu0 %v687
    %v755 = vpop.f32.mrb[0].mxu0
    %v756 = vadd.f32 0.0, %v755
    %v757 = vpop.f32.mrb[0].mxu0
    %758 = vdwg.mxu0
    %v759 = vadd.f32 %v680, %v756
    %v760 = vxor.u32 %v759, 2147483648
    %v761 = vmul.f32 %v760, 1.442695
    %v762 = vpow.pop %v761
    %v763 = vadd.f32 %v762, 1.0
    %v764 = vrcp.pop %v763
    %v765 = vmul.f32 1.0, %v764
    %v766 = vtanh.pop %v759
    %v767 = vld [vmem:[#allocation3] sm:$0xff]
    %769 = vrot.lane.b32.xlu0 %v767, 32
    %v770 = vpop.permute.xlu0 %769
    %v772 = vmul.f32 %v765, %v770
    %774 = vrot.lane.b32.xlu0 %v766, 64
    %v775 = vpop.permute.xlu0 %774
    %v777 = vmul.f32 %v765, %v775
    %779 = vrot.lane.b32.xlu0 %v777, 32
    %v780 = vpop.permute.xlu0 %779
    %v782 = vadd.f32 %v772, %v780
    %v783 = vtanh.pop %v782
    %785 = vrot.lane.b32.xlu0 %v783, 64
    %v786 = vpop.permute.xlu0 %785
    %v788 = vmul.f32 %v765, %v786
    %790 = vrot.lane.b32.xlu0 %v782, 96
    %v791 = vpop.permute.xlu0 %790
    %793 = vst.msk [vmem:[#allocation3] sm:$0xff] %vm76, %v791
    %795 = vrot.lane.b32.xlu0 %v788, 32
    %v796 = vpop.permute.xlu0 %795
    %798 = vst.msk [vmem:[#allocation2] sm:$0xff] %vm76, %v796
    %s799 = scalar_lea.vmem [#allocation6], 40
    %800 = vst.msk [vmem:[%s799] sm:$0xff] %vm76, %v796
    %s801 = scalar_lea.vmem %s0, 48
    %v802 = vld [vmem:[%s801] sm:$0xff]
    %v803 = vld [vmem:[#allocation2] sm:$0xff]
    %v804 = vld [vmem:[#allocation4] sm:$0xff]
    %v805 = vld [vmem:[#allocation4 + $0x8] sm:$0xff]
    %v806 = vld [vmem:[#allocation4 + $0x10] sm:$0xff]
    %v807 = vld [vmem:[#allocation4 + $0x18] sm:$0xff]
    %v809 = vsel %vm76, %v803, 0
    %811 = vmatprep.subr.mxu0 0.0
    %812 = vmatpush1.msra.mxu0 %v804
    %813 = vmatprep.subr.mxu0 0.0
    %814 = vmatpush1.msra.mxu0 %v805
    %815 = vmatprep.subr.mxu0 0.0
    %816 = vmatpush1.msra.mxu0 %v806
    %817 = vmatprep.subr.mxu0 0.0
    %818 = vmatpush1.msra.mxu0 %v807
    %819 = vmatprep.subr.mxu0 0.0
    %820 = vmatpush1.msra.mxu0 0.0
    %821 = vmatprep.subr.mxu0 0.0
    %822 = vmatpush1.msra.mxu0 0.0
    %823 = vmatprep.subr.mxu0 0.0
    %824 = vmatpush1.msra.mxu0 0.0
    %825 = vmatprep.subr.mxu0 0.0
    %826 = vmatpush1.msra.mxu0 0.0
    %827 = vmatprep.subr.mxu0 0.0
    %828 = vmatpush1.msra.mxu0 0.0
    %829 = vmatprep.subr.mxu0 0.0
    %830 = vmatpush1.msra.mxu0 0.0
    %831 = vmatprep.subr.mxu0 0.0
    %832 = vmatpush1.msra.mxu0 0.0
    %833 = vmatprep.subr.mxu0 0.0
    %834 = vmatpush1.msra.mxu0 0.0
    %835 = vmatprep.subr.mxu0 0.0
    %836 = vmatpush1.msra.mxu0 0.0
    %837 = vmatprep.subr.mxu0 0.0
    %838 = vmatpush1.msra.mxu0 0.0
    %839 = vmatprep.subr.mxu0 0.0
    %840 = vmatpush1.msra.mxu0 0.0
    %841 = vmatprep.subr.mxu0 0.0
    %842 = vmatpush1.msra.mxu0 0.0
    %843 = vmatprep.subr.mxu0 0.0
    %844 = vmatpush1.msra.mxu0 0.0
    %845 = vmatprep.subr.mxu0 0.0
    %846 = vmatpush1.msra.mxu0 0.0
    %847 = vmatprep.subr.mxu0 0.0
    %848 = vmatpush1.msra.mxu0 0.0
    %849 = vmatprep.subr.mxu0 0.0
    %850 = vmatpush1.msra.mxu0 0.0
    %851 = vmatprep.subr.mxu0 0.0
    %852 = vmatpush1.msra.mxu0 0.0
    %853 = vmatprep.subr.mxu0 0.0
    %854 = vmatpush1.msra.mxu0 0.0
    %855 = vmatprep.subr.mxu0 0.0
    %856 = vmatpush1.msra.mxu0 0.0
    %857 = vmatprep.subr.mxu0 0.0
    %858 = vmatpush1.msra.mxu0 0.0
    %859 = vmatprep.subr.mxu0 0.0
    %860 = vmatpush1.msra.mxu0 0.0
    %861 = vmatprep.subr.mxu0 0.0
    %862 = vmatpush1.msra.mxu0 0.0
    %863 = vmatprep.subr.mxu0 0.0
    %864 = vmatpush1.msra.mxu0 0.0
    %865 = vmatprep.subr.mxu0 0.0
    %866 = vmatpush1.msra.mxu0 0.0
    %867 = vmatprep.subr.mxu0 0.0
    %868 = vmatpush1.msra.mxu0 0.0
    %869 = vmatprep.subr.mxu0 0.0
    %870 = vmatpush1.msra.mxu0 0.0
    %871 = vmatprep.subr.mxu0 0.0
    %872 = vmatpush1.msra.mxu0 0.0
    %873 = vmatprep.subr.mxu0 0.0
    %874 = vmatpush1.msra.mxu0 0.0
    %875 = vmatprep.mubr.f32.mxu0 0.0
    %876 = vmatmul.mubr.f32.gmra.mrb[0].mxu0 %v809
    %v877 = vpop.f32.mrb[0].mxu0
    %v878 = vadd.f32 0.0, %v877
    %v879 = vpop.f32.mrb[0].mxu0
    %880 = vdwg.mxu0
    %v881 = vadd.f32 %v802, %v878
    %v882 = vxor.u32 %v881, 2147483648
    %v883 = vmul.f32 %v882, 1.442695
    %v884 = vpow.pop %v883
    %v885 = vadd.f32 %v884, 1.0
    %v886 = vrcp.pop %v885
    %v887 = vmul.f32 1.0, %v886
    %v888 = vtanh.pop %v881
    %v889 = vld [vmem:[#allocation3] sm:$0xff]
    %891 = vrot.lane.b32.xlu0 %v889, 32
    %v892 = vpop.permute.xlu0 %891
    %v894 = vmul.f32 %v887, %v892
    %896 = vrot.lane.b32.xlu0 %v888, 64
    %v897 = vpop.permute.xlu0 %896
    %v899 = vmul.f32 %v887, %v897
    %901 = vrot.lane.b32.xlu0 %v899, 32
    %v902 = vpop.permute.xlu0 %901
    %v904 = vadd.f32 %v894, %v902
    %v905 = vtanh.pop %v904
    %907 = vrot.lane.b32.xlu0 %v905, 64
    %v908 = vpop.permute.xlu0 %907
    %v910 = vmul.f32 %v887, %v908
    %912 = vrot.lane.b32.xlu0 %v904, 96
    %v913 = vpop.permute.xlu0 %912
    %915 = vst.msk [vmem:[#allocation3] sm:$0xff] %vm76, %v913
    %917 = vrot.lane.b32.xlu0 %v910, 32
    %v918 = vpop.permute.xlu0 %917
    %920 = vst.msk [vmem:[#allocation2] sm:$0xff] %vm76, %v918
    %s921 = scalar_lea.vmem [#allocation6], 48
    %922 = vst.msk [vmem:[%s921] sm:$0xff] %vm76, %v918
    %s923 = scalar_lea.vmem %s0, 56
    %v924 = vld [vmem:[%s923] sm:$0xff]
    %v925 = vld [vmem:[#allocation2] sm:$0xff]
    %v926 = vld [vmem:[#allocation4] sm:$0xff]
    %v927 = vld [vmem:[#allocation4 + $0x8] sm:$0xff]
    %v928 = vld [vmem:[#allocation4 + $0x10] sm:$0xff]
    %v929 = vld [vmem:[#allocation4 + $0x18] sm:$0xff]
    %v931 = vsel %vm76, %v925, 0
    %933 = vmatprep.subr.mxu0 0.0
    %934 = vmatpush1.msra.mxu0 %v926
    %935 = vmatprep.subr.mxu0 0.0
    %936 = vmatpush1.msra.mxu0 %v927
    %937 = vmatprep.subr.mxu0 0.0
    %938 = vmatpush1.msra.mxu0 %v928
    %939 = vmatprep.subr.mxu0 0.0
    %940 = vmatpush1.msra.mxu0 %v929
    %941 = vmatprep.subr.mxu0 0.0
    %942 = vmatpush1.msra.mxu0 0.0
    %943 = vmatprep.subr.mxu0 0.0
    %944 = vmatpush1.msra.mxu0 0.0
    %945 = vmatprep.subr.mxu0 0.0
    %946 = vmatpush1.msra.mxu0 0.0
    %947 = vmatprep.subr.mxu0 0.0
    %948 = vmatpush1.msra.mxu0 0.0
    %949 = vmatprep.subr.mxu0 0.0
    %950 = vmatpush1.msra.mxu0 0.0
    %951 = vmatprep.subr.mxu0 0.0
    %952 = vmatpush1.msra.mxu0 0.0
    %953 = vmatprep.subr.mxu0 0.0
    %954 = vmatpush1.msra.mxu0 0.0
    %955 = vmatprep.subr.mxu0 0.0
    %956 = vmatpush1.msra.mxu0 0.0
    %957 = vmatprep.subr.mxu0 0.0
    %958 = vmatpush1.msra.mxu0 0.0
    %959 = vmatprep.subr.mxu0 0.0
    %960 = vmatpush1.msra.mxu0 0.0
    %961 = vmatprep.subr.mxu0 0.0
    %962 = vmatpush1.msra.mxu0 0.0
    %963 = vmatprep.subr.mxu0 0.0
    %964 = vmatpush1.msra.mxu0 0.0
    %965 = vmatprep.subr.mxu0 0.0
    %966 = vmatpush1.msra.mxu0 0.0
    %967 = vmatprep.subr.mxu0 0.0
    %968 = vmatpush1.msra.mxu0 0.0
    %969 = vmatprep.subr.mxu0 0.0
    %970 = vmatpush1.msra.mxu0 0.0
    %971 = vmatprep.subr.mxu0 0.0
    %972 = vmatpush1.msra.mxu0 0.0
    %973 = vmatprep.subr.mxu0 0.0
    %974 = vmatpush1.msra.mxu0 0.0
    %975 = vmatprep.subr.mxu0 0.0
    %976 = vmatpush1.msra.mxu0 0.0
    %977 = vmatprep.subr.mxu0 0.0
    %978 = vmatpush1.msra.mxu0 0.0
    %979 = vmatprep.subr.mxu0 0.0
    %980 = vmatpush1.msra.mxu0 0.0
    %981 = vmatprep.subr.mxu0 0.0
    %982 = vmatpush1.msra.mxu0 0.0
    %983 = vmatprep.subr.mxu0 0.0
    %984 = vmatpush1.msra.mxu0 0.0
    %985 = vmatprep.subr.mxu0 0.0
    %986 = vmatpush1.msra.mxu0 0.0
    %987 = vmatprep.subr.mxu0 0.0
    %988 = vmatpush1.msra.mxu0 0.0
    %989 = vmatprep.subr.mxu0 0.0
    %990 = vmatpush1.msra.mxu0 0.0
    %991 = vmatprep.subr.mxu0 0.0
    %992 = vmatpush1.msra.mxu0 0.0
    %993 = vmatprep.subr.mxu0 0.0
    %994 = vmatpush1.msra.mxu0 0.0
    %995 = vmatprep.subr.mxu0 0.0
    %996 = vmatpush1.msra.mxu0 0.0
    %997 = vmatprep.mubr.f32.mxu0 0.0
    %998 = vmatmul.mubr.f32.gmra.mrb[0].mxu0 %v931
    %v999 = vpop.f32.mrb[0].mxu0
    %v1000 = vadd.f32 0.0, %v999
    %v1001 = vpop.f32.mrb[0].mxu0
    %1002 = vdwg.mxu0
    %v1003 = vadd.f32 %v924, %v1000
    %v1004 = vxor.u32 %v1003, 2147483648
    %v1005 = vmul.f32 %v1004, 1.442695
    %v1006 = vpow.pop %v1005
    %v1007 = vadd.f32 %v1006, 1.0
    %v1008 = vrcp.pop %v1007
    %v1009 = vmul.f32 1.0, %v1008
    %v1010 = vtanh.pop %v1003
    %v1011 = vld [vmem:[#allocation3] sm:$0xff]
    %1013 = vrot.lane.b32.xlu0 %v1011, 32
    %v1014 = vpop.permute.xlu0 %1013
    %v1016 = vmul.f32 %v1009, %v1014
    %1018 = vrot.lane.b32.xlu0 %v1010, 64
    %v1019 = vpop.permute.xlu0 %1018
    %v1021 = vmul.f32 %v1009, %v1019
    %1023 = vrot.lane.b32.xlu0 %v1021, 32
    %v1024 = vpop.permute.xlu0 %1023
    %v1026 = vadd.f32 %v1016, %v1024
    %v1027 = vtanh.pop %v1026
    %1029 = vrot.lane.b32.xlu0 %v1027, 64
    %v1030 = vpop.permute.xlu0 %1029
    %v1032 = vmul.f32 %v1009, %v1030
    %1034 = vrot.lane.b32.xlu0 %v1026, 96
    %v1035 = vpop.permute.xlu0 %1034
    %1037 = vst.msk [vmem:[#allocation3] sm:$0xff] %vm76, %v1035
    %1039 = vrot.lane.b32.xlu0 %v1032, 32
    %v1040 = vpop.permute.xlu0 %1039
    %1042 = vst.msk [vmem:[#allocation2] sm:$0xff] %vm76, %v1040
    %s1043 = scalar_lea.vmem [#allocation6], 56
    %1044 = vst.msk [vmem:[%s1043] sm:$0xff] %vm76, %v1040
    // Predicated region
    $region44: #{_rnn_forward_impl.8} parent=1 // pred_check
      %p1045 = pneg %p12
    $region45: #{_rnn_forward_impl.8} parent=1 // pred_check_branch
      %1047 = sbr.rel (%p1045) target = $region47
    $region46: #{_rnn_forward_impl.8} parent=1 // pred_region
      %v1048 = vld [vmem:[#allocation2] sm:$0xff]
      %1049 = vst.msk [vmem:[%s3] sm:$0xff] %vm76, %v1048
    $region47: #{_rnn_forward_impl.8} parent=1 // pred_fallthru
      _
    // Predicated region
    $region48: #{_rnn_forward_impl.8} parent=1 // pred_check
      _
    $region49: #{_rnn_forward_impl.8} parent=1 // pred_check_branch
      %1051 = sbr.rel (0) target = $region51
    $region50: #{_rnn_forward_impl.8} parent=1 // pred_region
      %s1053 = ssub.s32 1024, 1024
      %1054 = vsyncadd [#allocation7], %s1053
      %s1055 = sshll.u32 [#allocation6], 4
      %s1056 = int_to_ptr.vmem [resolvable:$true] %s1055
      %1061 = dma.vmem_to_hbm [thread:$0]  %s1056, 1024, %s2, [#allocation7], 128, 128, 8
    $region51: #{_rnn_forward_impl.8} parent=1 // pred_fallthru
      _
    // Predicated region
    $region52: #{_rnn_forward_impl.8} parent=1 // pred_check
      _
    $region53: #{_rnn_forward_impl.8} parent=1 // pred_check_branch
      %1063 = sbr.rel (0) target = $region55
    $region54: #{_rnn_forward_impl.8} parent=1 // pred_region
      _
    $region55: #{_rnn_forward_impl.8} parent=1 // pred_fallthru
      _
    // Predicated region
    $region56: #{_rnn_forward_impl.8} parent=1 // pred_check
      _
    $region57: #{_rnn_forward_impl.8} parent=1 // pred_check_branch
      %1065 = sbr.rel (0) target = $region59
    $region58: #{_rnn_forward_impl.8} parent=1 // pred_region
      %1066 = dma.done [#allocation7], 1024
    $region59: #{_rnn_forward_impl.8} parent=1 // pred_fallthru
      _
    // Predicated region
    $region60: #{_rnn_forward_impl.8} parent=1 // pred_check
      _
    $region61: #{_rnn_forward_impl.8} parent=1 // pred_check_branch
      %1068 = sbr.rel (0) target = $region63
    $region62: #{_rnn_forward_impl.8} parent=1 // pred_region
      _
    $region63: #{_rnn_forward_impl.8} parent=1 // pred_fallthru
      _
    %1069 = vsyncpa [#allocation7], 1
  %1070 = vsyncmov [#allocation5]
  %s1071 = vpop.sfrf %1070
  %p1072 = scmp.eq.s32.totalorder %s1071, 0
  %p1073 = pneg %p1072
  %1075 = shalt.err (%p1073)

</llo_original>
